<compile_context>
chip_gen: v6e
topology: v6e:2x2x1
jax: 0.10.0
libtpu: 0.0.40
codegen_flags: <defaults>
</compile_context>

<pallas_src>
import math

import jax
import jax.numpy as jnp
import numpy as np
from jax.experimental import pallas as pl
from jax.experimental.pallas import tpu as pltpu

# ---- model hyper-parameters (small, consistent with the module) ----
D_EMBED = 32          # embedded feature dim
Q_DIM = 8             # per-head query/key dim
V_DIM = 8             # per-head value dim
N_HEADS = 4           # H
D_FF = 4 * D_EMBED    # position-wise FFN hidden dim
LN_EPS = 1e-5
B, T = 2, 8           # batch, sequence length

HQ = N_HEADS * Q_DIM          # 32
HV = N_HEADS * V_DIM          # 32
QKV_W = 2 * HQ + HV           # 96 fused q|k|v output width

# packed small-vector slab layout: one padded row of 128 lanes per vector
VEC_ROWS = ("bqkv1", "bqkv2", "bo1", "bo2", "bf1", "bf2",
            "g1", "be1", "g2", "be2", "g3", "be3")
VEC_WIDTHS = {"bqkv1": QKV_W, "bqkv2": QKV_W,
              "bo1": D_EMBED, "bo2": D_EMBED, "bf1": D_FF, "bf2": D_EMBED,
              "g1": D_EMBED, "be1": D_EMBED, "g2": D_EMBED, "be2": D_EMBED,
              "g3": D_EMBED, "be3": D_EMBED}
VEC_PAD = 128

PARAM_NAMES = ("wqkv1", "wo1", "wqkv2", "wo2", "wf1", "wf2", "vecs")


def _vec(vecs, name):
    """Slice one packed (1, width) vector out of the (12, 128) slab."""
    r = VEC_ROWS.index(name)
    return vecs[r:r + 1, 0:VEC_WIDTHS[name]]


# ---------------- shared math (works on Pallas Refs *and* jnp arrays) --------
def _layer_norm(x, gamma, beta):
    mu = jnp.mean(x, axis=-1, keepdims=True)
    var = jnp.mean(jnp.square(x - mu), axis=-1, keepdims=True)
    return (x - mu) * jax.lax.rsqrt(var + LN_EPS) * gamma + beta


def _softmax_last(s, approx_recip):
    s = s - jnp.max(s, axis=-1, keepdims=True)
    p = jnp.exp(s)
    denom = jnp.sum(p, axis=-1, keepdims=True)
    if approx_recip:
        return p * pl.reciprocal(denom, approx=True)   # EUP slot
    return p / denom


def _mha(q_src, kv_src, wqkv_op, bqkv, wo_op, bo, b, t, approx_recip):
    """Multi-head attention with a forward (causal) mask.

    q_src, kv_src : (B*T, D) f32 activation slabs (same object => self-attn)
    wqkv_op       : (D, 2*H*Qd + H*Vd) bf16 fused q|k|v projection (ref/array);
                    the 1/sqrt(Qd) score scale is pre-folded into the q columns
    bqkv          : (1, 2*H*Qd + H*Vd) f32 fused biases (already loaded, scaled)
    wo_op         : (H*Vd, D) bf16 output projection (ref/array)
    bo            : (1, D) f32 output bias (already loaded)
    returns (B*T, D) f32
    """
    wqkv = wqkv_op[...]          # (D, 96) bf16 -- loaded lazily, short live range

    if q_src is kv_src:
        # self-attention: one fused QKV matmul over the whole (B*T, D) slab
        qkv = jnp.dot(q_src.astype(jnp.bfloat16), wqkv,
                      preferred_element_type=jnp.float32) + bqkv
        qp = qkv[:, 0:HQ]
        kp = qkv[:, HQ:2 * HQ]
        vp = qkv[:, 2 * HQ:2 * HQ + HV]
    else:
        # cross-attention: q from decoder stream, k/v from encoder output
        qp = jnp.dot(q_src.astype(jnp.bfloat16), wqkv[:, 0:HQ],
                     preferred_element_type=jnp.float32) + bqkv[:, 0:HQ]
        kv = jnp.dot(kv_src.astype(jnp.bfloat16), wqkv[:, HQ:2 * HQ + HV],
                     preferred_element_type=jnp.float32) + bqkv[:, HQ:2 * HQ + HV]
        kp = kv[:, 0:HQ]
        vp = kv[:, HQ:HQ + HV]

    # additive causal (forward) mask, computed once per attention block
    row = jax.lax.broadcasted_iota(jnp.int32, (t, t), 0)
    col = jax.lax.broadcasted_iota(jnp.int32, (t, t), 1)
    mask_bias = jnp.where(col > row, jnp.float32(-1e30), jnp.float32(0.0))

    wo = wo_op[...]              # (H*Vd, D) bf16
    acc = None
    for h in range(N_HEADS):     # static unroll over heads; batch dim batched
        q_h = qp[:, h * Q_DIM:(h + 1) * Q_DIM].reshape(b, t, Q_DIM)
        k_h = kp[:, h * Q_DIM:(h + 1) * Q_DIM].reshape(b, t, Q_DIM)
        v_h = vp[:, h * V_DIM:(h + 1) * V_DIM].reshape(b, t, V_DIM)
        s = jnp.einsum("btq,bsq->bts",
                       q_h.astype(jnp.bfloat16), k_h.astype(jnp.bfloat16),
                       preferred_element_type=jnp.float32)
        s = s + mask_bias                       # broadcast over batch
        p = _softmax_last(s, approx_recip)
        o_h = jnp.einsum("bts,bsv->btv",
                         p.astype(jnp.bfloat16), v_h.astype(jnp.bfloat16),
                         preferred_element_type=jnp.float32)
        # fold the output projection per head instead of concat + matmul
        contrib = jnp.dot(o_h.reshape(b * t, V_DIM).astype(jnp.bfloat16),
                          wo[h * V_DIM:(h + 1) * V_DIM, :],
                          preferred_element_type=jnp.float32)
        acc = contrib if acc is None else acc + contrib
    return acc + bo


def _decoder_block(x_op, enc_op, p, approx_recip):
    """Full decoder block. `p` holds Refs in-kernel / jnp arrays in the ref path."""
    x3 = x_op[...]                       # (B, T, D) f32
    b, t, d = x3.shape
    x2 = x3.reshape(b * t, d)            # leading-dim collapse only (layout-safe)
    vecs = p["vecs"][...]                # (12, 128) f32 packed small vectors

    # [1] masked self-attention + residual + LayerNorm   (dropout == identity)
    a1 = _mha(x2, x2, p["wqkv1"], _vec(vecs, "bqkv1"), p["wo1"],
              _vec(vecs, "bo1"), b, t, approx_recip)
    x2 = _layer_norm(x2 + a1, _vec(vecs, "g1"), _vec(vecs, "be1"))

    # [2] cross-attention over the encoder output + residual + LayerNorm
    enc2 = enc_op[...].reshape(b * t, d)
    a2 = _mha(x2, enc2, p["wqkv2"], _vec(vecs, "bqkv2"), p["wo2"],
              _vec(vecs, "bo2"), b, t, approx_recip)
    x2 = _layer_norm(x2 + a2, _vec(vecs, "g2"), _vec(vecs, "be2"))

    # [3] position-wise FFN + residual + LayerNorm
    hid = jnp.dot(x2.astype(jnp.bfloat16), p["wf1"][...],
                  preferred_element_type=jnp.float32) + _vec(vecs, "bf1")
    hid = jnp.maximum(hid, 0.0)
    f = jnp.dot(hid.astype(jnp.bfloat16), p["wf2"][...],
                preferred_element_type=jnp.float32) + _vec(vecs, "bf2")
    x2 = _layer_norm(x2 + f, _vec(vecs, "g3"), _vec(vecs, "be3"))

    return x2.reshape(b, t, d)


# ---------------- Pallas kernel + wrapper ------------------------------------
def decoder_kernel(x_ref, enc_ref, wqkv1, wo1, wqkv2, wo2, wf1, wf2, vecs,
                   o_ref):
    p = {"wqkv1": wqkv1, "wo1": wo1, "wqkv2": wqkv2, "wo2": wo2,
         "wf1": wf1, "wf2": wf2, "vecs": vecs}
    o_ref[...] = _decoder_block(x_ref, enc_ref, p, approx_recip=True)


def decoder_forward(x, enc, params):
    """x, enc: (B, T, D_EMBED) float32. params: packed dict (see pack_params)."""
    b, t, d = x.shape
    args = [x, enc] + [params[n] for n in PARAM_NAMES]

    def full_block(a):
        nd = a.ndim
        return pl.BlockSpec(tuple(a.shape), lambda i: (0,) * nd)

    return pl.pallas_call(
        decoder_kernel,
        out_shape=jax.ShapeDtypeStruct((b, t, d), jnp.float32),
        grid=(1,),   # single program: whole problem fits comfortably in VMEM
        in_specs=[full_block(a) for a in args],
        out_specs=pl.BlockSpec((b, t, d), lambda i: (0, 0, 0)),
        compiler_params=pltpu.CompilerParams(
            dimension_semantics=("arbitrary",)),
    )(*args)


# ---------------- deterministic parameter initialization ---------------------
def init_weights(key):
    def lin(key, fan_in, fan_out):
        kw, kb = jax.random.split(key)
        bound = 1.0 / math.sqrt(fan_in)
        w = jax.random.uniform(kw, (fan_in, fan_out), jnp.float32, -bound, bound)
        b = jax.random.uniform(kb, (1, fan_out), jnp.float32, -bound, bound)
        return w, b

    keys = jax.random.split(key, 10)
    w = {}
    w["wq1"], w["bq1"] = lin(keys[0], D_EMBED, Q_DIM * N_HEADS)
    w["wk1"], w["bk1"] = lin(keys[1], D_EMBED, Q_DIM * N_HEADS)
    w["wv1"], w["bv1"] = lin(keys[2], D_EMBED, V_DIM * N_HEADS)
    w["wo1"], w["bo1"] = lin(keys[3], V_DIM * N_HEADS, D_EMBED)
    w["wq2"], w["bq2"] = lin(keys[4], D_EMBED, Q_DIM * N_HEADS)
    w["wk2"], w["bk2"] = lin(keys[5], D_EMBED, Q_DIM * N_HEADS)
    w["wv2"], w["bv2"] = lin(keys[6], D_EMBED, V_DIM * N_HEADS)
    w["wo2"], w["bo2"] = lin(keys[7], V_DIM * N_HEADS, D_EMBED)
    w["wf1"], w["bf1"] = lin(keys[8], D_EMBED, D_FF)
    w["wf2"], w["bf2"] = lin(keys[9], D_FF, D_EMBED)
    for g, be in (("g1", "be1"), ("g2", "be2"), ("g3", "be3")):
        w[g] = jnp.ones((1, D_EMBED), jnp.float32)
        w[be] = jnp.zeros((1, D_EMBED), jnp.float32)
    return w


def pack_params(w):
    """Host-side packing: fused QKV weights (bf16, q-cols pre-scaled by
    1/sqrt(Qd)), packed bias/LN slab (f32)."""
    scale = 1.0 / math.sqrt(Q_DIM)

    def pad_row(v):
        return jnp.pad(v, ((0, 0), (0, VEC_PAD - v.shape[1])))

    p = {}
    vec_srcs = {}
    for s in ("1", "2"):
        p["wqkv" + s] = jnp.concatenate(
            [w["wq" + s] * scale, w["wk" + s], w["wv" + s]],
            axis=1).astype(jnp.bfloat16)
        vec_srcs["bqkv" + s] = jnp.concatenate(
            [w["bq" + s] * scale, w["bk" + s], w["bv" + s]], axis=1)
        p["wo" + s] = w["wo" + s].astype(jnp.bfloat16)
    p["wf1"] = w["wf1"].astype(jnp.bfloat16)
    p["wf2"] = w["wf2"].astype(jnp.bfloat16)
    for n in ("bo1", "bo2", "bf1", "bf2", "g1", "be1", "g2", "be2", "g3", "be3"):
        vec_srcs[n] = w[n]
    p["vecs"] = jnp.concatenate(
        [pad_row(vec_srcs[n]) for n in VEC_ROWS], axis=0).astype(jnp.float32)
    return p


# ---------------- independent f32 reference (mirrors the PyTorch module) -----
def _reference_f32(x, enc, w):
    def mha(q_in, k_in, v_in, wq, bq, wk, bk, wv, bv, wo, bo):
        tt = q_in.shape[0]
        q = q_in @ wq + bq
        k = k_in @ wk + bk
        v = v_in @ wv + bv
        rowi = jax.lax.broadcasted_iota(jnp.int32, (tt, tt), 0)
        coli = jax.lax.broadcasted_iota(jnp.int32, (tt, tt), 1)
        outs = []
        for h in range(N_HEADS):
            qh = q[:, h * Q_DIM:(h + 1) * Q_DIM]
            kh = k[:, h * Q_DIM:(h + 1) * Q_DIM]
            vh = v[:, h * V_DIM:(h + 1) * V_DIM]
            s = (qh @ kh.T) / math.sqrt(Q_DIM)
            s = jnp.where(coli > rowi, -1e30, s)
            outs.append(jax.nn.softmax(s, axis=-1) @ vh)
        return jnp.concatenate(outs, axis=-1) @ wo + bo

    def ln(z, g, be):
        mu = jnp.mean(z, -1, keepdims=True)
        var = jnp.mean((z - mu) ** 2, -1, keepdims=True)
        return (z - mu) * jax.lax.rsqrt(var + LN_EPS) * g + be

    def block(xb, eb):
        xb = ln(xb + mha(xb, xb, xb, w["wq1"], w["bq1"], w["wk1"], w["bk1"],
                         w["wv1"], w["bv1"], w["wo1"], w["bo1"]),
                w["g1"], w["be1"])
        xb = ln(xb + mha(xb, eb, eb, w["wq2"], w["bq2"], w["wk2"], w["bk2"],
                         w["wv2"], w["bv2"], w["wo2"], w["bo2"]),
                w["g2"], w["be2"])
        hh = jnp.maximum(xb @ w["wf1"] + w["bf1"], 0.0)
        return ln(xb + (hh @ w["wf2"] + w["bf2"]), w["g3"], w["be3"])

    return jnp.stack([block(x[i], enc[i]) for i in range(x.shape[0])])


if __name__ == "__main__":
    key = jax.random.PRNGKey(0)
    k_x, k_e, k_w = jax.random.split(key, 3)
    x = jax.random.normal(k_x, (B, T, D_EMBED), jnp.float32)
    enc = jax.random.normal(k_e, (B, T, D_EMBED), jnp.float32)
    raw = init_weights(k_w)
    params = pack_params(raw)

    out = jax.block_until_ready(decoder_forward(x, enc, params))

    # Reference 1: identical math graph (same packed bf16 weights) via plain XLA.
    ref_packed = _decoder_block(x, enc, params, approx_recip=False)
    np.testing.assert_allclose(np.asarray(out), np.asarray(ref_packed),
                               rtol=2e-2, atol=2e-2)

    # Reference 2: straight f32 implementation of the module semantics (coarse
    # guard against packing mistakes; bf16 MXU inputs limit attainable accuracy).
    ref_f32 = _reference_f32(x, enc, raw)
    assert float(jnp.max(jnp.abs(out - ref_f32))) < 0.25

    assert out.shape == (B, T, D_EMBED)
    assert bool(jnp.all(jnp.isfinite(out)))
    print("KERNEL_OK")
</pallas_src>

<mosaic_0001>
module attributes {stable_mosaic.version = 11 : i64} {
  func.func @decoder_kernel(%arg0: i32, %arg1: memref<2x8x32xf32, #tpu.memory_space<vmem>>, %arg2: memref<2x8x32xf32, #tpu.memory_space<vmem>>, %arg3: memref<32x96xbf16, #tpu.memory_space<vmem>>, %arg4: memref<32x32xbf16, #tpu.memory_space<vmem>>, %arg5: memref<32x96xbf16, #tpu.memory_space<vmem>>, %arg6: memref<32x32xbf16, #tpu.memory_space<vmem>>, %arg7: memref<32x128xbf16, #tpu.memory_space<vmem>>, %arg8: memref<128x32xbf16, #tpu.memory_space<vmem>>, %arg9: memref<12x128xf32, #tpu.memory_space<vmem>>, %arg10: memref<2x8x32xf32, #tpu.memory_space<vmem>>) attributes {dimension_semantics = [#tpu.dimension_semantics<arbitrary>], iteration_bounds = array<i64: 1>, scalar_prefetch = 0 : i64, scratch_operands = 0 : i64, tpu.core_type = #tpu.core_type<tc>, window_params = [{pipeline_mode = #tpu.pipeline_mode<synchronous>, transform_indices = @transform_0, window_bounds = array<i64: 2, 8, 32>}, {pipeline_mode = #tpu.pipeline_mode<synchronous>, transform_indices = @transform_1, window_bounds = array<i64: 2, 8, 32>}, {pipeline_mode = #tpu.pipeline_mode<synchronous>, transform_indices = @transform_2, window_bounds = array<i64: 32, 96>}, {pipeline_mode = #tpu.pipeline_mode<synchronous>, transform_indices = @transform_3, window_bounds = array<i64: 32, 32>}, {pipeline_mode = #tpu.pipeline_mode<synchronous>, transform_indices = @transform_4, window_bounds = array<i64: 32, 96>}, {pipeline_mode = #tpu.pipeline_mode<synchronous>, transform_indices = @transform_5, window_bounds = array<i64: 32, 32>}, {pipeline_mode = #tpu.pipeline_mode<synchronous>, transform_indices = @transform_6, window_bounds = array<i64: 32, 128>}, {pipeline_mode = #tpu.pipeline_mode<synchronous>, transform_indices = @transform_7, window_bounds = array<i64: 128, 32>}, {pipeline_mode = #tpu.pipeline_mode<synchronous>, transform_indices = @transform_8, window_bounds = array<i64: 12, 128>}, {pipeline_mode = #tpu.pipeline_mode<synchronous>, transform_indices = @transform_9, window_bounds = array<i64: 2, 8, 32>}]} {
    %c0 = arith.constant 0 : index
    %c0_0 = arith.constant 0 : index
    %c0_1 = arith.constant 0 : index
    %0 = vector.load %arg1[%c0, %c0_0, %c0_1] : memref<2x8x32xf32, #tpu.memory_space<vmem>>, vector<2x8x32xf32>
    %1 = vector.shape_cast %0 : vector<2x8x32xf32> to vector<16x32xf32>
    %c0_2 = arith.constant 0 : index
    %c0_3 = arith.constant 0 : index
    %2 = vector.load %arg9[%c0_2, %c0_3] : memref<12x128xf32, #tpu.memory_space<vmem>>, vector<12x128xf32>
    %3 = vector.extract_strided_slice %2 {offsets = [0, 0], sizes = [1, 96], strides = [1, 1]} : vector<12x128xf32> to vector<1x96xf32>
    %4 = vector.extract_strided_slice %2 {offsets = [2, 0], sizes = [1, 32], strides = [1, 1]} : vector<12x128xf32> to vector<1x32xf32>
    %c0_4 = arith.constant 0 : index
    %c0_5 = arith.constant 0 : index
    %5 = vector.load %arg3[%c0_4, %c0_5] : memref<32x96xbf16, #tpu.memory_space<vmem>>, vector<32x96xbf16>
    %6 = arith.truncf %1 : vector<16x32xf32> to vector<16x32xbf16>
    %cst = arith.constant dense<0.000000e+00> : vector<16x96xf32>
    %7 = tpu.matmul %6, %5, %cst {dimension_numbers = #tpu.dot_dimension_numbers<[1], [0], [0], [1], [0, 0, 1, 1], [], []>} : vector<16x32xbf16>, vector<32x96xbf16>, vector<16x96xf32> -> vector<16x96xf32>
    %8 = vector.broadcast %3 : vector<1x96xf32> to vector<16x96xf32>
    %9 = arith.addf %7, %8 : vector<16x96xf32>
    %10 = vector.extract_strided_slice %9 {offsets = [0, 0], sizes = [16, 32], strides = [1, 1]} : vector<16x96xf32> to vector<16x32xf32>
    %11 = vector.extract_strided_slice %9 {offsets = [0, 32], sizes = [16, 32], strides = [1, 1]} : vector<16x96xf32> to vector<16x32xf32>
    %12 = vector.extract_strided_slice %9 {offsets = [0, 64], sizes = [16, 32], strides = [1, 1]} : vector<16x96xf32> to vector<16x32xf32>
    %13 = tpu.iota {dimensions = array<i32: 0>} : vector<8x8xi32>
    %14 = tpu.iota {dimensions = array<i32: 1>} : vector<8x8xi32>
    %15 = arith.cmpi sgt, %14, %13 : vector<8x8xi32>
    %cst_6 = arith.constant -1.000000e+30 : f32
    %cst_7 = arith.constant 0.000000e+00 : f32
    %16 = vector.broadcast %cst_6 : f32 to vector<8x8xf32>
    %17 = vector.broadcast %cst_7 : f32 to vector<8x8xf32>
    %18 = arith.select %15, %16, %17 : vector<8x8xi1>, vector<8x8xf32>
    %c0_8 = arith.constant 0 : index
    %c0_9 = arith.constant 0 : index
    %19 = vector.load %arg4[%c0_8, %c0_9] : memref<32x32xbf16, #tpu.memory_space<vmem>>, vector<32x32xbf16>
    %20 = vector.extract_strided_slice %10 {offsets = [0, 0], sizes = [16, 8], strides = [1, 1]} : vector<16x32xf32> to vector<16x8xf32>
    %21 = vector.shape_cast %20 : vector<16x8xf32> to vector<2x8x8xf32>
    %22 = vector.extract_strided_slice %11 {offsets = [0, 0], sizes = [16, 8], strides = [1, 1]} : vector<16x32xf32> to vector<16x8xf32>
    %23 = vector.shape_cast %22 : vector<16x8xf32> to vector<2x8x8xf32>
    %24 = vector.extract_strided_slice %12 {offsets = [0, 0], sizes = [16, 8], strides = [1, 1]} : vector<16x32xf32> to vector<16x8xf32>
    %25 = vector.shape_cast %24 : vector<16x8xf32> to vector<2x8x8xf32>
    %26 = arith.truncf %21 : vector<2x8x8xf32> to vector<2x8x8xbf16>
    %27 = arith.truncf %23 : vector<2x8x8xf32> to vector<2x8x8xbf16>
    "tpu.trace_start"() <{level = 10 : i32, message = "btq,bsq->bts"}> : () -> ()
    %cst_10 = arith.constant dense<0.000000e+00> : vector<2x8x8xf32>
    %28 = tpu.matmul %26, %27, %cst_10 {dimension_numbers = #tpu.dot_dimension_numbers<[2], [2], [1], [1], [0, 0, 0, 1, 1, 1], [0], [0]>} : vector<2x8x8xbf16>, vector<2x8x8xbf16>, vector<2x8x8xf32> -> vector<2x8x8xf32>
    "tpu.trace_stop"() : () -> ()
    %29 = vector.shape_cast %18 : vector<8x8xf32> to vector<1x8x8xf32>
    %30 = vector.broadcast %29 : vector<1x8x8xf32> to vector<2x8x8xf32>
    %31 = arith.addf %28, %30 : vector<2x8x8xf32>
    %cst_11 = arith.constant dense<0xFF800000> : vector<2x8xf32>
    %32 = vector.multi_reduction <maximumf>, %31, %cst_11 [2] : vector<2x8x8xf32> to vector<2x8xf32>
    %33 = vector.shape_cast %32 : vector<2x8xf32> to vector<2x8x1xf32>
    %34 = vector.broadcast %33 : vector<2x8x1xf32> to vector<2x8x8xf32>
    %35 = arith.subf %31, %34 : vector<2x8x8xf32>
    %36 = math.exp %35 : vector<2x8x8xf32>
    %cst_12 = arith.constant dense<0.000000e+00> : vector<2x8xf32>
    %37 = vector.multi_reduction <add>, %36, %cst_12 [2] : vector<2x8x8xf32> to vector<2x8xf32>
    %38 = vector.shape_cast %37 : vector<2x8xf32> to vector<2x8x1xf32>
    %39 = tpu.reciprocal %38 {approx = true} : vector<2x8x1xf32> -> vector<2x8x1xf32>
    %40 = vector.broadcast %39 : vector<2x8x1xf32> to vector<2x8x8xf32>
    %41 = arith.mulf %36, %40 : vector<2x8x8xf32>
    %42 = arith.truncf %41 : vector<2x8x8xf32> to vector<2x8x8xbf16>
    %43 = arith.truncf %25 : vector<2x8x8xf32> to vector<2x8x8xbf16>
    "tpu.trace_start"() <{level = 10 : i32, message = "bts,bsv->btv"}> : () -> ()
    %cst_13 = arith.constant dense<0.000000e+00> : vector<2x8x8xf32>
    %44 = tpu.matmul %42, %43, %cst_13 {dimension_numbers = #tpu.dot_dimension_numbers<[2], [1], [1], [2], [0, 0, 0, 1, 1, 2], [0], [0]>} : vector<2x8x8xbf16>, vector<2x8x8xbf16>, vector<2x8x8xf32> -> vector<2x8x8xf32>
    "tpu.trace_stop"() : () -> ()
    %45 = vector.shape_cast %44 : vector<2x8x8xf32> to vector<16x8xf32>
    %46 = arith.truncf %45 : vector<16x8xf32> to vector<16x8xbf16>
    %47 = vector.extract_strided_slice %19 {offsets = [0, 0], sizes = [8, 32], strides = [1, 1]} : vector<32x32xbf16> to vector<8x32xbf16>
    %cst_14 = arith.constant dense<0.000000e+00> : vector<16x32xf32>
    %48 = tpu.matmul %46, %47, %cst_14 {dimension_numbers = #tpu.dot_dimension_numbers<[1], [0], [0], [1], [0, 0, 1, 1], [], []>} : vector<16x8xbf16>, vector<8x32xbf16>, vector<16x32xf32> -> vector<16x32xf32>
    %49 = vector.extract_strided_slice %10 {offsets = [0, 8], sizes = [16, 8], strides = [1, 1]} : vector<16x32xf32> to vector<16x8xf32>
    %50 = vector.shape_cast %49 : vector<16x8xf32> to vector<2x8x8xf32>
    %51 = vector.extract_strided_slice %11 {offsets = [0, 8], sizes = [16, 8], strides = [1, 1]} : vector<16x32xf32> to vector<16x8xf32>
    %52 = vector.shape_cast %51 : vector<16x8xf32> to vector<2x8x8xf32>
    %53 = vector.extract_strided_slice %12 {offsets = [0, 8], sizes = [16, 8], strides = [1, 1]} : vector<16x32xf32> to vector<16x8xf32>
    %54 = vector.shape_cast %53 : vector<16x8xf32> to vector<2x8x8xf32>
    %55 = arith.truncf %50 : vector<2x8x8xf32> to vector<2x8x8xbf16>
    %56 = arith.truncf %52 : vector<2x8x8xf32> to vector<2x8x8xbf16>
    "tpu.trace_start"() <{level = 10 : i32, message = "btq,bsq->bts"}> : () -> ()
    %cst_15 = arith.constant dense<0.000000e+00> : vector<2x8x8xf32>
    %57 = tpu.matmul %55, %56, %cst_15 {dimension_numbers = #tpu.dot_dimension_numbers<[2], [2], [1], [1], [0, 0, 0, 1, 1, 1], [0], [0]>} : vector<2x8x8xbf16>, vector<2x8x8xbf16>, vector<2x8x8xf32> -> vector<2x8x8xf32>
    "tpu.trace_stop"() : () -> ()
    %58 = vector.shape_cast %18 : vector<8x8xf32> to vector<1x8x8xf32>
    %59 = vector.broadcast %58 : vector<1x8x8xf32> to vector<2x8x8xf32>
    %60 = arith.addf %57, %59 : vector<2x8x8xf32>
    %cst_16 = arith.constant dense<0xFF800000> : vector<2x8xf32>
    %61 = vector.multi_reduction <maximumf>, %60, %cst_16 [2] : vector<2x8x8xf32> to vector<2x8xf32>
    %62 = vector.shape_cast %61 : vector<2x8xf32> to vector<2x8x1xf32>
    %63 = vector.broadcast %62 : vector<2x8x1xf32> to vector<2x8x8xf32>
    %64 = arith.subf %60, %63 : vector<2x8x8xf32>
    %65 = math.exp %64 : vector<2x8x8xf32>
    %cst_17 = arith.constant dense<0.000000e+00> : vector<2x8xf32>
    %66 = vector.multi_reduction <add>, %65, %cst_17 [2] : vector<2x8x8xf32> to vector<2x8xf32>
    %67 = vector.shape_cast %66 : vector<2x8xf32> to vector<2x8x1xf32>
    %68 = tpu.reciprocal %67 {approx = true} : vector<2x8x1xf32> -> vector<2x8x1xf32>
    %69 = vector.broadcast %68 : vector<2x8x1xf32> to vector<2x8x8xf32>
    %70 = arith.mulf %65, %69 : vector<2x8x8xf32>
    %71 = arith.truncf %70 : vector<2x8x8xf32> to vector<2x8x8xbf16>
    %72 = arith.truncf %54 : vector<2x8x8xf32> to vector<2x8x8xbf16>
    "tpu.trace_start"() <{level = 10 : i32, message = "bts,bsv->btv"}> : () -> ()
    %cst_18 = arith.constant dense<0.000000e+00> : vector<2x8x8xf32>
    %73 = tpu.matmul %71, %72, %cst_18 {dimension_numbers = #tpu.dot_dimension_numbers<[2], [1], [1], [2], [0, 0, 0, 1, 1, 2], [0], [0]>} : vector<2x8x8xbf16>, vector<2x8x8xbf16>, vector<2x8x8xf32> -> vector<2x8x8xf32>
    "tpu.trace_stop"() : () -> ()
    %74 = vector.shape_cast %73 : vector<2x8x8xf32> to vector<16x8xf32>
    %75 = arith.truncf %74 : vector<16x8xf32> to vector<16x8xbf16>
    %76 = vector.extract_strided_slice %19 {offsets = [8, 0], sizes = [8, 32], strides = [1, 1]} : vector<32x32xbf16> to vector<8x32xbf16>
    %cst_19 = arith.constant dense<0.000000e+00> : vector<16x32xf32>
    %77 = tpu.matmul %75, %76, %cst_19 {dimension_numbers = #tpu.dot_dimension_numbers<[1], [0], [0], [1], [0, 0, 1, 1], [], []>} : vector<16x8xbf16>, vector<8x32xbf16>, vector<16x32xf32> -> vector<16x32xf32>
    %78 = arith.addf %48, %77 : vector<16x32xf32>
    %79 = vector.extract_strided_slice %10 {offsets = [0, 16], sizes = [16, 8], strides = [1, 1]} : vector<16x32xf32> to vector<16x8xf32>
    %80 = vector.shape_cast %79 : vector<16x8xf32> to vector<2x8x8xf32>
    %81 = vector.extract_strided_slice %11 {offsets = [0, 16], sizes = [16, 8], strides = [1, 1]} : vector<16x32xf32> to vector<16x8xf32>
    %82 = vector.shape_cast %81 : vector<16x8xf32> to vector<2x8x8xf32>
    %83 = vector.extract_strided_slice %12 {offsets = [0, 16], sizes = [16, 8], strides = [1, 1]} : vector<16x32xf32> to vector<16x8xf32>
    %84 = vector.shape_cast %83 : vector<16x8xf32> to vector<2x8x8xf32>
    %85 = arith.truncf %80 : vector<2x8x8xf32> to vector<2x8x8xbf16>
    %86 = arith.truncf %82 : vector<2x8x8xf32> to vector<2x8x8xbf16>
    "tpu.trace_start"() <{level = 10 : i32, message = "btq,bsq->bts"}> : () -> ()
    %cst_20 = arith.constant dense<0.000000e+00> : vector<2x8x8xf32>
    %87 = tpu.matmul %85, %86, %cst_20 {dimension_numbers = #tpu.dot_dimension_numbers<[2], [2], [1], [1], [0, 0, 0, 1, 1, 1], [0], [0]>} : vector<2x8x8xbf16>, vector<2x8x8xbf16>, vector<2x8x8xf32> -> vector<2x8x8xf32>
    "tpu.trace_stop"() : () -> ()
    %88 = vector.shape_cast %18 : vector<8x8xf32> to vector<1x8x8xf32>
    %89 = vector.broadcast %88 : vector<1x8x8xf32> to vector<2x8x8xf32>
    %90 = arith.addf %87, %89 : vector<2x8x8xf32>
    %cst_21 = arith.constant dense<0xFF800000> : vector<2x8xf32>
    %91 = vector.multi_reduction <maximumf>, %90, %cst_21 [2] : vector<2x8x8xf32> to vector<2x8xf32>
    %92 = vector.shape_cast %91 : vector<2x8xf32> to vector<2x8x1xf32>
    %93 = vector.broadcast %92 : vector<2x8x1xf32> to vector<2x8x8xf32>
    %94 = arith.subf %90, %93 : vector<2x8x8xf32>
    %95 = math.exp %94 : vector<2x8x8xf32>
    %cst_22 = arith.constant dense<0.000000e+00> : vector<2x8xf32>
    %96 = vector.multi_reduction <add>, %95, %cst_22 [2] : vector<2x8x8xf32> to vector<2x8xf32>
    %97 = vector.shape_cast %96 : vector<2x8xf32> to vector<2x8x1xf32>
    %98 = tpu.reciprocal %97 {approx = true} : vector<2x8x1xf32> -> vector<2x8x1xf32>
    %99 = vector.broadcast %98 : vector<2x8x1xf32> to vector<2x8x8xf32>
    %100 = arith.mulf %95, %99 : vector<2x8x8xf32>
    %101 = arith.truncf %100 : vector<2x8x8xf32> to vector<2x8x8xbf16>
    %102 = arith.truncf %84 : vector<2x8x8xf32> to vector<2x8x8xbf16>
    "tpu.trace_start"() <{level = 10 : i32, message = "bts,bsv->btv"}> : () -> ()
    %cst_23 = arith.constant dense<0.000000e+00> : vector<2x8x8xf32>
    %103 = tpu.matmul %101, %102, %cst_23 {dimension_numbers = #tpu.dot_dimension_numbers<[2], [1], [1], [2], [0, 0, 0, 1, 1, 2], [0], [0]>} : vector<2x8x8xbf16>, vector<2x8x8xbf16>, vector<2x8x8xf32> -> vector<2x8x8xf32>
    "tpu.trace_stop"() : () -> ()
    %104 = vector.shape_cast %103 : vector<2x8x8xf32> to vector<16x8xf32>
    %105 = arith.truncf %104 : vector<16x8xf32> to vector<16x8xbf16>
    %106 = vector.extract_strided_slice %19 {offsets = [16, 0], sizes = [8, 32], strides = [1, 1]} : vector<32x32xbf16> to vector<8x32xbf16>
    %cst_24 = arith.constant dense<0.000000e+00> : vector<16x32xf32>
    %107 = tpu.matmul %105, %106, %cst_24 {dimension_numbers = #tpu.dot_dimension_numbers<[1], [0], [0], [1], [0, 0, 1, 1], [], []>} : vector<16x8xbf16>, vector<8x32xbf16>, vector<16x32xf32> -> vector<16x32xf32>
    %108 = arith.addf %78, %107 : vector<16x32xf32>
    %109 = vector.extract_strided_slice %10 {offsets = [0, 24], sizes = [16, 8], strides = [1, 1]} : vector<16x32xf32> to vector<16x8xf32>
    %110 = vector.shape_cast %109 : vector<16x8xf32> to vector<2x8x8xf32>
    %111 = vector.extract_strided_slice %11 {offsets = [0, 24], sizes = [16, 8], strides = [1, 1]} : vector<16x32xf32> to vector<16x8xf32>
    %112 = vector.shape_cast %111 : vector<16x8xf32> to vector<2x8x8xf32>
    %113 = vector.extract_strided_slice %12 {offsets = [0, 24], sizes = [16, 8], strides = [1, 1]} : vector<16x32xf32> to vector<16x8xf32>
    %114 = vector.shape_cast %113 : vector<16x8xf32> to vector<2x8x8xf32>
    %115 = arith.truncf %110 : vector<2x8x8xf32> to vector<2x8x8xbf16>
    %116 = arith.truncf %112 : vector<2x8x8xf32> to vector<2x8x8xbf16>
    "tpu.trace_start"() <{level = 10 : i32, message = "btq,bsq->bts"}> : () -> ()
    %cst_25 = arith.constant dense<0.000000e+00> : vector<2x8x8xf32>
    %117 = tpu.matmul %115, %116, %cst_25 {dimension_numbers = #tpu.dot_dimension_numbers<[2], [2], [1], [1], [0, 0, 0, 1, 1, 1], [0], [0]>} : vector<2x8x8xbf16>, vector<2x8x8xbf16>, vector<2x8x8xf32> -> vector<2x8x8xf32>
    "tpu.trace_stop"() : () -> ()
    %118 = vector.shape_cast %18 : vector<8x8xf32> to vector<1x8x8xf32>
    %119 = vector.broadcast %118 : vector<1x8x8xf32> to vector<2x8x8xf32>
    %120 = arith.addf %117, %119 : vector<2x8x8xf32>
    %cst_26 = arith.constant dense<0xFF800000> : vector<2x8xf32>
    %121 = vector.multi_reduction <maximumf>, %120, %cst_26 [2] : vector<2x8x8xf32> to vector<2x8xf32>
    %122 = vector.shape_cast %121 : vector<2x8xf32> to vector<2x8x1xf32>
    %123 = vector.broadcast %122 : vector<2x8x1xf32> to vector<2x8x8xf32>
    %124 = arith.subf %120, %123 : vector<2x8x8xf32>
    %125 = math.exp %124 : vector<2x8x8xf32>
    %cst_27 = arith.constant dense<0.000000e+00> : vector<2x8xf32>
    %126 = vector.multi_reduction <add>, %125, %cst_27 [2] : vector<2x8x8xf32> to vector<2x8xf32>
    %127 = vector.shape_cast %126 : vector<2x8xf32> to vector<2x8x1xf32>
    %128 = tpu.reciprocal %127 {approx = true} : vector<2x8x1xf32> -> vector<2x8x1xf32>
    %129 = vector.broadcast %128 : vector<2x8x1xf32> to vector<2x8x8xf32>
    %130 = arith.mulf %125, %129 : vector<2x8x8xf32>
    %131 = arith.truncf %130 : vector<2x8x8xf32> to vector<2x8x8xbf16>
    %132 = arith.truncf %114 : vector<2x8x8xf32> to vector<2x8x8xbf16>
    "tpu.trace_start"() <{level = 10 : i32, message = "bts,bsv->btv"}> : () -> ()
    %cst_28 = arith.constant dense<0.000000e+00> : vector<2x8x8xf32>
    %133 = tpu.matmul %131, %132, %cst_28 {dimension_numbers = #tpu.dot_dimension_numbers<[2], [1], [1], [2], [0, 0, 0, 1, 1, 2], [0], [0]>} : vector<2x8x8xbf16>, vector<2x8x8xbf16>, vector<2x8x8xf32> -> vector<2x8x8xf32>
    "tpu.trace_stop"() : () -> ()
    %134 = vector.shape_cast %133 : vector<2x8x8xf32> to vector<16x8xf32>
    %135 = arith.truncf %134 : vector<16x8xf32> to vector<16x8xbf16>
    %136 = vector.extract_strided_slice %19 {offsets = [24, 0], sizes = [8, 32], strides = [1, 1]} : vector<32x32xbf16> to vector<8x32xbf16>
    %cst_29 = arith.constant dense<0.000000e+00> : vector<16x32xf32>
    %137 = tpu.matmul %135, %136, %cst_29 {dimension_numbers = #tpu.dot_dimension_numbers<[1], [0], [0], [1], [0, 0, 1, 1], [], []>} : vector<16x8xbf16>, vector<8x32xbf16>, vector<16x32xf32> -> vector<16x32xf32>
    %138 = arith.addf %108, %137 : vector<16x32xf32>
    %139 = vector.broadcast %4 : vector<1x32xf32> to vector<16x32xf32>
    %140 = arith.addf %138, %139 : vector<16x32xf32>
    %141 = arith.addf %1, %140 : vector<16x32xf32>
    %142 = vector.extract_strided_slice %2 {offsets = [6, 0], sizes = [1, 32], strides = [1, 1]} : vector<12x128xf32> to vector<1x32xf32>
    %143 = vector.extract_strided_slice %2 {offsets = [7, 0], sizes = [1, 32], strides = [1, 1]} : vector<12x128xf32> to vector<1x32xf32>
    %cst_30 = arith.constant dense<0.000000e+00> : vector<16xf32>
    %144 = vector.multi_reduction <add>, %141, %cst_30 [1] : vector<16x32xf32> to vector<16xf32>
    %145 = vector.shape_cast %144 : vector<16xf32> to vector<16x1xf32>
    %cst_31 = arith.constant 3.200000e+01 : f32
    %146 = vector.broadcast %cst_31 : f32 to vector<16x1xf32>
    %147 = arith.divf %145, %146 : vector<16x1xf32>
    %148 = vector.broadcast %147 : vector<16x1xf32> to vector<16x32xf32>
    %149 = arith.subf %141, %148 : vector<16x32xf32>
    %150 = arith.mulf %149, %149 : vector<16x32xf32>
    %cst_32 = arith.constant dense<0.000000e+00> : vector<16xf32>
    %151 = vector.multi_reduction <add>, %150, %cst_32 [1] : vector<16x32xf32> to vector<16xf32>
    %152 = vector.shape_cast %151 : vector<16xf32> to vector<16x1xf32>
    %cst_33 = arith.constant 3.200000e+01 : f32
    %153 = vector.broadcast %cst_33 : f32 to vector<16x1xf32>
    %154 = arith.divf %152, %153 : vector<16x1xf32>
    %155 = vector.broadcast %147 : vector<16x1xf32> to vector<16x32xf32>
    %156 = arith.subf %141, %155 : vector<16x32xf32>
    %cst_34 = arith.constant 9.99999974E-6 : f32
    %157 = vector.broadcast %cst_34 : f32 to vector<16x1xf32>
    %158 = arith.addf %154, %157 : vector<16x1xf32>
    %159 = math.rsqrt %158 : vector<16x1xf32>
    %160 = vector.broadcast %159 : vector<16x1xf32> to vector<16x32xf32>
    %161 = arith.mulf %156, %160 : vector<16x32xf32>
    %162 = vector.broadcast %142 : vector<1x32xf32> to vector<16x32xf32>
    %163 = arith.mulf %161, %162 : vector<16x32xf32>
    %164 = vector.broadcast %143 : vector<1x32xf32> to vector<16x32xf32>
    %165 = arith.addf %163, %164 : vector<16x32xf32>
    %c0_35 = arith.constant 0 : index
    %c0_36 = arith.constant 0 : index
    %c0_37 = arith.constant 0 : index
    %166 = vector.load %arg2[%c0_35, %c0_36, %c0_37] : memref<2x8x32xf32, #tpu.memory_space<vmem>>, vector<2x8x32xf32>
    %167 = vector.shape_cast %166 : vector<2x8x32xf32> to vector<16x32xf32>
    %168 = vector.extract_strided_slice %2 {offsets = [1, 0], sizes = [1, 96], strides = [1, 1]} : vector<12x128xf32> to vector<1x96xf32>
    %169 = vector.extract_strided_slice %2 {offsets = [3, 0], sizes = [1, 32], strides = [1, 1]} : vector<12x128xf32> to vector<1x32xf32>
    %c0_38 = arith.constant 0 : index
    %c0_39 = arith.constant 0 : index
    %170 = vector.load %arg5[%c0_38, %c0_39] : memref<32x96xbf16, #tpu.memory_space<vmem>>, vector<32x96xbf16>
    %171 = arith.truncf %165 : vector<16x32xf32> to vector<16x32xbf16>
    %172 = vector.extract_strided_slice %170 {offsets = [0, 0], sizes = [32, 32], strides = [1, 1]} : vector<32x96xbf16> to vector<32x32xbf16>
    %cst_40 = arith.constant dense<0.000000e+00> : vector<16x32xf32>
    %173 = tpu.matmul %171, %172, %cst_40 {dimension_numbers = #tpu.dot_dimension_numbers<[1], [0], [0], [1], [0, 0, 1, 1], [], []>} : vector<16x32xbf16>, vector<32x32xbf16>, vector<16x32xf32> -> vector<16x32xf32>
    %174 = vector.extract_strided_slice %168 {offsets = [0, 0], sizes = [1, 32], strides = [1, 1]} : vector<1x96xf32> to vector<1x32xf32>
    %175 = vector.broadcast %174 : vector<1x32xf32> to vector<16x32xf32>
    %176 = arith.addf %173, %175 : vector<16x32xf32>
    %177 = arith.truncf %167 : vector<16x32xf32> to vector<16x32xbf16>
    %178 = vector.extract_strided_slice %170 {offsets = [0, 32], sizes = [32, 64], strides = [1, 1]} : vector<32x96xbf16> to vector<32x64xbf16>
    %cst_41 = arith.constant dense<0.000000e+00> : vector<16x64xf32>
    %179 = tpu.matmul %177, %178, %cst_41 {dimension_numbers = #tpu.dot_dimension_numbers<[1], [0], [0], [1], [0, 0, 1, 1], [], []>} : vector<16x32xbf16>, vector<32x64xbf16>, vector<16x64xf32> -> vector<16x64xf32>
    %180 = vector.extract_strided_slice %168 {offsets = [0, 32], sizes = [1, 64], strides = [1, 1]} : vector<1x96xf32> to vector<1x64xf32>
    %181 = vector.broadcast %180 : vector<1x64xf32> to vector<16x64xf32>
    %182 = arith.addf %179, %181 : vector<16x64xf32>
    %183 = vector.extract_strided_slice %182 {offsets = [0, 0], sizes = [16, 32], strides = [1, 1]} : vector<16x64xf32> to vector<16x32xf32>
    %184 = vector.extract_strided_slice %182 {offsets = [0, 32], sizes = [16, 32], strides = [1, 1]} : vector<16x64xf32> to vector<16x32xf32>
    %185 = tpu.iota {dimensions = array<i32: 0>} : vector<8x8xi32>
    %186 = tpu.iota {dimensions = array<i32: 1>} : vector<8x8xi32>
    %187 = arith.cmpi sgt, %186, %185 : vector<8x8xi32>
    %cst_42 = arith.constant -1.000000e+30 : f32
    %cst_43 = arith.constant 0.000000e+00 : f32
    %188 = vector.broadcast %cst_42 : f32 to vector<8x8xf32>
    %189 = vector.broadcast %cst_43 : f32 to vector<8x8xf32>
    %190 = arith.select %187, %188, %189 : vector<8x8xi1>, vector<8x8xf32>
    %c0_44 = arith.constant 0 : index
    %c0_45 = arith.constant 0 : index
    %191 = vector.load %arg6[%c0_44, %c0_45] : memref<32x32xbf16, #tpu.memory_space<vmem>>, vector<32x32xbf16>
    %192 = vector.extract_strided_slice %176 {offsets = [0, 0], sizes = [16, 8], strides = [1, 1]} : vector<16x32xf32> to vector<16x8xf32>
    %193 = vector.shape_cast %192 : vector<16x8xf32> to vector<2x8x8xf32>
    %194 = vector.extract_strided_slice %183 {offsets = [0, 0], sizes = [16, 8], strides = [1, 1]} : vector<16x32xf32> to vector<16x8xf32>
    %195 = vector.shape_cast %194 : vector<16x8xf32> to vector<2x8x8xf32>
    %196 = vector.extract_strided_slice %184 {offsets = [0, 0], sizes = [16, 8], strides = [1, 1]} : vector<16x32xf32> to vector<16x8xf32>
    %197 = vector.shape_cast %196 : vector<16x8xf32> to vector<2x8x8xf32>
    %198 = arith.truncf %193 : vector<2x8x8xf32> to vector<2x8x8xbf16>
    %199 = arith.truncf %195 : vector<2x8x8xf32> to vector<2x8x8xbf16>
    "tpu.trace_start"() <{level = 10 : i32, message = "btq,bsq->bts"}> : () -> ()
    %cst_46 = arith.constant dense<0.000000e+00> : vector<2x8x8xf32>
    %200 = tpu.matmul %198, %199, %cst_46 {dimension_numbers = #tpu.dot_dimension_numbers<[2], [2], [1], [1], [0, 0, 0, 1, 1, 1], [0], [0]>} : vector<2x8x8xbf16>, vector<2x8x8xbf16>, vector<2x8x8xf32> -> vector<2x8x8xf32>
    "tpu.trace_stop"() : () -> ()
    %201 = vector.shape_cast %190 : vector<8x8xf32> to vector<1x8x8xf32>
    %202 = vector.broadcast %201 : vector<1x8x8xf32> to vector<2x8x8xf32>
    %203 = arith.addf %200, %202 : vector<2x8x8xf32>
    %cst_47 = arith.constant dense<0xFF800000> : vector<2x8xf32>
    %204 = vector.multi_reduction <maximumf>, %203, %cst_47 [2] : vector<2x8x8xf32> to vector<2x8xf32>
    %205 = vector.shape_cast %204 : vector<2x8xf32> to vector<2x8x1xf32>
    %206 = vector.broadcast %205 : vector<2x8x1xf32> to vector<2x8x8xf32>
    %207 = arith.subf %203, %206 : vector<2x8x8xf32>
    %208 = math.exp %207 : vector<2x8x8xf32>
    %cst_48 = arith.constant dense<0.000000e+00> : vector<2x8xf32>
    %209 = vector.multi_reduction <add>, %208, %cst_48 [2] : vector<2x8x8xf32> to vector<2x8xf32>
    %210 = vector.shape_cast %209 : vector<2x8xf32> to vector<2x8x1xf32>
    %211 = tpu.reciprocal %210 {approx = true} : vector<2x8x1xf32> -> vector<2x8x1xf32>
    %212 = vector.broadcast %211 : vector<2x8x1xf32> to vector<2x8x8xf32>
    %213 = arith.mulf %208, %212 : vector<2x8x8xf32>
    %214 = arith.truncf %213 : vector<2x8x8xf32> to vector<2x8x8xbf16>
    %215 = arith.truncf %197 : vector<2x8x8xf32> to vector<2x8x8xbf16>
    "tpu.trace_start"() <{level = 10 : i32, message = "bts,bsv->btv"}> : () -> ()
    %cst_49 = arith.constant dense<0.000000e+00> : vector<2x8x8xf32>
    %216 = tpu.matmul %214, %215, %cst_49 {dimension_numbers = #tpu.dot_dimension_numbers<[2], [1], [1], [2], [0, 0, 0, 1, 1, 2], [0], [0]>} : vector<2x8x8xbf16>, vector<2x8x8xbf16>, vector<2x8x8xf32> -> vector<2x8x8xf32>
    "tpu.trace_stop"() : () -> ()
    %217 = vector.shape_cast %216 : vector<2x8x8xf32> to vector<16x8xf32>
    %218 = arith.truncf %217 : vector<16x8xf32> to vector<16x8xbf16>
    %219 = vector.extract_strided_slice %191 {offsets = [0, 0], sizes = [8, 32], strides = [1, 1]} : vector<32x32xbf16> to vector<8x32xbf16>
    %cst_50 = arith.constant dense<0.000000e+00> : vector<16x32xf32>
    %220 = tpu.matmul %218, %219, %cst_50 {dimension_numbers = #tpu.dot_dimension_numbers<[1], [0], [0], [1], [0, 0, 1, 1], [], []>} : vector<16x8xbf16>, vector<8x32xbf16>, vector<16x32xf32> -> vector<16x32xf32>
    %221 = vector.extract_strided_slice %176 {offsets = [0, 8], sizes = [16, 8], strides = [1, 1]} : vector<16x32xf32> to vector<16x8xf32>
    %222 = vector.shape_cast %221 : vector<16x8xf32> to vector<2x8x8xf32>
    %223 = vector.extract_strided_slice %183 {offsets = [0, 8], sizes = [16, 8], strides = [1, 1]} : vector<16x32xf32> to vector<16x8xf32>
    %224 = vector.shape_cast %223 : vector<16x8xf32> to vector<2x8x8xf32>
    %225 = vector.extract_strided_slice %184 {offsets = [0, 8], sizes = [16, 8], strides = [1, 1]} : vector<16x32xf32> to vector<16x8xf32>
    %226 = vector.shape_cast %225 : vector<16x8xf32> to vector<2x8x8xf32>
    %227 = arith.truncf %222 : vector<2x8x8xf32> to vector<2x8x8xbf16>
    %228 = arith.truncf %224 : vector<2x8x8xf32> to vector<2x8x8xbf16>
    "tpu.trace_start"() <{level = 10 : i32, message = "btq,bsq->bts"}> : () -> ()
    %cst_51 = arith.constant dense<0.000000e+00> : vector<2x8x8xf32>
    %229 = tpu.matmul %227, %228, %cst_51 {dimension_numbers = #tpu.dot_dimension_numbers<[2], [2], [1], [1], [0, 0, 0, 1, 1, 1], [0], [0]>} : vector<2x8x8xbf16>, vector<2x8x8xbf16>, vector<2x8x8xf32> -> vector<2x8x8xf32>
    "tpu.trace_stop"() : () -> ()
    %230 = vector.shape_cast %190 : vector<8x8xf32> to vector<1x8x8xf32>
    %231 = vector.broadcast %230 : vector<1x8x8xf32> to vector<2x8x8xf32>
    %232 = arith.addf %229, %231 : vector<2x8x8xf32>
    %cst_52 = arith.constant dense<0xFF800000> : vector<2x8xf32>
    %233 = vector.multi_reduction <maximumf>, %232, %cst_52 [2] : vector<2x8x8xf32> to vector<2x8xf32>
    %234 = vector.shape_cast %233 : vector<2x8xf32> to vector<2x8x1xf32>
    %235 = vector.broadcast %234 : vector<2x8x1xf32> to vector<2x8x8xf32>
    %236 = arith.subf %232, %235 : vector<2x8x8xf32>
    %237 = math.exp %236 : vector<2x8x8xf32>
    %cst_53 = arith.constant dense<0.000000e+00> : vector<2x8xf32>
    %238 = vector.multi_reduction <add>, %237, %cst_53 [2] : vector<2x8x8xf32> to vector<2x8xf32>
    %239 = vector.shape_cast %238 : vector<2x8xf32> to vector<2x8x1xf32>
    %240 = tpu.reciprocal %239 {approx = true} : vector<2x8x1xf32> -> vector<2x8x1xf32>
    %241 = vector.broadcast %240 : vector<2x8x1xf32> to vector<2x8x8xf32>
    %242 = arith.mulf %237, %241 : vector<2x8x8xf32>
    %243 = arith.truncf %242 : vector<2x8x8xf32> to vector<2x8x8xbf16>
    %244 = arith.truncf %226 : vector<2x8x8xf32> to vector<2x8x8xbf16>
    "tpu.trace_start"() <{level = 10 : i32, message = "bts,bsv->btv"}> : () -> ()
    %cst_54 = arith.constant dense<0.000000e+00> : vector<2x8x8xf32>
    %245 = tpu.matmul %243, %244, %cst_54 {dimension_numbers = #tpu.dot_dimension_numbers<[2], [1], [1], [2], [0, 0, 0, 1, 1, 2], [0], [0]>} : vector<2x8x8xbf16>, vector<2x8x8xbf16>, vector<2x8x8xf32> -> vector<2x8x8xf32>
    "tpu.trace_stop"() : () -> ()
    %246 = vector.shape_cast %245 : vector<2x8x8xf32> to vector<16x8xf32>
    %247 = arith.truncf %246 : vector<16x8xf32> to vector<16x8xbf16>
    %248 = vector.extract_strided_slice %191 {offsets = [8, 0], sizes = [8, 32], strides = [1, 1]} : vector<32x32xbf16> to vector<8x32xbf16>
    %cst_55 = arith.constant dense<0.000000e+00> : vector<16x32xf32>
    %249 = tpu.matmul %247, %248, %cst_55 {dimension_numbers = #tpu.dot_dimension_numbers<[1], [0], [0], [1], [0, 0, 1, 1], [], []>} : vector<16x8xbf16>, vector<8x32xbf16>, vector<16x32xf32> -> vector<16x32xf32>
    %250 = arith.addf %220, %249 : vector<16x32xf32>
    %251 = vector.extract_strided_slice %176 {offsets = [0, 16], sizes = [16, 8], strides = [1, 1]} : vector<16x32xf32> to vector<16x8xf32>
    %252 = vector.shape_cast %251 : vector<16x8xf32> to vector<2x8x8xf32>
    %253 = vector.extract_strided_slice %183 {offsets = [0, 16], sizes = [16, 8], strides = [1, 1]} : vector<16x32xf32> to vector<16x8xf32>
    %254 = vector.shape_cast %253 : vector<16x8xf32> to vector<2x8x8xf32>
    %255 = vector.extract_strided_slice %184 {offsets = [0, 16], sizes = [16, 8], strides = [1, 1]} : vector<16x32xf32> to vector<16x8xf32>
    %256 = vector.shape_cast %255 : vector<16x8xf32> to vector<2x8x8xf32>
    %257 = arith.truncf %252 : vector<2x8x8xf32> to vector<2x8x8xbf16>
    %258 = arith.truncf %254 : vector<2x8x8xf32> to vector<2x8x8xbf16>
    "tpu.trace_start"() <{level = 10 : i32, message = "btq,bsq->bts"}> : () -> ()
    %cst_56 = arith.constant dense<0.000000e+00> : vector<2x8x8xf32>
    %259 = tpu.matmul %257, %258, %cst_56 {dimension_numbers = #tpu.dot_dimension_numbers<[2], [2], [1], [1], [0, 0, 0, 1, 1, 1], [0], [0]>} : vector<2x8x8xbf16>, vector<2x8x8xbf16>, vector<2x8x8xf32> -> vector<2x8x8xf32>
    "tpu.trace_stop"() : () -> ()
    %260 = vector.shape_cast %190 : vector<8x8xf32> to vector<1x8x8xf32>
    %261 = vector.broadcast %260 : vector<1x8x8xf32> to vector<2x8x8xf32>
    %262 = arith.addf %259, %261 : vector<2x8x8xf32>
    %cst_57 = arith.constant dense<0xFF800000> : vector<2x8xf32>
    %263 = vector.multi_reduction <maximumf>, %262, %cst_57 [2] : vector<2x8x8xf32> to vector<2x8xf32>
    %264 = vector.shape_cast %263 : vector<2x8xf32> to vector<2x8x1xf32>
    %265 = vector.broadcast %264 : vector<2x8x1xf32> to vector<2x8x8xf32>
    %266 = arith.subf %262, %265 : vector<2x8x8xf32>
    %267 = math.exp %266 : vector<2x8x8xf32>
    %cst_58 = arith.constant dense<0.000000e+00> : vector<2x8xf32>
    %268 = vector.multi_reduction <add>, %267, %cst_58 [2] : vector<2x8x8xf32> to vector<2x8xf32>
    %269 = vector.shape_cast %268 : vector<2x8xf32> to vector<2x8x1xf32>
    %270 = tpu.reciprocal %269 {approx = true} : vector<2x8x1xf32> -> vector<2x8x1xf32>
    %271 = vector.broadcast %270 : vector<2x8x1xf32> to vector<2x8x8xf32>
    %272 = arith.mulf %267, %271 : vector<2x8x8xf32>
    %273 = arith.truncf %272 : vector<2x8x8xf32> to vector<2x8x8xbf16>
    %274 = arith.truncf %256 : vector<2x8x8xf32> to vector<2x8x8xbf16>
    "tpu.trace_start"() <{level = 10 : i32, message = "bts,bsv->btv"}> : () -> ()
    %cst_59 = arith.constant dense<0.000000e+00> : vector<2x8x8xf32>
    %275 = tpu.matmul %273, %274, %cst_59 {dimension_numbers = #tpu.dot_dimension_numbers<[2], [1], [1], [2], [0, 0, 0, 1, 1, 2], [0], [0]>} : vector<2x8x8xbf16>, vector<2x8x8xbf16>, vector<2x8x8xf32> -> vector<2x8x8xf32>
    "tpu.trace_stop"() : () -> ()
    %276 = vector.shape_cast %275 : vector<2x8x8xf32> to vector<16x8xf32>
    %277 = arith.truncf %276 : vector<16x8xf32> to vector<16x8xbf16>
    %278 = vector.extract_strided_slice %191 {offsets = [16, 0], sizes = [8, 32], strides = [1, 1]} : vector<32x32xbf16> to vector<8x32xbf16>
    %cst_60 = arith.constant dense<0.000000e+00> : vector<16x32xf32>
    %279 = tpu.matmul %277, %278, %cst_60 {dimension_numbers = #tpu.dot_dimension_numbers<[1], [0], [0], [1], [0, 0, 1, 1], [], []>} : vector<16x8xbf16>, vector<8x32xbf16>, vector<16x32xf32> -> vector<16x32xf32>
    %280 = arith.addf %250, %279 : vector<16x32xf32>
    %281 = vector.extract_strided_slice %176 {offsets = [0, 24], sizes = [16, 8], strides = [1, 1]} : vector<16x32xf32> to vector<16x8xf32>
    %282 = vector.shape_cast %281 : vector<16x8xf32> to vector<2x8x8xf32>
    %283 = vector.extract_strided_slice %183 {offsets = [0, 24], sizes = [16, 8], strides = [1, 1]} : vector<16x32xf32> to vector<16x8xf32>
    %284 = vector.shape_cast %283 : vector<16x8xf32> to vector<2x8x8xf32>
    %285 = vector.extract_strided_slice %184 {offsets = [0, 24], sizes = [16, 8], strides = [1, 1]} : vector<16x32xf32> to vector<16x8xf32>
    %286 = vector.shape_cast %285 : vector<16x8xf32> to vector<2x8x8xf32>
    %287 = arith.truncf %282 : vector<2x8x8xf32> to vector<2x8x8xbf16>
    %288 = arith.truncf %284 : vector<2x8x8xf32> to vector<2x8x8xbf16>
    "tpu.trace_start"() <{level = 10 : i32, message = "btq,bsq->bts"}> : () -> ()
    %cst_61 = arith.constant dense<0.000000e+00> : vector<2x8x8xf32>
    %289 = tpu.matmul %287, %288, %cst_61 {dimension_numbers = #tpu.dot_dimension_numbers<[2], [2], [1], [1], [0, 0, 0, 1, 1, 1], [0], [0]>} : vector<2x8x8xbf16>, vector<2x8x8xbf16>, vector<2x8x8xf32> -> vector<2x8x8xf32>
    "tpu.trace_stop"() : () -> ()
    %290 = vector.shape_cast %190 : vector<8x8xf32> to vector<1x8x8xf32>
    %291 = vector.broadcast %290 : vector<1x8x8xf32> to vector<2x8x8xf32>
    %292 = arith.addf %289, %291 : vector<2x8x8xf32>
    %cst_62 = arith.constant dense<0xFF800000> : vector<2x8xf32>
    %293 = vector.multi_reduction <maximumf>, %292, %cst_62 [2] : vector<2x8x8xf32> to vector<2x8xf32>
    %294 = vector.shape_cast %293 : vector<2x8xf32> to vector<2x8x1xf32>
    %295 = vector.broadcast %294 : vector<2x8x1xf32> to vector<2x8x8xf32>
    %296 = arith.subf %292, %295 : vector<2x8x8xf32>
    %297 = math.exp %296 : vector<2x8x8xf32>
    %cst_63 = arith.constant dense<0.000000e+00> : vector<2x8xf32>
    %298 = vector.multi_reduction <add>, %297, %cst_63 [2] : vector<2x8x8xf32> to vector<2x8xf32>
    %299 = vector.shape_cast %298 : vector<2x8xf32> to vector<2x8x1xf32>
    %300 = tpu.reciprocal %299 {approx = true} : vector<2x8x1xf32> -> vector<2x8x1xf32>
    %301 = vector.broadcast %300 : vector<2x8x1xf32> to vector<2x8x8xf32>
    %302 = arith.mulf %297, %301 : vector<2x8x8xf32>
    %303 = arith.truncf %302 : vector<2x8x8xf32> to vector<2x8x8xbf16>
    %304 = arith.truncf %286 : vector<2x8x8xf32> to vector<2x8x8xbf16>
    "tpu.trace_start"() <{level = 10 : i32, message = "bts,bsv->btv"}> : () -> ()
    %cst_64 = arith.constant dense<0.000000e+00> : vector<2x8x8xf32>
    %305 = tpu.matmul %303, %304, %cst_64 {dimension_numbers = #tpu.dot_dimension_numbers<[2], [1], [1], [2], [0, 0, 0, 1, 1, 2], [0], [0]>} : vector<2x8x8xbf16>, vector<2x8x8xbf16>, vector<2x8x8xf32> -> vector<2x8x8xf32>
    "tpu.trace_stop"() : () -> ()
    %306 = vector.shape_cast %305 : vector<2x8x8xf32> to vector<16x8xf32>
    %307 = arith.truncf %306 : vector<16x8xf32> to vector<16x8xbf16>
    %308 = vector.extract_strided_slice %191 {offsets = [24, 0], sizes = [8, 32], strides = [1, 1]} : vector<32x32xbf16> to vector<8x32xbf16>
    %cst_65 = arith.constant dense<0.000000e+00> : vector<16x32xf32>
    %309 = tpu.matmul %307, %308, %cst_65 {dimension_numbers = #tpu.dot_dimension_numbers<[1], [0], [0], [1], [0, 0, 1, 1], [], []>} : vector<16x8xbf16>, vector<8x32xbf16>, vector<16x32xf32> -> vector<16x32xf32>
    %310 = arith.addf %280, %309 : vector<16x32xf32>
    %311 = vector.broadcast %169 : vector<1x32xf32> to vector<16x32xf32>
    %312 = arith.addf %310, %311 : vector<16x32xf32>
    %313 = arith.addf %165, %312 : vector<16x32xf32>
    %314 = vector.extract_strided_slice %2 {offsets = [8, 0], sizes = [1, 32], strides = [1, 1]} : vector<12x128xf32> to vector<1x32xf32>
    %315 = vector.extract_strided_slice %2 {offsets = [9, 0], sizes = [1, 32], strides = [1, 1]} : vector<12x128xf32> to vector<1x32xf32>
    %cst_66 = arith.constant dense<0.000000e+00> : vector<16xf32>
    %316 = vector.multi_reduction <add>, %313, %cst_66 [1] : vector<16x32xf32> to vector<16xf32>
    %317 = vector.shape_cast %316 : vector<16xf32> to vector<16x1xf32>
    %cst_67 = arith.constant 3.200000e+01 : f32
    %318 = vector.broadcast %cst_67 : f32 to vector<16x1xf32>
    %319 = arith.divf %317, %318 : vector<16x1xf32>
    %320 = vector.broadcast %319 : vector<16x1xf32> to vector<16x32xf32>
    %321 = arith.subf %313, %320 : vector<16x32xf32>
    %322 = arith.mulf %321, %321 : vector<16x32xf32>
    %cst_68 = arith.constant dense<0.000000e+00> : vector<16xf32>
    %323 = vector.multi_reduction <add>, %322, %cst_68 [1] : vector<16x32xf32> to vector<16xf32>
    %324 = vector.shape_cast %323 : vector<16xf32> to vector<16x1xf32>
    %cst_69 = arith.constant 3.200000e+01 : f32
    %325 = vector.broadcast %cst_69 : f32 to vector<16x1xf32>
    %326 = arith.divf %324, %325 : vector<16x1xf32>
    %327 = vector.broadcast %319 : vector<16x1xf32> to vector<16x32xf32>
    %328 = arith.subf %313, %327 : vector<16x32xf32>
    %cst_70 = arith.constant 9.99999974E-6 : f32
    %329 = vector.broadcast %cst_70 : f32 to vector<16x1xf32>
    %330 = arith.addf %326, %329 : vector<16x1xf32>
    %331 = math.rsqrt %330 : vector<16x1xf32>
    %332 = vector.broadcast %331 : vector<16x1xf32> to vector<16x32xf32>
    %333 = arith.mulf %328, %332 : vector<16x32xf32>
    %334 = vector.broadcast %314 : vector<1x32xf32> to vector<16x32xf32>
    %335 = arith.mulf %333, %334 : vector<16x32xf32>
    %336 = vector.broadcast %315 : vector<1x32xf32> to vector<16x32xf32>
    %337 = arith.addf %335, %336 : vector<16x32xf32>
    %338 = arith.truncf %337 : vector<16x32xf32> to vector<16x32xbf16>
    %c0_71 = arith.constant 0 : index
    %c0_72 = arith.constant 0 : index
    %339 = vector.load %arg7[%c0_71, %c0_72] : memref<32x128xbf16, #tpu.memory_space<vmem>>, vector<32x128xbf16>
    %cst_73 = arith.constant dense<0.000000e+00> : vector<16x128xf32>
    %340 = tpu.matmul %338, %339, %cst_73 {dimension_numbers = #tpu.dot_dimension_numbers<[1], [0], [0], [1], [0, 0, 1, 1], [], []>} : vector<16x32xbf16>, vector<32x128xbf16>, vector<16x128xf32> -> vector<16x128xf32>
    %341 = vector.extract_strided_slice %2 {offsets = [4, 0], sizes = [1, 128], strides = [1, 1]} : vector<12x128xf32> to vector<1x128xf32>
    %342 = vector.broadcast %341 : vector<1x128xf32> to vector<16x128xf32>
    %343 = arith.addf %340, %342 : vector<16x128xf32>
    %cst_74 = arith.constant 0.000000e+00 : f32
    %344 = vector.broadcast %cst_74 : f32 to vector<16x128xf32>
    %345 = arith.maximumf %343, %344 : vector<16x128xf32>
    %346 = arith.truncf %345 : vector<16x128xf32> to vector<16x128xbf16>
    %c0_75 = arith.constant 0 : index
    %c0_76 = arith.constant 0 : index
    %347 = vector.load %arg8[%c0_75, %c0_76] : memref<128x32xbf16, #tpu.memory_space<vmem>>, vector<128x32xbf16>
    %cst_77 = arith.constant dense<0.000000e+00> : vector<16x32xf32>
    %348 = tpu.matmul %346, %347, %cst_77 {dimension_numbers = #tpu.dot_dimension_numbers<[1], [0], [0], [1], [0, 0, 1, 1], [], []>} : vector<16x128xbf16>, vector<128x32xbf16>, vector<16x32xf32> -> vector<16x32xf32>
    %349 = vector.extract_strided_slice %2 {offsets = [5, 0], sizes = [1, 32], strides = [1, 1]} : vector<12x128xf32> to vector<1x32xf32>
    %350 = vector.broadcast %349 : vector<1x32xf32> to vector<16x32xf32>
    %351 = arith.addf %348, %350 : vector<16x32xf32>
    %352 = arith.addf %337, %351 : vector<16x32xf32>
    %353 = vector.extract_strided_slice %2 {offsets = [10, 0], sizes = [1, 32], strides = [1, 1]} : vector<12x128xf32> to vector<1x32xf32>
    %354 = vector.extract_strided_slice %2 {offsets = [11, 0], sizes = [1, 32], strides = [1, 1]} : vector<12x128xf32> to vector<1x32xf32>
    %cst_78 = arith.constant dense<0.000000e+00> : vector<16xf32>
    %355 = vector.multi_reduction <add>, %352, %cst_78 [1] : vector<16x32xf32> to vector<16xf32>
    %356 = vector.shape_cast %355 : vector<16xf32> to vector<16x1xf32>
    %cst_79 = arith.constant 3.200000e+01 : f32
    %357 = vector.broadcast %cst_79 : f32 to vector<16x1xf32>
    %358 = arith.divf %356, %357 : vector<16x1xf32>
    %359 = vector.broadcast %358 : vector<16x1xf32> to vector<16x32xf32>
    %360 = arith.subf %352, %359 : vector<16x32xf32>
    %361 = arith.mulf %360, %360 : vector<16x32xf32>
    %cst_80 = arith.constant dense<0.000000e+00> : vector<16xf32>
    %362 = vector.multi_reduction <add>, %361, %cst_80 [1] : vector<16x32xf32> to vector<16xf32>
    %363 = vector.shape_cast %362 : vector<16xf32> to vector<16x1xf32>
    %cst_81 = arith.constant 3.200000e+01 : f32
    %364 = vector.broadcast %cst_81 : f32 to vector<16x1xf32>
    %365 = arith.divf %363, %364 : vector<16x1xf32>
    %366 = vector.broadcast %358 : vector<16x1xf32> to vector<16x32xf32>
    %367 = arith.subf %352, %366 : vector<16x32xf32>
    %cst_82 = arith.constant 9.99999974E-6 : f32
    %368 = vector.broadcast %cst_82 : f32 to vector<16x1xf32>
    %369 = arith.addf %365, %368 : vector<16x1xf32>
    %370 = math.rsqrt %369 : vector<16x1xf32>
    %371 = vector.broadcast %370 : vector<16x1xf32> to vector<16x32xf32>
    %372 = arith.mulf %367, %371 : vector<16x32xf32>
    %373 = vector.broadcast %353 : vector<1x32xf32> to vector<16x32xf32>
    %374 = arith.mulf %372, %373 : vector<16x32xf32>
    %375 = vector.broadcast %354 : vector<1x32xf32> to vector<16x32xf32>
    %376 = arith.addf %374, %375 : vector<16x32xf32>
    %377 = vector.shape_cast %376 : vector<16x32xf32> to vector<2x8x32xf32>
    %c0_83 = arith.constant 0 : index
    %c0_84 = arith.constant 0 : index
    %c0_85 = arith.constant 0 : index
    %378 = vector.load %arg10[%c0_83, %c0_84, %c0_85] : memref<2x8x32xf32, #tpu.memory_space<vmem>>, vector<2x8x32xf32>
    tpu.vector_store %arg10[%c0_83, %c0_84, %c0_85], %377 {strides = array<i32>} : memref<2x8x32xf32, #tpu.memory_space<vmem>>, vector<2x8x32xf32>,
    return
  }
  func.func @transform_0(%arg0: i32) -> (i32, i32, i32) {
    %c0_i32 = arith.constant 0 : i32
    %c0_i32_0 = arith.constant 0 : i32
    %c0_i32_1 = arith.constant 0 : i32
    %c0_i32_2 = arith.constant 0 : i32
    return %c0_i32, %c0_i32_0, %c0_i32_1 : i32, i32, i32
  }
  func.func @transform_1(%arg0: i32) -> (i32, i32, i32) {
    %c0_i32 = arith.constant 0 : i32
    %c0_i32_0 = arith.constant 0 : i32
    %c0_i32_1 = arith.constant 0 : i32
    %c0_i32_2 = arith.constant 0 : i32
    return %c0_i32, %c0_i32_0, %c0_i32_1 : i32, i32, i32
  }
  func.func @transform_2(%arg0: i32) -> (i32, i32) {
    %c0_i32 = arith.constant 0 : i32
    %c0_i32_0 = arith.constant 0 : i32
    %c0_i32_1 = arith.constant 0 : i32
    return %c0_i32, %c0_i32_0 : i32, i32
  }
  func.func @transform_3(%arg0: i32) -> (i32, i32) {
    %c0_i32 = arith.constant 0 : i32
    %c0_i32_0 = arith.constant 0 : i32
    %c0_i32_1 = arith.constant 0 : i32
    return %c0_i32, %c0_i32_0 : i32, i32
  }
  func.func @transform_4(%arg0: i32) -> (i32, i32) {
    %c0_i32 = arith.constant 0 : i32
    %c0_i32_0 = arith.constant 0 : i32
    %c0_i32_1 = arith.constant 0 : i32
    return %c0_i32, %c0_i32_0 : i32, i32
  }
  func.func @transform_5(%arg0: i32) -> (i32, i32) {
    %c0_i32 = arith.constant 0 : i32
    %c0_i32_0 = arith.constant 0 : i32
    %c0_i32_1 = arith.constant 0 : i32
    return %c0_i32, %c0_i32_0 : i32, i32
  }
  func.func @transform_6(%arg0: i32) -> (i32, i32) {
    %c0_i32 = arith.constant 0 : i32
    %c0_i32_0 = arith.constant 0 : i32
    %c0_i32_1 = arith.constant 0 : i32
    return %c0_i32, %c0_i32_0 : i32, i32
  }
  func.func @transform_7(%arg0: i32) -> (i32, i32) {
    %c0_i32 = arith.constant 0 : i32
    %c0_i32_0 = arith.constant 0 : i32
    %c0_i32_1 = arith.constant 0 : i32
    return %c0_i32, %c0_i32_0 : i32, i32
  }
  func.func @transform_8(%arg0: i32) -> (i32, i32) {
    %c0_i32 = arith.constant 0 : i32
    %c0_i32_0 = arith.constant 0 : i32
    %c0_i32_1 = arith.constant 0 : i32
    return %c0_i32, %c0_i32_0 : i32, i32
  }
  func.func @transform_9(%arg0: i32) -> (i32, i32, i32) {
    %c0_i32 = arith.constant 0 : i32
    %c0_i32_0 = arith.constant 0 : i32
    %c0_i32_1 = arith.constant 0 : i32
    %c0_i32_2 = arith.constant 0 : i32
    return %c0_i32, %c0_i32_0, %c0_i32_1 : i32, i32, i32
  }
}

</mosaic_0001>

<llo_original>
// kernel: tpu_custom_call.1
$region0: #{tpu_custom_call.1}
  #allocation0 [shape = 'u32[]', space=smem, size = 0x4, offset = 0x4, fixed_abs, tag = 'smem constant byte address 0x4 - core index']
  #allocation1 [shape = 'u32[144,128]{1,0:T(1,128)}', space=vmem, size = 0x12000, scoped, tag = 'internal scratch']
  %s0 = inlined_call_operand.vmem [shape: f32[2,8,32], index: 0, kind: input, shape index: {}]
  %s1 = inlined_call_operand.vmem [shape: f32[2,8,32], index: 1, kind: input, shape index: {}]
  %s2 = inlined_call_operand.vmem [shape: bf16[32,96], index: 2, kind: input, shape index: {}]
  %s3 = inlined_call_operand.vmem [shape: bf16[32,32], index: 3, kind: input, shape index: {}]
  %s4 = inlined_call_operand.vmem [shape: bf16[32,96], index: 4, kind: input, shape index: {}]
  %s5 = inlined_call_operand.hbm [shape: bf16[32,32], index: 5, kind: input, shape index: {}]
  %s6 = inlined_call_operand.hbm [shape: bf16[32,128], index: 6, kind: input, shape index: {}]
  %s7 = inlined_call_operand.vmem [shape: bf16[128,32], index: 7, kind: input, shape index: {}]
  %s8 = inlined_call_operand.hbm [shape: f32[12,128], index: 8, kind: input, shape index: {}]
  %s9 = inlined_call_operand.hbm [shape: f32[2,8,32], index: 9, kind: output, shape index: {}]
  %s10 = sld [smem:[#allocation0]]
  $region58: #{tpu_custom_call.1} parent=0
    _
  %s12 = ssub.s32 1, %s10
  %s13 = scalar_select 0, %s12, %s10
  $region1: #{tpu_custom_call.1} parent=0
    #allocation2 [shape = 'u8[8192]{0}', space=vmem, size = 0x2000, scoped, tag = 'input window, operand 5, single buffered']
    #allocation3 [shape = 's32[1]{0}', space=sflag, size = 0x4, scoped, tag = 'scoped memory for tpu_custom_call.1']
    #allocation4 [shape = 's32[1]{0}', space=sflag, size = 0x4, scoped, tag = 'scoped memory for tpu_custom_call.1']
    #allocation5 [shape = 'u8[8192]{0}', space=vmem, size = 0x2000, scoped, tag = 'input window, operand 6, single buffered']
    #allocation6 [shape = 's32[1]{0}', space=sflag, size = 0x4, scoped, tag = 'scoped memory for tpu_custom_call.1']
    #allocation7 [shape = 'u8[8192]{0}', space=vmem, size = 0x2000, scoped, tag = 'input window, operand 8, single buffered']
    #allocation8 [shape = 'u8[8192]{0}', space=vmem, size = 0x2000, scoped, tag = 'output window, operand 0, single buffered']
    %14 = vsyncpa [#allocation3], 0
    %15 = vsyncpa [#allocation6], 0
    %16 = vsyncpa [#allocation4], 0
    // Predicated region
    $region2: #{tpu_custom_call.1} parent=1 // pred_check
      _
    $region3: #{tpu_custom_call.1} parent=1 // pred_check_branch
      %18 = sbr.rel (0) target = $region5
    $region4: #{tpu_custom_call.1} parent=1 // pred_region
      _
    $region5: #{tpu_custom_call.1} parent=1 // pred_fallthru
      _
    // Predicated region
    $region6: #{tpu_custom_call.1} parent=1 // pred_check
      _
    $region7: #{tpu_custom_call.1} parent=1 // pred_check_branch
      %20 = sbr.rel (0) target = $region9
    $region8: #{tpu_custom_call.1} parent=1 // pred_region
      _
    $region9: #{tpu_custom_call.1} parent=1 // pred_fallthru
      _
    // Predicated region
    $region10: #{tpu_custom_call.1} parent=1 // pred_check
      _
    $region11: #{tpu_custom_call.1} parent=1 // pred_check_branch
      %22 = sbr.rel (0) target = $region13
    $region12: #{tpu_custom_call.1} parent=1 // pred_region
      _
    $region13: #{tpu_custom_call.1} parent=1 // pred_fallthru
      _
    // Predicated region
    $region14: #{tpu_custom_call.1} parent=1 // pred_check
      _
    $region15: #{tpu_custom_call.1} parent=1 // pred_check_branch
      %24 = sbr.rel (0) target = $region17
    $region16: #{tpu_custom_call.1} parent=1 // pred_region
      _
    $region17: #{tpu_custom_call.1} parent=1 // pred_fallthru
      _
    // Predicated region
    $region18: #{tpu_custom_call.1} parent=1 // pred_check
      _
    $region19: #{tpu_custom_call.1} parent=1 // pred_check_branch
      %26 = sbr.rel (0) target = $region21
    $region20: #{tpu_custom_call.1} parent=1 // pred_region
      _
    $region21: #{tpu_custom_call.1} parent=1 // pred_fallthru
      _
    // Predicated region
    $region22: #{tpu_custom_call.1} parent=1 // pred_check
      _
    $region23: #{tpu_custom_call.1} parent=1 // pred_check_branch
      %28 = sbr.rel (0) target = $region25
    $region24: #{tpu_custom_call.1} parent=1 // pred_region
      %s30 = ssub.s32 256, 256
      %31 = vsyncadd [#allocation3], %s30
      %s32 = sshll.u32 [#allocation2], 4
      %s33 = int_to_ptr.vmem [resolvable:$true] %s32
      %38 = dma.hbm_to_vmem [thread:$0]  %s5, 256, %s33, [#allocation3], 64, 64, 4
    $region25: #{tpu_custom_call.1} parent=1 // pred_fallthru
      _
    // Predicated region
    $region26: #{tpu_custom_call.1} parent=1 // pred_check
      _
    $region27: #{tpu_custom_call.1} parent=1 // pred_check_branch
      %40 = sbr.rel (0) target = $region29
    $region28: #{tpu_custom_call.1} parent=1 // pred_region
      %s42 = ssub.s32 256, 256
      %43 = vsyncadd [#allocation6], %s42
      %s44 = sshll.u32 [#allocation5], 4
      %s45 = int_to_ptr.vmem [resolvable:$true] %s44
      %50 = dma.hbm_to_vmem [thread:$0]  %s6, 256, %s45, [#allocation6], 64, 64, 4
    $region29: #{tpu_custom_call.1} parent=1 // pred_fallthru
      _
    // Predicated region
    $region30: #{tpu_custom_call.1} parent=1 // pred_check
      _
    $region31: #{tpu_custom_call.1} parent=1 // pred_check_branch
      %52 = sbr.rel (0) target = $region33
    $region32: #{tpu_custom_call.1} parent=1 // pred_region
      _
    $region33: #{tpu_custom_call.1} parent=1 // pred_fallthru
      _
    // Predicated region
    $region34: #{tpu_custom_call.1} parent=1 // pred_check
      _
    $region35: #{tpu_custom_call.1} parent=1 // pred_check_branch
      %54 = sbr.rel (0) target = $region37
    $region36: #{tpu_custom_call.1} parent=1 // pred_region
      %s56 = ssub.s32 256, 256
      %57 = vsyncadd [#allocation6], %s56
      %s58 = sshll.u32 [#allocation7], 4
      %s59 = int_to_ptr.vmem [resolvable:$true] %s58
      %64 = dma.hbm_to_vmem [thread:$0]  %s8, 256, %s59, [#allocation6], 128, 128, 8
    $region37: #{tpu_custom_call.1} parent=1 // pred_fallthru
      _
    // Predicated region
    $region38: #{tpu_custom_call.1} parent=1 // pred_check
      _
    $region39: #{tpu_custom_call.1} parent=1 // pred_check_branch
      %66 = sbr.rel (0) target = $region41
    $region40: #{tpu_custom_call.1} parent=1 // pred_region
      %67 = dma.done [#allocation3], 256
    $region41: #{tpu_custom_call.1} parent=1 // pred_fallthru
      _
    // Predicated region
    $region42: #{tpu_custom_call.1} parent=1 // pred_check
      _
    $region43: #{tpu_custom_call.1} parent=1 // pred_check_branch
      %69 = sbr.rel (0) target = $region45
    $region44: #{tpu_custom_call.1} parent=1 // pred_region
      %70 = dma.done [#allocation6], 256
    $region45: #{tpu_custom_call.1} parent=1 // pred_fallthru
      _
    // Predicated region
    $region46: #{tpu_custom_call.1} parent=1 // pred_check
      _
    $region47: #{tpu_custom_call.1} parent=1 // pred_check_branch
      %72 = sbr.rel (0) target = $region49
    $region48: #{tpu_custom_call.1} parent=1 // pred_region
      %73 = dma.done [#allocation6], 256
    $region49: #{tpu_custom_call.1} parent=1 // pred_fallthru
      _
    %v75 = vld [vmem:[%s0] sm:$0xff]
    %v76 = vld [vmem:[%s0 + $0x8] sm:$0xff]
    %v77 = vld [vmem:[#allocation7] sm:$0xff]
    %v78 = vld [vmem:[#allocation7 + $0x8] sm:$0xf]
    %v79 = vld [vmem:[%s2] sm:$0xf]
    %v80 = vld [vmem:[%s2 + $0x4] sm:$0xf]
    %v81 = vld [vmem:[%s2 + $0x8] sm:$0xf]
    %v82 = vld [vmem:[%s2 + $0xc] sm:$0xf]
    %v83 = vpack.c.bf16 %v76, %v75
    %v84 = vlaneseq
    %v85 = vshrl.u32 %v84, 7
    %v86 = vsub.s32 0, %v85
    %v87 = vrot.slane %v77, %v86
    %v92 = vunpack.c.l.b16 %v79
    %v93 = vunpack.c.l.b16 %v80
    %v94 = vunpack.c.l.b16 %v81
    %v95 = vunpack.c.l.b16 %v82
    %v96 = vpack.c.b16 %v93, %v92
    %v97 = vpack.c.b16 %v95, %v94
    %vm100 = vcmask 261120
    %v102 = vsel %vm100, %v83, 0
    %104 = vmatprep.subr.bf16.mxu0 0
    %105 = vmatpush1.bf16.msra.mxu0 0
    %106 = vmatprep.subr.bf16.mxu0 0
    %107 = vmatpush1.bf16.msra.mxu0 0
    %108 = vmatprep.subr.bf16.mxu0 0
    %109 = vmatpush1.bf16.msra.mxu0 0
    %110 = vmatprep.subr.bf16.mxu0 0
    %111 = vmatpush1.bf16.msra.mxu0 0
    %112 = vmatprep.subr.bf16.mxu0 0
    %113 = vmatpush1.bf16.msra.mxu0 0
    %114 = vmatprep.subr.bf16.mxu0 0
    %115 = vmatpush1.bf16.msra.mxu0 0
    %116 = vmatprep.subr.bf16.mxu0 0
    %117 = vmatpush1.bf16.msra.mxu0 %v97
    %118 = vmatprep.subr.bf16.mxu0 0
    %119 = vmatpush1.bf16.msra.mxu0 %v96
    %120 = vmatprep.subr.bf16.mxu0 0
    %121 = vmatpush2.bf16.msra.mxu0 0
    %122 = vmatprep.subr.bf16.mxu0 0
    %123 = vmatpush2.bf16.msra.mxu0 0
    %124 = vmatprep.subr.bf16.mxu0 0
    %125 = vmatpush2.bf16.msra.mxu0 0
    %126 = vmatprep.subr.bf16.mxu0 0
    %127 = vmatpush2.bf16.msra.mxu0 0
    %128 = vmatprep.subr.bf16.mxu0 0
    %129 = vmatpush2.bf16.msra.mxu0 0
    %130 = vmatprep.subr.bf16.mxu0 0
    %131 = vmatpush2.bf16.msra.mxu0 0
    %132 = vmatprep.subr.bf16.mxu0 0
    %133 = vmatpush2.bf16.msra.mxu0 0
    %134 = vmatprep.subr.bf16.mxu0 0
    %135 = vmatpush2.bf16.msra.mxu0 0
    %136 = vmatprep.mubr.bf16.mxu0 0
    %137 = vmatmul.mubr.bf16.gmra.mxu0 %v102
    %v138 = vpop.f32.mrf.mxu0
    %v139 = vadd.f32 %v87, %v138
    %v140 = vpop.f32.mrf.mxu0
    %v141 = vpop.f32.mrf.mxu0
    %v142 = vadd.f32 %v87, %v141
    %v143 = vpop.f32.mrf.mxu0
    %144 = vdwg.mxu0
    %v145 = vlaneseq
    %v146 = vshrl.u32 %v145, 7
    %v147 = vlaneseq
    %v148 = vand.u32 %v147, 127
    %vm149 = vcmp.gt.s32.totalorder %v148, %v146
    %v150 = vsel %vm149, -1e+30, 0.0
    %v151 = vld [vmem:[%s3] sm:$0xf]
    %v152 = vld [vmem:[%s3 + $0x4] sm:$0xf]
    %v153 = vld [vmem:[%s3 + $0x8] sm:$0xf]
    %v154 = vld [vmem:[%s3 + $0xc] sm:$0xf]
    %v155 = vpack.c.bf16 %v139, %v139
    %v156 = vpack.c.bf16 %v142, %v142
    %158 = vrot.lane.b32.xlu0 %v155, 96
    %v159 = vpop.permute.xlu0 %158
    %vm160 = vcmask 64512
    %v162 = vsel %vm160, %v155, 0
    %v165 = vsel %vm160, %v159, 0
    %167 = vmatprep.subr.bf16.mxu0 0
    %168 = vmatpush1.bf16.xpose.msra.mxu0 0
    %169 = vmatprep.subr.bf16.mxu0 0
    %170 = vmatpush1.bf16.xpose.msra.mxu0 0
    %171 = vmatprep.subr.bf16.mxu0 0
    %172 = vmatpush1.bf16.xpose.msra.mxu0 0
    %173 = vmatprep.subr.bf16.mxu0 0
    %174 = vmatpush1.bf16.xpose.msra.mxu0 0
    %175 = vmatprep.subr.bf16.mxu0 0
    %176 = vmatpush1.bf16.xpose.msra.mxu0 0
    %177 = vmatprep.subr.bf16.mxu0 0
    %178 = vmatpush1.bf16.xpose.msra.mxu0 0
    %179 = vmatprep.subr.bf16.mxu0 0
    %180 = vmatpush1.bf16.xpose.msra.mxu0 0
    %181 = vmatprep.subr.bf16.mxu0 0
    %182 = vmatpush1.bf16.xpose.msra.mxu0 %v165
    %183 = vmatprep.subr.bf16.mxu0 0
    %184 = vmatpush2.bf16.xpose.msra.mxu0 0
    %185 = vmatprep.subr.bf16.mxu0 0
    %186 = vmatpush2.bf16.xpose.msra.mxu0 0
    %187 = vmatprep.subr.bf16.mxu0 0
    %188 = vmatpush2.bf16.xpose.msra.mxu0 0
    %189 = vmatprep.subr.bf16.mxu0 0
    %190 = vmatpush2.bf16.xpose.msra.mxu0 0
    %191 = vmatprep.subr.bf16.mxu0 0
    %192 = vmatpush2.bf16.xpose.msra.mxu0 0
    %193 = vmatprep.subr.bf16.mxu0 0
    %194 = vmatpush2.bf16.xpose.msra.mxu0 0
    %195 = vmatprep.subr.bf16.mxu0 0
    %196 = vmatpush2.bf16.xpose.msra.mxu0 0
    %197 = vmatprep.subr.bf16.mxu0 0
    %198 = vmatpush2.bf16.xpose.msra.mxu0 0
    %199 = vmatprep.mubr.bf16.mxu0 0
    %200 = vmatmul.mubr.bf16.gmra.mxu0 %v162
    %v201 = vpop.f32.mrf.mxu0
    %v202 = vadd.f32 %v150, %v201
    %v203 = vpop.f32.mrf.mxu0
    %v204 = vpop.f32.mrf.mxu0
    %v205 = vpop.f32.mrf.mxu0
    %206 = vdwg.mxu0
    %208 = vrot.lane.b32.xlu0 %v156, 96
    %v209 = vpop.permute.xlu0 %208
    %v211 = vsel %vm160, %v156, 0
    %v214 = vsel %vm160, %v209, 0
    %216 = vmatprep.subr.bf16.mxu0 0
    %217 = vmatpush1.bf16.xpose.msra.mxu0 0
    %218 = vmatprep.subr.bf16.mxu0 0
    %219 = vmatpush1.bf16.xpose.msra.mxu0 0
    %220 = vmatprep.subr.bf16.mxu0 0
    %221 = vmatpush1.bf16.xpose.msra.mxu0 0
    %222 = vmatprep.subr.bf16.mxu0 0
    %223 = vmatpush1.bf16.xpose.msra.mxu0 0
    %224 = vmatprep.subr.bf16.mxu0 0
    %225 = vmatpush1.bf16.xpose.msra.mxu0 0
    %226 = vmatprep.subr.bf16.mxu0 0
    %227 = vmatpush1.bf16.xpose.msra.mxu0 0
    %228 = vmatprep.subr.bf16.mxu0 0
    %229 = vmatpush1.bf16.xpose.msra.mxu0 0
    %230 = vmatprep.subr.bf16.mxu0 0
    %231 = vmatpush1.bf16.xpose.msra.mxu0 %v214
    %232 = vmatprep.subr.bf16.mxu0 0
    %233 = vmatpush2.bf16.xpose.msra.mxu0 0
    %234 = vmatprep.subr.bf16.mxu0 0
    %235 = vmatpush2.bf16.xpose.msra.mxu0 0
    %236 = vmatprep.subr.bf16.mxu0 0
    %237 = vmatpush2.bf16.xpose.msra.mxu0 0
    %238 = vmatprep.subr.bf16.mxu0 0
    %239 = vmatpush2.bf16.xpose.msra.mxu0 0
    %240 = vmatprep.subr.bf16.mxu0 0
    %241 = vmatpush2.bf16.xpose.msra.mxu0 0
    %242 = vmatprep.subr.bf16.mxu0 0
    %243 = vmatpush2.bf16.xpose.msra.mxu0 0
    %244 = vmatprep.subr.bf16.mxu0 0
    %245 = vmatpush2.bf16.xpose.msra.mxu0 0
    %246 = vmatprep.subr.bf16.mxu0 0
    %247 = vmatpush2.bf16.xpose.msra.mxu0 0
    %248 = vmatprep.mubr.bf16.mxu0 0
    %249 = vmatmul.mubr.bf16.gmra.mxu0 %v211
    %v250 = vpop.f32.mrf.mxu0
    %v251 = vadd.f32 %v150, %v250
    %v252 = vpop.f32.mrf.mxu0
    %v253 = vpop.f32.mrf.mxu0
    %v254 = vpop.f32.mrf.mxu0
    %255 = vdwg.mxu0
    %v256 = vsel %vm160, %v202, -inf
    %257 = vmax.xlane.f32.xlu0 %v256
    %v258 = vpop.xlane.xlu0 %257
    %v259 = vsel %vm160, %v251, -inf
    %260 = vmax.xlane.f32.xlu0 %v259
    %v261 = vpop.xlane.xlu0 %260
    %v262 = vsub.f32 %v202, %v258
    %v263 = vsub.f32 %v251, %v261
    %v264 = vmul.f32 %v262, 1.442695
    %v265 = vpow.pop %v264
    %v266 = vmul.f32 %v263, 1.442695
    %v267 = vpow.pop %v266
    %v268 = vsel %vm160, %v265, 0.0
    %269 = vadd.xlane.f32.xlu0 %v268
    %v270 = vpop.xlane.xlu0 %269
    %v271 = vsel %vm160, %v267, 0.0
    %272 = vadd.xlane.f32.xlu0 %v271
    %v273 = vpop.xlane.xlu0 %272
    %v274 = vrcp.pop %v270
    %v275 = vrcp.pop %v273
    %v276 = vmul.f32 %v265, %v274
    %v277 = vmul.f32 %v267, %v275
    %v278 = vpack.c.bf16 %v276, %v276
    %v279 = vpack.c.bf16 %v277, %v277
    %280 = vrot.lane.b32.xlu0 %v155, 64
    %v281 = vpop.permute.xlu0 %280
    %v283 = vsel %vm160, %v278, 0
    %vm285 = vcmask 1043456
    %v287 = vsel %vm285, %v281, 0
    %289 = vmatprep.subr.bf16.mxu0 0
    %290 = vmatpush1.bf16.msra.mxu0 0
    %291 = vmatprep.subr.bf16.mxu0 0
    %292 = vmatpush1.bf16.msra.mxu0 0
    %293 = vmatprep.subr.bf16.mxu0 0
    %294 = vmatpush1.bf16.msra.mxu0 0
    %295 = vmatprep.subr.bf16.mxu0 0
    %296 = vmatpush1.bf16.msra.mxu0 0
    %297 = vmatprep.subr.bf16.mxu0 0
    %298 = vmatpush1.bf16.msra.mxu0 0
    %299 = vmatprep.subr.bf16.mxu0 0
    %300 = vmatpush1.bf16.msra.mxu0 0
    %301 = vmatprep.subr.bf16.mxu0 0
    %302 = vmatpush1.bf16.msra.mxu0 0
    %303 = vmatprep.subr.bf16.mxu0 0
    %304 = vmatpush1.bf16.msra.mxu0 %v287
    %305 = vmatprep.subr.bf16.mxu0 0
    %306 = vmatpush2.bf16.msra.mxu0 0
    %307 = vmatprep.subr.bf16.mxu0 0
    %308 = vmatpush2.bf16.msra.mxu0 0
    %309 = vmatprep.subr.bf16.mxu0 0
    %310 = vmatpush2.bf16.msra.mxu0 0
    %311 = vmatprep.subr.bf16.mxu0 0
    %312 = vmatpush2.bf16.msra.mxu0 0
    %313 = vmatprep.subr.bf16.mxu0 0
    %314 = vmatpush2.bf16.msra.mxu0 0
    %315 = vmatprep.subr.bf16.mxu0 0
    %316 = vmatpush2.bf16.msra.mxu0 0
    %317 = vmatprep.subr.bf16.mxu0 0
    %318 = vmatpush2.bf16.msra.mxu0 0
    %319 = vmatprep.subr.bf16.mxu0 0
    %320 = vmatpush2.bf16.msra.mxu0 0
    %321 = vmatprep.mubr.bf16.mxu0 0
    %322 = vmatmul.mubr.bf16.gmra.mxu0 %v283
    %v323 = vpop.f32.mrf.mxu0
    %v324 = vadd.f32 0.0, %v323
    %v325 = vpop.f32.mrf.mxu0
    %v326 = vpop.f32.mrf.mxu0
    %v327 = vpop.f32.mrf.mxu0
    %328 = vdwg.mxu0
    %329 = vrot.lane.b32.xlu0 %v156, 64
    %v330 = vpop.permute.xlu0 %329
    %v332 = vsel %vm160, %v279, 0
    %v335 = vsel %vm285, %v330, 0
    %337 = vmatprep.subr.bf16.mxu0 0
    %338 = vmatpush1.bf16.msra.mxu0 0
    %339 = vmatprep.subr.bf16.mxu0 0
    %340 = vmatpush1.bf16.msra.mxu0 0
    %341 = vmatprep.subr.bf16.mxu0 0
    %342 = vmatpush1.bf16.msra.mxu0 0
    %343 = vmatprep.subr.bf16.mxu0 0
    %344 = vmatpush1.bf16.msra.mxu0 0
    %345 = vmatprep.subr.bf16.mxu0 0
    %346 = vmatpush1.bf16.msra.mxu0 0
    %347 = vmatprep.subr.bf16.mxu0 0
    %348 = vmatpush1.bf16.msra.mxu0 0
    %349 = vmatprep.subr.bf16.mxu0 0
    %350 = vmatpush1.bf16.msra.mxu0 0
    %351 = vmatprep.subr.bf16.mxu0 0
    %352 = vmatpush1.bf16.msra.mxu0 %v335
    %353 = vmatprep.subr.bf16.mxu0 0
    %354 = vmatpush2.bf16.msra.mxu0 0
    %355 = vmatprep.subr.bf16.mxu0 0
    %356 = vmatpush2.bf16.msra.mxu0 0
    %357 = vmatprep.subr.bf16.mxu0 0
    %358 = vmatpush2.bf16.msra.mxu0 0
    %359 = vmatprep.subr.bf16.mxu0 0
    %360 = vmatpush2.bf16.msra.mxu0 0
    %361 = vmatprep.subr.bf16.mxu0 0
    %362 = vmatpush2.bf16.msra.mxu0 0
    %363 = vmatprep.subr.bf16.mxu0 0
    %364 = vmatpush2.bf16.msra.mxu0 0
    %365 = vmatprep.subr.bf16.mxu0 0
    %366 = vmatpush2.bf16.msra.mxu0 0
    %367 = vmatprep.subr.bf16.mxu0 0
    %368 = vmatpush2.bf16.msra.mxu0 0
    %369 = vmatprep.mubr.bf16.mxu0 0
    %370 = vmatmul.mubr.bf16.gmra.mxu0 %v332
    %v371 = vpop.f32.mrf.mxu0
    %v372 = vadd.f32 0.0, %v371
    %v373 = vpop.f32.mrf.mxu0
    %v374 = vpop.f32.mrf.mxu0
    %v375 = vpop.f32.mrf.mxu0
    %376 = vdwg.mxu0
    %v377 = vpack.c.bf16 %v372, %v324
    %378 = vrot.lane.b32.xlu0 %v155, 120
    %v379 = vpop.permute.xlu0 %378
    %380 = vrot.lane.b32.xlu0 %v155, 88
    %v381 = vpop.permute.xlu0 %380
    %v383 = vsel %vm160, %v379, 0
    %v386 = vsel %vm160, %v381, 0
    %388 = vmatprep.subr.bf16.mxu0 0
    %389 = vmatpush1.bf16.xpose.msra.mxu0 0
    %390 = vmatprep.subr.bf16.mxu0 0
    %391 = vmatpush1.bf16.xpose.msra.mxu0 0
    %392 = vmatprep.subr.bf16.mxu0 0
    %393 = vmatpush1.bf16.xpose.msra.mxu0 0
    %394 = vmatprep.subr.bf16.mxu0 0
    %395 = vmatpush1.bf16.xpose.msra.mxu0 0
    %396 = vmatprep.subr.bf16.mxu0 0
    %397 = vmatpush1.bf16.xpose.msra.mxu0 0
    %398 = vmatprep.subr.bf16.mxu0 0
    %399 = vmatpush1.bf16.xpose.msra.mxu0 0
    %400 = vmatprep.subr.bf16.mxu0 0
    %401 = vmatpush1.bf16.xpose.msra.mxu0 0
    %402 = vmatprep.subr.bf16.mxu0 0
    %403 = vmatpush1.bf16.xpose.msra.mxu0 %v386
    %404 = vmatprep.subr.bf16.mxu0 0
    %405 = vmatpush2.bf16.xpose.msra.mxu0 0
    %406 = vmatprep.subr.bf16.mxu0 0
    %407 = vmatpush2.bf16.xpose.msra.mxu0 0
    %408 = vmatprep.subr.bf16.mxu0 0
    %409 = vmatpush2.bf16.xpose.msra.mxu0 0
    %410 = vmatprep.subr.bf16.mxu0 0
    %411 = vmatpush2.bf16.xpose.msra.mxu0 0
    %412 = vmatprep.subr.bf16.mxu0 0
    %413 = vmatpush2.bf16.xpose.msra.mxu0 0
    %414 = vmatprep.subr.bf16.mxu0 0
    %415 = vmatpush2.bf16.xpose.msra.mxu0 0
    %416 = vmatprep.subr.bf16.mxu0 0
    %417 = vmatpush2.bf16.xpose.msra.mxu0 0
    %418 = vmatprep.subr.bf16.mxu0 0
    %419 = vmatpush2.bf16.xpose.msra.mxu0 0
    %420 = vmatprep.mubr.bf16.mxu0 0
    %421 = vmatmul.mubr.bf16.gmra.mxu0 %v383
    %v422 = vpop.f32.mrf.mxu0
    %v423 = vadd.f32 %v150, %v422
    %v424 = vpop.f32.mrf.mxu0
    %v425 = vpop.f32.mrf.mxu0
    %v426 = vpop.f32.mrf.mxu0
    %427 = vdwg.mxu0
    %428 = vrot.lane.b32.xlu0 %v156, 120
    %v429 = vpop.permute.xlu0 %428
    %430 = vrot.lane.b32.xlu0 %v156, 88
    %v431 = vpop.permute.xlu0 %430
    %v433 = vsel %vm160, %v429, 0
    %v436 = vsel %vm160, %v431, 0
    %438 = vmatprep.subr.bf16.mxu0 0
    %439 = vmatpush1.bf16.xpose.msra.mxu0 0
    %440 = vmatprep.subr.bf16.mxu0 0
    %441 = vmatpush1.bf16.xpose.msra.mxu0 0
    %442 = vmatprep.subr.bf16.mxu0 0
    %443 = vmatpush1.bf16.xpose.msra.mxu0 0
    %444 = vmatprep.subr.bf16.mxu0 0
    %445 = vmatpush1.bf16.xpose.msra.mxu0 0
    %446 = vmatprep.subr.bf16.mxu0 0
    %447 = vmatpush1.bf16.xpose.msra.mxu0 0
    %448 = vmatprep.subr.bf16.mxu0 0
    %449 = vmatpush1.bf16.xpose.msra.mxu0 0
    %450 = vmatprep.subr.bf16.mxu0 0
    %451 = vmatpush1.bf16.xpose.msra.mxu0 0
    %452 = vmatprep.subr.bf16.mxu0 0
    %453 = vmatpush1.bf16.xpose.msra.mxu0 %v436
    %454 = vmatprep.subr.bf16.mxu0 0
    %455 = vmatpush2.bf16.xpose.msra.mxu0 0
    %456 = vmatprep.subr.bf16.mxu0 0
    %457 = vmatpush2.bf16.xpose.msra.mxu0 0
    %458 = vmatprep.subr.bf16.mxu0 0
    %459 = vmatpush2.bf16.xpose.msra.mxu0 0
    %460 = vmatprep.subr.bf16.mxu0 0
    %461 = vmatpush2.bf16.xpose.msra.mxu0 0
    %462 = vmatprep.subr.bf16.mxu0 0
    %463 = vmatpush2.bf16.xpose.msra.mxu0 0
    %464 = vmatprep.subr.bf16.mxu0 0
    %465 = vmatpush2.bf16.xpose.msra.mxu0 0
    %466 = vmatprep.subr.bf16.mxu0 0
    %467 = vmatpush2.bf16.xpose.msra.mxu0 0
    %468 = vmatprep.subr.bf16.mxu0 0
    %469 = vmatpush2.bf16.xpose.msra.mxu0 0
    %470 = vmatprep.mubr.bf16.mxu0 0
    %471 = vmatmul.mubr.bf16.gmra.mxu0 %v433
    %v472 = vpop.f32.mrf.mxu0
    %v473 = vadd.f32 %v150, %v472
    %v474 = vpop.f32.mrf.mxu0
    %v475 = vpop.f32.mrf.mxu0
    %v476 = vpop.f32.mrf.mxu0
    %477 = vdwg.mxu0
    %v478 = vsel %vm160, %v423, -inf
    %479 = vmax.xlane.f32.xlu0 %v478
    %v480 = vpop.xlane.xlu0 %479
    %v481 = vsel %vm160, %v473, -inf
    %482 = vmax.xlane.f32.xlu0 %v481
    %v483 = vpop.xlane.xlu0 %482
    %v484 = vsub.f32 %v423, %v480
    %v485 = vsub.f32 %v473, %v483
    %v486 = vmul.f32 %v484, 1.442695
    %v487 = vpow.pop %v486
    %v488 = vmul.f32 %v485, 1.442695
    %v489 = vpow.pop %v488
    %v490 = vsel %vm160, %v487, 0.0
    %491 = vadd.xlane.f32.xlu0 %v490
    %v492 = vpop.xlane.xlu0 %491
    %v493 = vsel %vm160, %v489, 0.0
    %494 = vadd.xlane.f32.xlu0 %v493
    %v495 = vpop.xlane.xlu0 %494
    %v496 = vrcp.pop %v492
    %v497 = vrcp.pop %v495
    %v498 = vmul.f32 %v487, %v496
    %v499 = vmul.f32 %v489, %v497
    %v500 = vpack.c.bf16 %v498, %v498
    %v501 = vpack.c.bf16 %v499, %v499
    %502 = vrot.lane.b32.xlu0 %v155, 56
    %v503 = vpop.permute.xlu0 %502
    %v505 = vsel %vm160, %v500, 0
    %v508 = vsel %vm285, %v503, 0
    %510 = vmatprep.subr.bf16.mxu0 0
    %511 = vmatpush1.bf16.msra.mxu0 0
    %512 = vmatprep.subr.bf16.mxu0 0
    %513 = vmatpush1.bf16.msra.mxu0 0
    %514 = vmatprep.subr.bf16.mxu0 0
    %515 = vmatpush1.bf16.msra.mxu0 0
    %516 = vmatprep.subr.bf16.mxu0 0
    %517 = vmatpush1.bf16.msra.mxu0 0
    %518 = vmatprep.subr.bf16.mxu0 0
    %519 = vmatpush1.bf16.msra.mxu0 0
    %520 = vmatprep.subr.bf16.mxu0 0
    %521 = vmatpush1.bf16.msra.mxu0 0
    %522 = vmatprep.subr.bf16.mxu0 0
    %523 = vmatpush1.bf16.msra.mxu0 0
    %524 = vmatprep.subr.bf16.mxu0 0
    %525 = vmatpush1.bf16.msra.mxu0 %v508
    %526 = vmatprep.subr.bf16.mxu0 0
    %527 = vmatpush2.bf16.msra.mxu0 0
    %528 = vmatprep.subr.bf16.mxu0 0
    %529 = vmatpush2.bf16.msra.mxu0 0
    %530 = vmatprep.subr.bf16.mxu0 0
    %531 = vmatpush2.bf16.msra.mxu0 0
    %532 = vmatprep.subr.bf16.mxu0 0
    %533 = vmatpush2.bf16.msra.mxu0 0
    %534 = vmatprep.subr.bf16.mxu0 0
    %535 = vmatpush2.bf16.msra.mxu0 0
    %536 = vmatprep.subr.bf16.mxu0 0
    %537 = vmatpush2.bf16.msra.mxu0 0
    %538 = vmatprep.subr.bf16.mxu0 0
    %539 = vmatpush2.bf16.msra.mxu0 0
    %540 = vmatprep.subr.bf16.mxu0 0
    %541 = vmatpush2.bf16.msra.mxu0 0
    %542 = vmatprep.mubr.bf16.mxu0 0
    %543 = vmatmul.mubr.bf16.gmra.mxu0 %v505
    %v544 = vpop.f32.mrf.mxu0
    %v545 = vadd.f32 0.0, %v544
    %v546 = vpop.f32.mrf.mxu0
    %v547 = vpop.f32.mrf.mxu0
    %v548 = vpop.f32.mrf.mxu0
    %549 = vdwg.mxu0
    %550 = vrot.lane.b32.xlu0 %v156, 56
    %v551 = vpop.permute.xlu0 %550
    %v553 = vsel %vm160, %v501, 0
    %v556 = vsel %vm285, %v551, 0
    %558 = vmatprep.subr.bf16.mxu0 0
    %559 = vmatpush1.bf16.msra.mxu0 0
    %560 = vmatprep.subr.bf16.mxu0 0
    %561 = vmatpush1.bf16.msra.mxu0 0
    %562 = vmatprep.subr.bf16.mxu0 0
    %563 = vmatpush1.bf16.msra.mxu0 0
    %564 = vmatprep.subr.bf16.mxu0 0
    %565 = vmatpush1.bf16.msra.mxu0 0
    %566 = vmatprep.subr.bf16.mxu0 0
    %567 = vmatpush1.bf16.msra.mxu0 0
    %568 = vmatprep.subr.bf16.mxu0 0
    %569 = vmatpush1.bf16.msra.mxu0 0
    %570 = vmatprep.subr.bf16.mxu0 0
    %571 = vmatpush1.bf16.msra.mxu0 0
    %572 = vmatprep.subr.bf16.mxu0 0
    %573 = vmatpush1.bf16.msra.mxu0 %v556
    %574 = vmatprep.subr.bf16.mxu0 0
    %575 = vmatpush2.bf16.msra.mxu0 0
    %576 = vmatprep.subr.bf16.mxu0 0
    %577 = vmatpush2.bf16.msra.mxu0 0
    %578 = vmatprep.subr.bf16.mxu0 0
    %579 = vmatpush2.bf16.msra.mxu0 0
    %580 = vmatprep.subr.bf16.mxu0 0
    %581 = vmatpush2.bf16.msra.mxu0 0
    %582 = vmatprep.subr.bf16.mxu0 0
    %583 = vmatpush2.bf16.msra.mxu0 0
    %584 = vmatprep.subr.bf16.mxu0 0
    %585 = vmatpush2.bf16.msra.mxu0 0
    %586 = vmatprep.subr.bf16.mxu0 0
    %587 = vmatpush2.bf16.msra.mxu0 0
    %588 = vmatprep.subr.bf16.mxu0 0
    %589 = vmatpush2.bf16.msra.mxu0 0
    %590 = vmatprep.mubr.bf16.mxu0 0
    %591 = vmatmul.mubr.bf16.gmra.mxu0 %v553
    %v592 = vpop.f32.mrf.mxu0
    %v593 = vadd.f32 0.0, %v592
    %v594 = vpop.f32.mrf.mxu0
    %v595 = vpop.f32.mrf.mxu0
    %v596 = vpop.f32.mrf.mxu0
    %597 = vdwg.mxu0
    %v598 = vpack.c.bf16 %v593, %v545
    %v600 = vsel %vm160, %v598, 0
    %v603 = vsel %vm285, %v152, 0
    %605 = vmatprep.subr.bf16.mxu0 0
    %606 = vmatpush1.bf16.msra.mxu0 0
    %607 = vmatprep.subr.bf16.mxu0 0
    %608 = vmatpush1.bf16.msra.mxu0 0
    %609 = vmatprep.subr.bf16.mxu0 0
    %610 = vmatpush1.bf16.msra.mxu0 0
    %611 = vmatprep.subr.bf16.mxu0 0
    %612 = vmatpush1.bf16.msra.mxu0 0
    %613 = vmatprep.subr.bf16.mxu0 0
    %614 = vmatpush1.bf16.msra.mxu0 0
    %615 = vmatprep.subr.bf16.mxu0 0
    %616 = vmatpush1.bf16.msra.mxu0 0
    %617 = vmatprep.subr.bf16.mxu0 0
    %618 = vmatpush1.bf16.msra.mxu0 0
    %619 = vmatprep.subr.bf16.mxu0 0
    %620 = vmatpush1.bf16.msra.mxu0 %v603
    %621 = vmatprep.subr.bf16.mxu0 0
    %622 = vmatpush2.bf16.msra.mxu0 0
    %623 = vmatprep.subr.bf16.mxu0 0
    %624 = vmatpush2.bf16.msra.mxu0 0
    %625 = vmatprep.subr.bf16.mxu0 0
    %626 = vmatpush2.bf16.msra.mxu0 0
    %627 = vmatprep.subr.bf16.mxu0 0
    %628 = vmatpush2.bf16.msra.mxu0 0
    %629 = vmatprep.subr.bf16.mxu0 0
    %630 = vmatpush2.bf16.msra.mxu0 0
    %631 = vmatprep.subr.bf16.mxu0 0
    %632 = vmatpush2.bf16.msra.mxu0 0
    %633 = vmatprep.subr.bf16.mxu0 0
    %634 = vmatpush2.bf16.msra.mxu0 0
    %635 = vmatprep.subr.bf16.mxu0 0
    %636 = vmatpush2.bf16.msra.mxu0 0
    %637 = vmatprep.mubr.bf16.mxu0 0
    %638 = vmatmul.mubr.bf16.gmra.mxu0 %v600
    %v639 = vpop.f32.mrf.mxu0
    %v640 = vadd.f32 0.0, %v639
    %v641 = vpop.f32.mrf.mxu0
    %v642 = vpop.f32.mrf.mxu0
    %v643 = vadd.f32 0.0, %v642
    %v644 = vpop.f32.mrf.mxu0
    %645 = vdwg.mxu0
    %v647 = vsel %vm160, %v377, 0
    %v650 = vsel %vm285, %v151, 0
    %652 = vmatprep.subr.bf16.mxu0 0
    %653 = vmatpush1.bf16.msra.mxu0 0
    %654 = vmatprep.subr.bf16.mxu0 0
    %655 = vmatpush1.bf16.msra.mxu0 0
    %656 = vmatprep.subr.bf16.mxu0 0
    %657 = vmatpush1.bf16.msra.mxu0 0
    %658 = vmatprep.subr.bf16.mxu0 0
    %659 = vmatpush1.bf16.msra.mxu0 0
    %660 = vmatprep.subr.bf16.mxu0 0
    %661 = vmatpush1.bf16.msra.mxu0 0
    %662 = vmatprep.subr.bf16.mxu0 0
    %663 = vmatpush1.bf16.msra.mxu0 0
    %664 = vmatprep.subr.bf16.mxu0 0
    %665 = vmatpush1.bf16.msra.mxu0 0
    %666 = vmatprep.subr.bf16.mxu0 0
    %667 = vmatpush1.bf16.msra.mxu0 %v650
    %668 = vmatprep.subr.bf16.mxu0 0
    %669 = vmatpush2.bf16.msra.mxu0 0
    %670 = vmatprep.subr.bf16.mxu0 0
    %671 = vmatpush2.bf16.msra.mxu0 0
    %672 = vmatprep.subr.bf16.mxu0 0
    %673 = vmatpush2.bf16.msra.mxu0 0
    %674 = vmatprep.subr.bf16.mxu0 0
    %675 = vmatpush2.bf16.msra.mxu0 0
    %676 = vmatprep.subr.bf16.mxu0 0
    %677 = vmatpush2.bf16.msra.mxu0 0
    %678 = vmatprep.subr.bf16.mxu0 0
    %679 = vmatpush2.bf16.msra.mxu0 0
    %680 = vmatprep.subr.bf16.mxu0 0
    %681 = vmatpush2.bf16.msra.mxu0 0
    %682 = vmatprep.subr.bf16.mxu0 0
    %683 = vmatpush2.bf16.msra.mxu0 0
    %684 = vmatprep.mubr.bf16.mxu0 0
    %685 = vmatmul.mubr.bf16.gmra.mxu0 %v647
    %v686 = vpop.f32.mrf.mxu0
    %v687 = vadd.f32 %v640, %v686
    %v688 = vpop.f32.mrf.mxu0
    %v689 = vpop.f32.mrf.mxu0
    %v690 = vadd.f32 %v643, %v689
    %v691 = vpop.f32.mrf.mxu0
    %692 = vdwg.mxu0
    %693 = vrot.lane.b32.xlu0 %v155, 112
    %v694 = vpop.permute.xlu0 %693
    %695 = vrot.lane.b32.xlu0 %v155, 80
    %v696 = vpop.permute.xlu0 %695
    %v698 = vsel %vm160, %v694, 0
    %v701 = vsel %vm160, %v696, 0
    %703 = vmatprep.subr.bf16.mxu0 0
    %704 = vmatpush1.bf16.xpose.msra.mxu0 0
    %705 = vmatprep.subr.bf16.mxu0 0
    %706 = vmatpush1.bf16.xpose.msra.mxu0 0
    %707 = vmatprep.subr.bf16.mxu0 0
    %708 = vmatpush1.bf16.xpose.msra.mxu0 0
    %709 = vmatprep.subr.bf16.mxu0 0
    %710 = vmatpush1.bf16.xpose.msra.mxu0 0
    %711 = vmatprep.subr.bf16.mxu0 0
    %712 = vmatpush1.bf16.xpose.msra.mxu0 0
    %713 = vmatprep.subr.bf16.mxu0 0
    %714 = vmatpush1.bf16.xpose.msra.mxu0 0
    %715 = vmatprep.subr.bf16.mxu0 0
    %716 = vmatpush1.bf16.xpose.msra.mxu0 0
    %717 = vmatprep.subr.bf16.mxu0 0
    %718 = vmatpush1.bf16.xpose.msra.mxu0 %v701
    %719 = vmatprep.subr.bf16.mxu0 0
    %720 = vmatpush2.bf16.xpose.msra.mxu0 0
    %721 = vmatprep.subr.bf16.mxu0 0
    %722 = vmatpush2.bf16.xpose.msra.mxu0 0
    %723 = vmatprep.subr.bf16.mxu0 0
    %724 = vmatpush2.bf16.xpose.msra.mxu0 0
    %725 = vmatprep.subr.bf16.mxu0 0
    %726 = vmatpush2.bf16.xpose.msra.mxu0 0
    %727 = vmatprep.subr.bf16.mxu0 0
    %728 = vmatpush2.bf16.xpose.msra.mxu0 0
    %729 = vmatprep.subr.bf16.mxu0 0
    %730 = vmatpush2.bf16.xpose.msra.mxu0 0
    %731 = vmatprep.subr.bf16.mxu0 0
    %732 = vmatpush2.bf16.xpose.msra.mxu0 0
    %733 = vmatprep.subr.bf16.mxu0 0
    %734 = vmatpush2.bf16.xpose.msra.mxu0 0
    %735 = vmatprep.mubr.bf16.mxu0 0
    %736 = vmatmul.mubr.bf16.gmra.mxu0 %v698
    %v737 = vpop.f32.mrf.mxu0
    %v738 = vadd.f32 %v150, %v737
    %v739 = vpop.f32.mrf.mxu0
    %v740 = vpop.f32.mrf.mxu0
    %v741 = vpop.f32.mrf.mxu0
    %742 = vdwg.mxu0
    %743 = vrot.lane.b32.xlu0 %v156, 112
    %v744 = vpop.permute.xlu0 %743
    %745 = vrot.lane.b32.xlu0 %v156, 80
    %v746 = vpop.permute.xlu0 %745
    %v748 = vsel %vm160, %v744, 0
    %v751 = vsel %vm160, %v746, 0
    %753 = vmatprep.subr.bf16.mxu0 0
    %754 = vmatpush1.bf16.xpose.msra.mxu0 0
    %755 = vmatprep.subr.bf16.mxu0 0
    %756 = vmatpush1.bf16.xpose.msra.mxu0 0
    %757 = vmatprep.subr.bf16.mxu0 0
    %758 = vmatpush1.bf16.xpose.msra.mxu0 0
    %759 = vmatprep.subr.bf16.mxu0 0
    %760 = vmatpush1.bf16.xpose.msra.mxu0 0
    %761 = vmatprep.subr.bf16.mxu0 0
    %762 = vmatpush1.bf16.xpose.msra.mxu0 0
    %763 = vmatprep.subr.bf16.mxu0 0
    %764 = vmatpush1.bf16.xpose.msra.mxu0 0
    %765 = vmatprep.subr.bf16.mxu0 0
    %766 = vmatpush1.bf16.xpose.msra.mxu0 0
    %767 = vmatprep.subr.bf16.mxu0 0
    %768 = vmatpush1.bf16.xpose.msra.mxu0 %v751
    %769 = vmatprep.subr.bf16.mxu0 0
    %770 = vmatpush2.bf16.xpose.msra.mxu0 0
    %771 = vmatprep.subr.bf16.mxu0 0
    %772 = vmatpush2.bf16.xpose.msra.mxu0 0
    %773 = vmatprep.subr.bf16.mxu0 0
    %774 = vmatpush2.bf16.xpose.msra.mxu0 0
    %775 = vmatprep.subr.bf16.mxu0 0
    %776 = vmatpush2.bf16.xpose.msra.mxu0 0
    %777 = vmatprep.subr.bf16.mxu0 0
    %778 = vmatpush2.bf16.xpose.msra.mxu0 0
    %779 = vmatprep.subr.bf16.mxu0 0
    %780 = vmatpush2.bf16.xpose.msra.mxu0 0
    %781 = vmatprep.subr.bf16.mxu0 0
    %782 = vmatpush2.bf16.xpose.msra.mxu0 0
    %783 = vmatprep.subr.bf16.mxu0 0
    %784 = vmatpush2.bf16.xpose.msra.mxu0 0
    %785 = vmatprep.mubr.bf16.mxu0 0
    %786 = vmatmul.mubr.bf16.gmra.mxu0 %v748
    %v787 = vpop.f32.mrf.mxu0
    %v788 = vadd.f32 %v150, %v787
    %v789 = vpop.f32.mrf.mxu0
    %v790 = vpop.f32.mrf.mxu0
    %v791 = vpop.f32.mrf.mxu0
    %792 = vdwg.mxu0
    %v793 = vsel %vm160, %v738, -inf
    %794 = vmax.xlane.f32.xlu0 %v793
    %v795 = vpop.xlane.xlu0 %794
    %v796 = vsel %vm160, %v788, -inf
    %797 = vmax.xlane.f32.xlu0 %v796
    %v798 = vpop.xlane.xlu0 %797
    %v799 = vsub.f32 %v738, %v795
    %v800 = vsub.f32 %v788, %v798
    %v801 = vmul.f32 %v799, 1.442695
    %v802 = vpow.pop %v801
    %v803 = vmul.f32 %v800, 1.442695
    %v804 = vpow.pop %v803
    %v805 = vsel %vm160, %v802, 0.0
    %806 = vadd.xlane.f32.xlu0 %v805
    %v807 = vpop.xlane.xlu0 %806
    %v808 = vsel %vm160, %v804, 0.0
    %809 = vadd.xlane.f32.xlu0 %v808
    %v810 = vpop.xlane.xlu0 %809
    %v811 = vrcp.pop %v807
    %v812 = vrcp.pop %v810
    %v813 = vmul.f32 %v802, %v811
    %v814 = vmul.f32 %v804, %v812
    %v815 = vpack.c.bf16 %v813, %v813
    %v816 = vpack.c.bf16 %v814, %v814
    %817 = vrot.lane.b32.xlu0 %v155, 48
    %v818 = vpop.permute.xlu0 %817
    %v820 = vsel %vm160, %v815, 0
    %v823 = vsel %vm285, %v818, 0
    %825 = vmatprep.subr.bf16.mxu0 0
    %826 = vmatpush1.bf16.msra.mxu0 0
    %827 = vmatprep.subr.bf16.mxu0 0
    %828 = vmatpush1.bf16.msra.mxu0 0
    %829 = vmatprep.subr.bf16.mxu0 0
    %830 = vmatpush1.bf16.msra.mxu0 0
    %831 = vmatprep.subr.bf16.mxu0 0
    %832 = vmatpush1.bf16.msra.mxu0 0
    %833 = vmatprep.subr.bf16.mxu0 0
    %834 = vmatpush1.bf16.msra.mxu0 0
    %835 = vmatprep.subr.bf16.mxu0 0
    %836 = vmatpush1.bf16.msra.mxu0 0
    %837 = vmatprep.subr.bf16.mxu0 0
    %838 = vmatpush1.bf16.msra.mxu0 0
    %839 = vmatprep.subr.bf16.mxu0 0
    %840 = vmatpush1.bf16.msra.mxu0 %v823
    %841 = vmatprep.subr.bf16.mxu0 0
    %842 = vmatpush2.bf16.msra.mxu0 0
    %843 = vmatprep.subr.bf16.mxu0 0
    %844 = vmatpush2.bf16.msra.mxu0 0
    %845 = vmatprep.subr.bf16.mxu0 0
    %846 = vmatpush2.bf16.msra.mxu0 0
    %847 = vmatprep.subr.bf16.mxu0 0
    %848 = vmatpush2.bf16.msra.mxu0 0
    %849 = vmatprep.subr.bf16.mxu0 0
    %850 = vmatpush2.bf16.msra.mxu0 0
    %851 = vmatprep.subr.bf16.mxu0 0
    %852 = vmatpush2.bf16.msra.mxu0 0
    %853 = vmatprep.subr.bf16.mxu0 0
    %854 = vmatpush2.bf16.msra.mxu0 0
    %855 = vmatprep.subr.bf16.mxu0 0
    %856 = vmatpush2.bf16.msra.mxu0 0
    %857 = vmatprep.mubr.bf16.mxu0 0
    %858 = vmatmul.mubr.bf16.gmra.mxu0 %v820
    %v859 = vpop.f32.mrf.mxu0
    %v860 = vadd.f32 0.0, %v859
    %v861 = vpop.f32.mrf.mxu0
    %v862 = vpop.f32.mrf.mxu0
    %v863 = vpop.f32.mrf.mxu0
    %864 = vdwg.mxu0
    %865 = vrot.lane.b32.xlu0 %v156, 48
    %v866 = vpop.permute.xlu0 %865
    %v868 = vsel %vm160, %v816, 0
    %v871 = vsel %vm285, %v866, 0
    %873 = vmatprep.subr.bf16.mxu0 0
    %874 = vmatpush1.bf16.msra.mxu0 0
    %875 = vmatprep.subr.bf16.mxu0 0
    %876 = vmatpush1.bf16.msra.mxu0 0
    %877 = vmatprep.subr.bf16.mxu0 0
    %878 = vmatpush1.bf16.msra.mxu0 0
    %879 = vmatprep.subr.bf16.mxu0 0
    %880 = vmatpush1.bf16.msra.mxu0 0
    %881 = vmatprep.subr.bf16.mxu0 0
    %882 = vmatpush1.bf16.msra.mxu0 0
    %883 = vmatprep.subr.bf16.mxu0 0
    %884 = vmatpush1.bf16.msra.mxu0 0
    %885 = vmatprep.subr.bf16.mxu0 0
    %886 = vmatpush1.bf16.msra.mxu0 0
    %887 = vmatprep.subr.bf16.mxu0 0
    %888 = vmatpush1.bf16.msra.mxu0 %v871
    %889 = vmatprep.subr.bf16.mxu0 0
    %890 = vmatpush2.bf16.msra.mxu0 0
    %891 = vmatprep.subr.bf16.mxu0 0
    %892 = vmatpush2.bf16.msra.mxu0 0
    %893 = vmatprep.subr.bf16.mxu0 0
    %894 = vmatpush2.bf16.msra.mxu0 0
    %895 = vmatprep.subr.bf16.mxu0 0
    %896 = vmatpush2.bf16.msra.mxu0 0
    %897 = vmatprep.subr.bf16.mxu0 0
    %898 = vmatpush2.bf16.msra.mxu0 0
    %899 = vmatprep.subr.bf16.mxu0 0
    %900 = vmatpush2.bf16.msra.mxu0 0
    %901 = vmatprep.subr.bf16.mxu0 0
    %902 = vmatpush2.bf16.msra.mxu0 0
    %903 = vmatprep.subr.bf16.mxu0 0
    %904 = vmatpush2.bf16.msra.mxu0 0
    %905 = vmatprep.mubr.bf16.mxu0 0
    %906 = vmatmul.mubr.bf16.gmra.mxu0 %v868
    %v907 = vpop.f32.mrf.mxu0
    %v908 = vadd.f32 0.0, %v907
    %v909 = vpop.f32.mrf.mxu0
    %v910 = vpop.f32.mrf.mxu0
    %v911 = vpop.f32.mrf.mxu0
    %912 = vdwg.mxu0
    %v913 = vpack.c.bf16 %v908, %v860
    %v915 = vsel %vm160, %v913, 0
    %v918 = vsel %vm285, %v153, 0
    %920 = vmatprep.subr.bf16.mxu0 0
    %921 = vmatpush1.bf16.msra.mxu0 0
    %922 = vmatprep.subr.bf16.mxu0 0
    %923 = vmatpush1.bf16.msra.mxu0 0
    %924 = vmatprep.subr.bf16.mxu0 0
    %925 = vmatpush1.bf16.msra.mxu0 0
    %926 = vmatprep.subr.bf16.mxu0 0
    %927 = vmatpush1.bf16.msra.mxu0 0
    %928 = vmatprep.subr.bf16.mxu0 0
    %929 = vmatpush1.bf16.msra.mxu0 0
    %930 = vmatprep.subr.bf16.mxu0 0
    %931 = vmatpush1.bf16.msra.mxu0 0
    %932 = vmatprep.subr.bf16.mxu0 0
    %933 = vmatpush1.bf16.msra.mxu0 0
    %934 = vmatprep.subr.bf16.mxu0 0
    %935 = vmatpush1.bf16.msra.mxu0 %v918
    %936 = vmatprep.subr.bf16.mxu0 0
    %937 = vmatpush2.bf16.msra.mxu0 0
    %938 = vmatprep.subr.bf16.mxu0 0
    %939 = vmatpush2.bf16.msra.mxu0 0
    %940 = vmatprep.subr.bf16.mxu0 0
    %941 = vmatpush2.bf16.msra.mxu0 0
    %942 = vmatprep.subr.bf16.mxu0 0
    %943 = vmatpush2.bf16.msra.mxu0 0
    %944 = vmatprep.subr.bf16.mxu0 0
    %945 = vmatpush2.bf16.msra.mxu0 0
    %946 = vmatprep.subr.bf16.mxu0 0
    %947 = vmatpush2.bf16.msra.mxu0 0
    %948 = vmatprep.subr.bf16.mxu0 0
    %949 = vmatpush2.bf16.msra.mxu0 0
    %950 = vmatprep.subr.bf16.mxu0 0
    %951 = vmatpush2.bf16.msra.mxu0 0
    %952 = vmatprep.mubr.bf16.mxu0 0
    %953 = vmatmul.mubr.bf16.gmra.mxu0 %v915
    %v954 = vpop.f32.mrf.mxu0
    %v955 = vadd.f32 0.0, %v954
    %v956 = vpop.f32.mrf.mxu0
    %v957 = vpop.f32.mrf.mxu0
    %v958 = vadd.f32 0.0, %v957
    %v959 = vpop.f32.mrf.mxu0
    %960 = vdwg.mxu0
    %v961 = vadd.f32 %v687, %v955
    %v962 = vadd.f32 %v690, %v958
    %963 = vrot.lane.b32.xlu0 %v155, 104
    %v964 = vpop.permute.xlu0 %963
    %965 = vrot.lane.b32.xlu0 %v155, 72
    %v966 = vpop.permute.xlu0 %965
    %v968 = vsel %vm160, %v964, 0
    %v971 = vsel %vm160, %v966, 0
    %973 = vmatprep.subr.bf16.mxu0 0
    %974 = vmatpush1.bf16.xpose.msra.mxu0 0
    %975 = vmatprep.subr.bf16.mxu0 0
    %976 = vmatpush1.bf16.xpose.msra.mxu0 0
    %977 = vmatprep.subr.bf16.mxu0 0
    %978 = vmatpush1.bf16.xpose.msra.mxu0 0
    %979 = vmatprep.subr.bf16.mxu0 0
    %980 = vmatpush1.bf16.xpose.msra.mxu0 0
    %981 = vmatprep.subr.bf16.mxu0 0
    %982 = vmatpush1.bf16.xpose.msra.mxu0 0
    %983 = vmatprep.subr.bf16.mxu0 0
    %984 = vmatpush1.bf16.xpose.msra.mxu0 0
    %985 = vmatprep.subr.bf16.mxu0 0
    %986 = vmatpush1.bf16.xpose.msra.mxu0 0
    %987 = vmatprep.subr.bf16.mxu0 0
    %988 = vmatpush1.bf16.xpose.msra.mxu0 %v971
    %989 = vmatprep.subr.bf16.mxu0 0
    %990 = vmatpush2.bf16.xpose.msra.mxu0 0
    %991 = vmatprep.subr.bf16.mxu0 0
    %992 = vmatpush2.bf16.xpose.msra.mxu0 0
    %993 = vmatprep.subr.bf16.mxu0 0
    %994 = vmatpush2.bf16.xpose.msra.mxu0 0
    %995 = vmatprep.subr.bf16.mxu0 0
    %996 = vmatpush2.bf16.xpose.msra.mxu0 0
    %997 = vmatprep.subr.bf16.mxu0 0
    %998 = vmatpush2.bf16.xpose.msra.mxu0 0
    %999 = vmatprep.subr.bf16.mxu0 0
    %1000 = vmatpush2.bf16.xpose.msra.mxu0 0
    %1001 = vmatprep.subr.bf16.mxu0 0
    %1002 = vmatpush2.bf16.xpose.msra.mxu0 0
    %1003 = vmatprep.subr.bf16.mxu0 0
    %1004 = vmatpush2.bf16.xpose.msra.mxu0 0
    %1005 = vmatprep.mubr.bf16.mxu0 0
    %1006 = vmatmul.mubr.bf16.gmra.mxu0 %v968
    %v1007 = vpop.f32.mrf.mxu0
    %v1008 = vadd.f32 %v150, %v1007
    %v1009 = vpop.f32.mrf.mxu0
    %v1010 = vpop.f32.mrf.mxu0
    %v1011 = vpop.f32.mrf.mxu0
    %1012 = vdwg.mxu0
    %1013 = vrot.lane.b32.xlu0 %v156, 104
    %v1014 = vpop.permute.xlu0 %1013
    %1015 = vrot.lane.b32.xlu0 %v156, 72
    %v1016 = vpop.permute.xlu0 %1015
    %v1018 = vsel %vm160, %v1014, 0
    %v1021 = vsel %vm160, %v1016, 0
    %1023 = vmatprep.subr.bf16.mxu0 0
    %1024 = vmatpush1.bf16.xpose.msra.mxu0 0
    %1025 = vmatprep.subr.bf16.mxu0 0
    %1026 = vmatpush1.bf16.xpose.msra.mxu0 0
    %1027 = vmatprep.subr.bf16.mxu0 0
    %1028 = vmatpush1.bf16.xpose.msra.mxu0 0
    %1029 = vmatprep.subr.bf16.mxu0 0
    %1030 = vmatpush1.bf16.xpose.msra.mxu0 0
    %1031 = vmatprep.subr.bf16.mxu0 0
    %1032 = vmatpush1.bf16.xpose.msra.mxu0 0
    %1033 = vmatprep.subr.bf16.mxu0 0
    %1034 = vmatpush1.bf16.xpose.msra.mxu0 0
    %1035 = vmatprep.subr.bf16.mxu0 0
    %1036 = vmatpush1.bf16.xpose.msra.mxu0 0
    %1037 = vmatprep.subr.bf16.mxu0 0
    %1038 = vmatpush1.bf16.xpose.msra.mxu0 %v1021
    %1039 = vmatprep.subr.bf16.mxu0 0
    %1040 = vmatpush2.bf16.xpose.msra.mxu0 0
    %1041 = vmatprep.subr.bf16.mxu0 0
    %1042 = vmatpush2.bf16.xpose.msra.mxu0 0
    %1043 = vmatprep.subr.bf16.mxu0 0
    %1044 = vmatpush2.bf16.xpose.msra.mxu0 0
    %1045 = vmatprep.subr.bf16.mxu0 0
    %1046 = vmatpush2.bf16.xpose.msra.mxu0 0
    %1047 = vmatprep.subr.bf16.mxu0 0
    %1048 = vmatpush2.bf16.xpose.msra.mxu0 0
    %1049 = vmatprep.subr.bf16.mxu0 0
    %1050 = vmatpush2.bf16.xpose.msra.mxu0 0
    %1051 = vmatprep.subr.bf16.mxu0 0
    %1052 = vmatpush2.bf16.xpose.msra.mxu0 0
    %1053 = vmatprep.subr.bf16.mxu0 0
    %1054 = vmatpush2.bf16.xpose.msra.mxu0 0
    %1055 = vmatprep.mubr.bf16.mxu0 0
    %1056 = vmatmul.mubr.bf16.gmra.mxu0 %v1018
    %v1057 = vpop.f32.mrf.mxu0
    %v1058 = vadd.f32 %v150, %v1057
    %v1059 = vpop.f32.mrf.mxu0
    %v1060 = vpop.f32.mrf.mxu0
    %v1061 = vpop.f32.mrf.mxu0
    %1062 = vdwg.mxu0
    %v1063 = vsel %vm160, %v1008, -inf
    %1064 = vmax.xlane.f32.xlu0 %v1063
    %v1065 = vpop.xlane.xlu0 %1064
    %v1066 = vsel %vm160, %v1058, -inf
    %1067 = vmax.xlane.f32.xlu0 %v1066
    %v1068 = vpop.xlane.xlu0 %1067
    %v1069 = vsub.f32 %v1008, %v1065
    %v1070 = vsub.f32 %v1058, %v1068
    %v1071 = vmul.f32 %v1069, 1.442695
    %v1072 = vpow.pop %v1071
    %v1073 = vmul.f32 %v1070, 1.442695
    %v1074 = vpow.pop %v1073
    %v1075 = vsel %vm160, %v1072, 0.0
    %1076 = vadd.xlane.f32.xlu0 %v1075
    %v1077 = vpop.xlane.xlu0 %1076
    %v1078 = vsel %vm160, %v1074, 0.0
    %1079 = vadd.xlane.f32.xlu0 %v1078
    %v1080 = vpop.xlane.xlu0 %1079
    %v1081 = vrcp.pop %v1077
    %v1082 = vrcp.pop %v1080
    %v1083 = vmul.f32 %v1072, %v1081
    %v1084 = vmul.f32 %v1074, %v1082
    %v1085 = vpack.c.bf16 %v1083, %v1083
    %v1086 = vpack.c.bf16 %v1084, %v1084
    %1087 = vrot.lane.b32.xlu0 %v155, 40
    %v1088 = vpop.permute.xlu0 %1087
    %v1090 = vsel %vm160, %v1085, 0
    %v1093 = vsel %vm285, %v1088, 0
    %1095 = vmatprep.subr.bf16.mxu0 0
    %1096 = vmatpush1.bf16.msra.mxu0 0
    %1097 = vmatprep.subr.bf16.mxu0 0
    %1098 = vmatpush1.bf16.msra.mxu0 0
    %1099 = vmatprep.subr.bf16.mxu0 0
    %1100 = vmatpush1.bf16.msra.mxu0 0
    %1101 = vmatprep.subr.bf16.mxu0 0
    %1102 = vmatpush1.bf16.msra.mxu0 0
    %1103 = vmatprep.subr.bf16.mxu0 0
    %1104 = vmatpush1.bf16.msra.mxu0 0
    %1105 = vmatprep.subr.bf16.mxu0 0
    %1106 = vmatpush1.bf16.msra.mxu0 0
    %1107 = vmatprep.subr.bf16.mxu0 0
    %1108 = vmatpush1.bf16.msra.mxu0 0
    %1109 = vmatprep.subr.bf16.mxu0 0
    %1110 = vmatpush1.bf16.msra.mxu0 %v1093
    %1111 = vmatprep.subr.bf16.mxu0 0
    %1112 = vmatpush2.bf16.msra.mxu0 0
    %1113 = vmatprep.subr.bf16.mxu0 0
    %1114 = vmatpush2.bf16.msra.mxu0 0
    %1115 = vmatprep.subr.bf16.mxu0 0
    %1116 = vmatpush2.bf16.msra.mxu0 0
    %1117 = vmatprep.subr.bf16.mxu0 0
    %1118 = vmatpush2.bf16.msra.mxu0 0
    %1119 = vmatprep.subr.bf16.mxu0 0
    %1120 = vmatpush2.bf16.msra.mxu0 0
    %1121 = vmatprep.subr.bf16.mxu0 0
    %1122 = vmatpush2.bf16.msra.mxu0 0
    %1123 = vmatprep.subr.bf16.mxu0 0
    %1124 = vmatpush2.bf16.msra.mxu0 0
    %1125 = vmatprep.subr.bf16.mxu0 0
    %1126 = vmatpush2.bf16.msra.mxu0 0
    %1127 = vmatprep.mubr.bf16.mxu0 0
    %1128 = vmatmul.mubr.bf16.gmra.mxu0 %v1090
    %v1129 = vpop.f32.mrf.mxu0
    %v1130 = vadd.f32 0.0, %v1129
    %v1131 = vpop.f32.mrf.mxu0
    %v1132 = vpop.f32.mrf.mxu0
    %v1133 = vpop.f32.mrf.mxu0
    %1134 = vdwg.mxu0
    %1135 = vrot.lane.b32.xlu0 %v156, 40
    %v1136 = vpop.permute.xlu0 %1135
    %v1138 = vsel %vm160, %v1086, 0
    %v1141 = vsel %vm285, %v1136, 0
    %1143 = vmatprep.subr.bf16.mxu0 0
    %1144 = vmatpush1.bf16.msra.mxu0 0
    %1145 = vmatprep.subr.bf16.mxu0 0
    %1146 = vmatpush1.bf16.msra.mxu0 0
    %1147 = vmatprep.subr.bf16.mxu0 0
    %1148 = vmatpush1.bf16.msra.mxu0 0
    %1149 = vmatprep.subr.bf16.mxu0 0
    %1150 = vmatpush1.bf16.msra.mxu0 0
    %1151 = vmatprep.subr.bf16.mxu0 0
    %1152 = vmatpush1.bf16.msra.mxu0 0
    %1153 = vmatprep.subr.bf16.mxu0 0
    %1154 = vmatpush1.bf16.msra.mxu0 0
    %1155 = vmatprep.subr.bf16.mxu0 0
    %1156 = vmatpush1.bf16.msra.mxu0 0
    %1157 = vmatprep.subr.bf16.mxu0 0
    %1158 = vmatpush1.bf16.msra.mxu0 %v1141
    %1159 = vmatprep.subr.bf16.mxu0 0
    %1160 = vmatpush2.bf16.msra.mxu0 0
    %1161 = vmatprep.subr.bf16.mxu0 0
    %1162 = vmatpush2.bf16.msra.mxu0 0
    %1163 = vmatprep.subr.bf16.mxu0 0
    %1164 = vmatpush2.bf16.msra.mxu0 0
    %1165 = vmatprep.subr.bf16.mxu0 0
    %1166 = vmatpush2.bf16.msra.mxu0 0
    %1167 = vmatprep.subr.bf16.mxu0 0
    %1168 = vmatpush2.bf16.msra.mxu0 0
    %1169 = vmatprep.subr.bf16.mxu0 0
    %1170 = vmatpush2.bf16.msra.mxu0 0
    %1171 = vmatprep.subr.bf16.mxu0 0
    %1172 = vmatpush2.bf16.msra.mxu0 0
    %1173 = vmatprep.subr.bf16.mxu0 0
    %1174 = vmatpush2.bf16.msra.mxu0 0
    %1175 = vmatprep.mubr.bf16.mxu0 0
    %1176 = vmatmul.mubr.bf16.gmra.mxu0 %v1138
    %v1177 = vpop.f32.mrf.mxu0
    %v1178 = vadd.f32 0.0, %v1177
    %v1179 = vpop.f32.mrf.mxu0
    %v1180 = vpop.f32.mrf.mxu0
    %v1181 = vpop.f32.mrf.mxu0
    %1182 = vdwg.mxu0
    %v1183 = vpack.c.bf16 %v1178, %v1130
    %v1185 = vsel %vm160, %v1183, 0
    %v1188 = vsel %vm285, %v154, 0
    %1190 = vmatprep.subr.bf16.mxu0 0
    %1191 = vmatpush1.bf16.msra.mxu0 0
    %1192 = vmatprep.subr.bf16.mxu0 0
    %1193 = vmatpush1.bf16.msra.mxu0 0
    %1194 = vmatprep.subr.bf16.mxu0 0
    %1195 = vmatpush1.bf16.msra.mxu0 0
    %1196 = vmatprep.subr.bf16.mxu0 0
    %1197 = vmatpush1.bf16.msra.mxu0 0
    %1198 = vmatprep.subr.bf16.mxu0 0
    %1199 = vmatpush1.bf16.msra.mxu0 0
    %1200 = vmatprep.subr.bf16.mxu0 0
    %1201 = vmatpush1.bf16.msra.mxu0 0
    %1202 = vmatprep.subr.bf16.mxu0 0
    %1203 = vmatpush1.bf16.msra.mxu0 0
    %1204 = vmatprep.subr.bf16.mxu0 0
    %1205 = vmatpush1.bf16.msra.mxu0 %v1188
    %1206 = vmatprep.subr.bf16.mxu0 0
    %1207 = vmatpush2.bf16.msra.mxu0 0
    %1208 = vmatprep.subr.bf16.mxu0 0
    %1209 = vmatpush2.bf16.msra.mxu0 0
    %1210 = vmatprep.subr.bf16.mxu0 0
    %1211 = vmatpush2.bf16.msra.mxu0 0
    %1212 = vmatprep.subr.bf16.mxu0 0
    %1213 = vmatpush2.bf16.msra.mxu0 0
    %1214 = vmatprep.subr.bf16.mxu0 0
    %1215 = vmatpush2.bf16.msra.mxu0 0
    %1216 = vmatprep.subr.bf16.mxu0 0
    %1217 = vmatpush2.bf16.msra.mxu0 0
    %1218 = vmatprep.subr.bf16.mxu0 0
    %1219 = vmatpush2.bf16.msra.mxu0 0
    %1220 = vmatprep.subr.bf16.mxu0 0
    %1221 = vmatpush2.bf16.msra.mxu0 0
    %1222 = vmatprep.mubr.bf16.mxu0 0
    %1223 = vmatmul.mubr.bf16.gmra.mxu0 %v1185
    %v1224 = vpop.f32.mrf.mxu0
    %v1225 = vadd.f32 0.0, %v1224
    %v1226 = vpop.f32.mrf.mxu0
    %v1227 = vpop.f32.mrf.mxu0
    %v1228 = vadd.f32 0.0, %v1227
    %v1229 = vpop.f32.mrf.mxu0
    %1230 = vdwg.mxu0
    %v1231 = vadd.f32 %v961, %v1225
    %v1232 = vadd.f32 %v962, %v1228
    %v1233 = vlaneseq
    %v1234 = vshrl.u32 %v1233, 7
    %v1235 = vsub.s32 2, %v1234
    %v1236 = vrot.slane %v77, %v1235
    %v1237 = vadd.f32 %v1231, %v1236
    %v1238 = vadd.f32 %v1232, %v1236
    %v1239 = vadd.f32 %v75, %v1237
    %v1240 = vadd.f32 %v76, %v1238
    %v1241 = vsel %vm100, %v1239, 0.0
    %1242 = vadd.xlane.f32.xlu0 %v1241
    %v1243 = vpop.xlane.xlu0 %1242
    %v1244 = vsel %vm100, %v1240, 0.0
    %1245 = vadd.xlane.f32.xlu0 %v1244
    %v1246 = vpop.xlane.xlu0 %1245
    %v1247 = vrcp.pop 32.0
    %v1248 = vmul.f32 %v1243, %v1247
    %v1249 = vmul.f32 %v1246, %v1247
    %v1250 = vsub.f32 %v1239, %v1248
    %v1251 = vsub.f32 %v1240, %v1249
    %v1252 = vmul.f32 %v1250, %v1250
    %v1253 = vmul.f32 %v1251, %v1251
    %v1254 = vsel %vm100, %v1252, 0.0
    %1255 = vadd.xlane.f32.xlu0 %v1254
    %v1256 = vpop.xlane.xlu0 %1255
    %v1257 = vsel %vm100, %v1253, 0.0
    %1258 = vadd.xlane.f32.xlu0 %v1257
    %v1259 = vpop.xlane.xlu0 %1258
    %v1260 = vmul.f32 %v1256, %v1247
    %v1261 = vmul.f32 %v1259, %v1247
    %v1262 = vadd.f32 %v1260, 1e-05
    %v1263 = vadd.f32 %v1261, 1e-05
    %v1264 = vrsqrt.pop %v1262
    %v1265 = vrsqrt.pop %v1263
    %v1266 = vmul.f32 %v1250, %v1264
    %v1267 = vmul.f32 %v1251, %v1265
    %v1268 = vlaneseq
    %v1269 = vshrl.u32 %v1268, 7
    %v1270 = vsub.s32 6, %v1269
    %v1271 = vrot.slane %v77, %v1270
    %v1272 = vmul.f32 %v1266, %v1271
    %v1273 = vmul.f32 %v1267, %v1271
    %v1274 = vlaneseq
    %v1275 = vshrl.u32 %v1274, 7
    %v1276 = vsub.s32 7, %v1275
    %v1277 = vrot.slane %v77, %v1276
    %v1278 = vadd.f32 %v1272, %v1277
    %v1279 = vadd.f32 %v1273, %v1277
    %v1280 = vld [vmem:[%s1] sm:$0xff]
    %v1281 = vld [vmem:[%s1 + $0x8] sm:$0xff]
    %v1282 = vld [vmem:[%s4] sm:$0xf]
    %v1283 = vld [vmem:[%s4 + $0x4] sm:$0xf]
    %v1284 = vld [vmem:[%s4 + $0x8] sm:$0xf]
    %v1285 = vld [vmem:[%s4 + $0xc] sm:$0xf]
    %v1286 = vpack.c.bf16 %v1279, %v1278
    %v1287 = vlaneseq
    %v1288 = vshrl.u32 %v1287, 7
    %v1289 = vsub.s32 1, %v1288
    %v1290 = vrot.slane %v77, %v1289
    %v1295 = vunpack.c.l.b16 %v1282
    %v1296 = vunpack.c.l.b16 %v1283
    %v1297 = vunpack.c.l.b16 %v1284
    %v1298 = vunpack.c.l.b16 %v1285
    %v1299 = vpack.c.b16 %v1296, %v1295
    %v1300 = vpack.c.b16 %v1298, %v1297
    %v1304 = vsel %vm100, %v1286, 0
    %1306 = vmatprep.subr.bf16.mxu0 0
    %1307 = vmatpush1.bf16.msra.mxu0 0
    %1308 = vmatprep.subr.bf16.mxu0 0
    %1309 = vmatpush1.bf16.msra.mxu0 0
    %1310 = vmatprep.subr.bf16.mxu0 0
    %1311 = vmatpush1.bf16.msra.mxu0 0
    %1312 = vmatprep.subr.bf16.mxu0 0
    %1313 = vmatpush1.bf16.msra.mxu0 0
    %1314 = vmatprep.subr.bf16.mxu0 0
    %1315 = vmatpush1.bf16.msra.mxu0 0
    %1316 = vmatprep.subr.bf16.mxu0 0
    %1317 = vmatpush1.bf16.msra.mxu0 0
    %1318 = vmatprep.subr.bf16.mxu0 0
    %1319 = vmatpush1.bf16.msra.mxu0 %v1300
    %1320 = vmatprep.subr.bf16.mxu0 0
    %1321 = vmatpush1.bf16.msra.mxu0 %v1299
    %1322 = vmatprep.subr.bf16.mxu0 0
    %1323 = vmatpush2.bf16.msra.mxu0 0
    %1324 = vmatprep.subr.bf16.mxu0 0
    %1325 = vmatpush2.bf16.msra.mxu0 0
    %1326 = vmatprep.subr.bf16.mxu0 0
    %1327 = vmatpush2.bf16.msra.mxu0 0
    %1328 = vmatprep.subr.bf16.mxu0 0
    %1329 = vmatpush2.bf16.msra.mxu0 0
    %1330 = vmatprep.subr.bf16.mxu0 0
    %1331 = vmatpush2.bf16.msra.mxu0 0
    %1332 = vmatprep.subr.bf16.mxu0 0
    %1333 = vmatpush2.bf16.msra.mxu0 0
    %1334 = vmatprep.subr.bf16.mxu0 0
    %1335 = vmatpush2.bf16.msra.mxu0 0
    %1336 = vmatprep.subr.bf16.mxu0 0
    %1337 = vmatpush2.bf16.msra.mxu0 0
    %1338 = vmatprep.mubr.bf16.mxu0 0
    %1339 = vmatmul.mubr.bf16.gmra.mxu0 %v1304
    %v1340 = vpop.f32.mrf.mxu0
    %v1341 = vadd.f32 %v1290, %v1340
    %v1342 = vpop.f32.mrf.mxu0
    %v1343 = vpop.f32.mrf.mxu0
    %v1344 = vadd.f32 %v1290, %v1343
    %v1345 = vpop.f32.mrf.mxu0
    %1346 = vdwg.mxu0
    %v1347 = vpack.c.bf16 %v1281, %v1280
    %1348 = vrot.lane.b32.xlu0 %v1299, 96
    %v1349 = vpop.permute.xlu0 %1348
    %1350 = vrot.lane.b32.xlu0 %v1300, 96
    %v1351 = vpop.permute.xlu0 %1350
    %1355 = vrot.lane.b32.xlu0 %v1290, 96
    %v1356 = vpop.permute.xlu0 %1355
    %v1359 = vsel %vm100, %v1347, 0
    %1361 = vmatprep.subr.bf16.mxu0 0
    %1362 = vmatpush1.bf16.msra.mxu0 0
    %1363 = vmatprep.subr.bf16.mxu0 0
    %1364 = vmatpush1.bf16.msra.mxu0 0
    %1365 = vmatprep.subr.bf16.mxu0 0
    %1366 = vmatpush1.bf16.msra.mxu0 0
    %1367 = vmatprep.subr.bf16.mxu0 0
    %1368 = vmatpush1.bf16.msra.mxu0 0
    %1369 = vmatprep.subr.bf16.mxu0 0
    %1370 = vmatpush1.bf16.msra.mxu0 0
    %1371 = vmatprep.subr.bf16.mxu0 0
    %1372 = vmatpush1.bf16.msra.mxu0 0
    %1373 = vmatprep.subr.bf16.mxu0 0
    %1374 = vmatpush1.bf16.msra.mxu0 %v1351
    %1375 = vmatprep.subr.bf16.mxu0 0
    %1376 = vmatpush1.bf16.msra.mxu0 %v1349
    %1377 = vmatprep.subr.bf16.mxu0 0
    %1378 = vmatpush2.bf16.msra.mxu0 0
    %1379 = vmatprep.subr.bf16.mxu0 0
    %1380 = vmatpush2.bf16.msra.mxu0 0
    %1381 = vmatprep.subr.bf16.mxu0 0
    %1382 = vmatpush2.bf16.msra.mxu0 0
    %1383 = vmatprep.subr.bf16.mxu0 0
    %1384 = vmatpush2.bf16.msra.mxu0 0
    %1385 = vmatprep.subr.bf16.mxu0 0
    %1386 = vmatpush2.bf16.msra.mxu0 0
    %1387 = vmatprep.subr.bf16.mxu0 0
    %1388 = vmatpush2.bf16.msra.mxu0 0
    %1389 = vmatprep.subr.bf16.mxu0 0
    %1390 = vmatpush2.bf16.msra.mxu0 0
    %1391 = vmatprep.subr.bf16.mxu0 0
    %1392 = vmatpush2.bf16.msra.mxu0 0
    %1393 = vmatprep.mubr.bf16.mxu0 0
    %1394 = vmatmul.mubr.bf16.gmra.mxu0 %v1359
    %v1395 = vpop.f32.mrf.mxu0
    %v1396 = vadd.f32 %v1356, %v1395
    %v1397 = vpop.f32.mrf.mxu0
    %v1398 = vpop.f32.mrf.mxu0
    %v1399 = vadd.f32 %v1356, %v1398
    %v1400 = vpop.f32.mrf.mxu0
    %1401 = vdwg.mxu0
    %v1402 = vld [vmem:[#allocation2] sm:$0xf]
    %v1403 = vld [vmem:[#allocation2 + $0x4] sm:$0xf]
    %v1404 = vld [vmem:[#allocation2 + $0x8] sm:$0xf]
    %v1405 = vld [vmem:[#allocation2 + $0xc] sm:$0xf]
    %v1406 = vpack.c.bf16 %v1341, %v1341
    %v1407 = vpack.c.bf16 %v1344, %v1344
    %v1408 = vpack.c.bf16 %v1396, %v1396
    %v1409 = vpack.c.bf16 %v1399, %v1399
    %v1411 = vsel %vm160, %v1406, 0
    %v1414 = vsel %vm160, %v1408, 0
    %1416 = vmatprep.subr.bf16.mxu0 0
    %1417 = vmatpush1.bf16.xpose.msra.mxu0 0
    %1418 = vmatprep.subr.bf16.mxu0 0
    %1419 = vmatpush1.bf16.xpose.msra.mxu0 0
    %1420 = vmatprep.subr.bf16.mxu0 0
    %1421 = vmatpush1.bf16.xpose.msra.mxu0 0
    %1422 = vmatprep.subr.bf16.mxu0 0
    %1423 = vmatpush1.bf16.xpose.msra.mxu0 0
    %1424 = vmatprep.subr.bf16.mxu0 0
    %1425 = vmatpush1.bf16.xpose.msra.mxu0 0
    %1426 = vmatprep.subr.bf16.mxu0 0
    %1427 = vmatpush1.bf16.xpose.msra.mxu0 0
    %1428 = vmatprep.subr.bf16.mxu0 0
    %1429 = vmatpush1.bf16.xpose.msra.mxu0 0
    %1430 = vmatprep.subr.bf16.mxu0 0
    %1431 = vmatpush1.bf16.xpose.msra.mxu0 %v1414
    %1432 = vmatprep.subr.bf16.mxu0 0
    %1433 = vmatpush2.bf16.xpose.msra.mxu0 0
    %1434 = vmatprep.subr.bf16.mxu0 0
    %1435 = vmatpush2.bf16.xpose.msra.mxu0 0
    %1436 = vmatprep.subr.bf16.mxu0 0
    %1437 = vmatpush2.bf16.xpose.msra.mxu0 0
    %1438 = vmatprep.subr.bf16.mxu0 0
    %1439 = vmatpush2.bf16.xpose.msra.mxu0 0
    %1440 = vmatprep.subr.bf16.mxu0 0
    %1441 = vmatpush2.bf16.xpose.msra.mxu0 0
    %1442 = vmatprep.subr.bf16.mxu0 0
    %1443 = vmatpush2.bf16.xpose.msra.mxu0 0
    %1444 = vmatprep.subr.bf16.mxu0 0
    %1445 = vmatpush2.bf16.xpose.msra.mxu0 0
    %1446 = vmatprep.subr.bf16.mxu0 0
    %1447 = vmatpush2.bf16.xpose.msra.mxu0 0
    %1448 = vmatprep.mubr.bf16.mxu0 0
    %1449 = vmatmul.mubr.bf16.gmra.mxu0 %v1411
    %v1450 = vpop.f32.mrf.mxu0
    %v1451 = vadd.f32 %v150, %v1450
    %v1452 = vpop.f32.mrf.mxu0
    %v1453 = vpop.f32.mrf.mxu0
    %v1454 = vpop.f32.mrf.mxu0
    %1455 = vdwg.mxu0
    %v1457 = vsel %vm160, %v1407, 0
    %v1460 = vsel %vm160, %v1409, 0
    %1462 = vmatprep.subr.bf16.mxu0 0
    %1463 = vmatpush1.bf16.xpose.msra.mxu0 0
    %1464 = vmatprep.subr.bf16.mxu0 0
    %1465 = vmatpush1.bf16.xpose.msra.mxu0 0
    %1466 = vmatprep.subr.bf16.mxu0 0
    %1467 = vmatpush1.bf16.xpose.msra.mxu0 0
    %1468 = vmatprep.subr.bf16.mxu0 0
    %1469 = vmatpush1.bf16.xpose.msra.mxu0 0
    %1470 = vmatprep.subr.bf16.mxu0 0
    %1471 = vmatpush1.bf16.xpose.msra.mxu0 0
    %1472 = vmatprep.subr.bf16.mxu0 0
    %1473 = vmatpush1.bf16.xpose.msra.mxu0 0
    %1474 = vmatprep.subr.bf16.mxu0 0
    %1475 = vmatpush1.bf16.xpose.msra.mxu0 0
    %1476 = vmatprep.subr.bf16.mxu0 0
    %1477 = vmatpush1.bf16.xpose.msra.mxu0 %v1460
    %1478 = vmatprep.subr.bf16.mxu0 0
    %1479 = vmatpush2.bf16.xpose.msra.mxu0 0
    %1480 = vmatprep.subr.bf16.mxu0 0
    %1481 = vmatpush2.bf16.xpose.msra.mxu0 0
    %1482 = vmatprep.subr.bf16.mxu0 0
    %1483 = vmatpush2.bf16.xpose.msra.mxu0 0
    %1484 = vmatprep.subr.bf16.mxu0 0
    %1485 = vmatpush2.bf16.xpose.msra.mxu0 0
    %1486 = vmatprep.subr.bf16.mxu0 0
    %1487 = vmatpush2.bf16.xpose.msra.mxu0 0
    %1488 = vmatprep.subr.bf16.mxu0 0
    %1489 = vmatpush2.bf16.xpose.msra.mxu0 0
    %1490 = vmatprep.subr.bf16.mxu0 0
    %1491 = vmatpush2.bf16.xpose.msra.mxu0 0
    %1492 = vmatprep.subr.bf16.mxu0 0
    %1493 = vmatpush2.bf16.xpose.msra.mxu0 0
    %1494 = vmatprep.mubr.bf16.mxu0 0
    %1495 = vmatmul.mubr.bf16.gmra.mxu0 %v1457
    %v1496 = vpop.f32.mrf.mxu0
    %v1497 = vadd.f32 %v150, %v1496
    %v1498 = vpop.f32.mrf.mxu0
    %v1499 = vpop.f32.mrf.mxu0
    %v1500 = vpop.f32.mrf.mxu0
    %1501 = vdwg.mxu0
    %v1502 = vsel %vm160, %v1451, -inf
    %1503 = vmax.xlane.f32.xlu0 %v1502
    %v1504 = vpop.xlane.xlu0 %1503
    %v1505 = vsel %vm160, %v1497, -inf
    %1506 = vmax.xlane.f32.xlu0 %v1505
    %v1507 = vpop.xlane.xlu0 %1506
    %v1508 = vsub.f32 %v1451, %v1504
    %v1509 = vsub.f32 %v1497, %v1507
    %v1510 = vmul.f32 %v1508, 1.442695
    %v1511 = vpow.pop %v1510
    %v1512 = vmul.f32 %v1509, 1.442695
    %v1513 = vpow.pop %v1512
    %v1514 = vsel %vm160, %v1511, 0.0
    %1515 = vadd.xlane.f32.xlu0 %v1514
    %v1516 = vpop.xlane.xlu0 %1515
    %v1517 = vsel %vm160, %v1513, 0.0
    %1518 = vadd.xlane.f32.xlu0 %v1517
    %v1519 = vpop.xlane.xlu0 %1518
    %v1520 = vrcp.pop %v1516
    %v1521 = vrcp.pop %v1519
    %v1522 = vmul.f32 %v1511, %v1520
    %v1523 = vmul.f32 %v1513, %v1521
    %v1524 = vpack.c.bf16 %v1522, %v1522
    %v1525 = vpack.c.bf16 %v1523, %v1523
    %1527 = vrot.lane.b32.xlu0 %v1408, 96
    %v1528 = vpop.permute.xlu0 %1527
    %v1530 = vsel %vm160, %v1524, 0
    %v1533 = vsel %vm285, %v1528, 0
    %1535 = vmatprep.subr.bf16.mxu0 0
    %1536 = vmatpush1.bf16.msra.mxu0 0
    %1537 = vmatprep.subr.bf16.mxu0 0
    %1538 = vmatpush1.bf16.msra.mxu0 0
    %1539 = vmatprep.subr.bf16.mxu0 0
    %1540 = vmatpush1.bf16.msra.mxu0 0
    %1541 = vmatprep.subr.bf16.mxu0 0
    %1542 = vmatpush1.bf16.msra.mxu0 0
    %1543 = vmatprep.subr.bf16.mxu0 0
    %1544 = vmatpush1.bf16.msra.mxu0 0
    %1545 = vmatprep.subr.bf16.mxu0 0
    %1546 = vmatpush1.bf16.msra.mxu0 0
    %1547 = vmatprep.subr.bf16.mxu0 0
    %1548 = vmatpush1.bf16.msra.mxu0 0
    %1549 = vmatprep.subr.bf16.mxu0 0
    %1550 = vmatpush1.bf16.msra.mxu0 %v1533
    %1551 = vmatprep.subr.bf16.mxu0 0
    %1552 = vmatpush2.bf16.msra.mxu0 0
    %1553 = vmatprep.subr.bf16.mxu0 0
    %1554 = vmatpush2.bf16.msra.mxu0 0
    %1555 = vmatprep.subr.bf16.mxu0 0
    %1556 = vmatpush2.bf16.msra.mxu0 0
    %1557 = vmatprep.subr.bf16.mxu0 0
    %1558 = vmatpush2.bf16.msra.mxu0 0
    %1559 = vmatprep.subr.bf16.mxu0 0
    %1560 = vmatpush2.bf16.msra.mxu0 0
    %1561 = vmatprep.subr.bf16.mxu0 0
    %1562 = vmatpush2.bf16.msra.mxu0 0
    %1563 = vmatprep.subr.bf16.mxu0 0
    %1564 = vmatpush2.bf16.msra.mxu0 0
    %1565 = vmatprep.subr.bf16.mxu0 0
    %1566 = vmatpush2.bf16.msra.mxu0 0
    %1567 = vmatprep.mubr.bf16.mxu0 0
    %1568 = vmatmul.mubr.bf16.gmra.mxu0 %v1530
    %v1569 = vpop.f32.mrf.mxu0
    %v1570 = vadd.f32 0.0, %v1569
    %v1571 = vpop.f32.mrf.mxu0
    %v1572 = vpop.f32.mrf.mxu0
    %v1573 = vpop.f32.mrf.mxu0
    %1574 = vdwg.mxu0
    %1576 = vrot.lane.b32.xlu0 %v1409, 96
    %v1577 = vpop.permute.xlu0 %1576
    %v1579 = vsel %vm160, %v1525, 0
    %v1582 = vsel %vm285, %v1577, 0
    %1584 = vmatprep.subr.bf16.mxu0 0
    %1585 = vmatpush1.bf16.msra.mxu0 0
    %1586 = vmatprep.subr.bf16.mxu0 0
    %1587 = vmatpush1.bf16.msra.mxu0 0
    %1588 = vmatprep.subr.bf16.mxu0 0
    %1589 = vmatpush1.bf16.msra.mxu0 0
    %1590 = vmatprep.subr.bf16.mxu0 0
    %1591 = vmatpush1.bf16.msra.mxu0 0
    %1592 = vmatprep.subr.bf16.mxu0 0
    %1593 = vmatpush1.bf16.msra.mxu0 0
    %1594 = vmatprep.subr.bf16.mxu0 0
    %1595 = vmatpush1.bf16.msra.mxu0 0
    %1596 = vmatprep.subr.bf16.mxu0 0
    %1597 = vmatpush1.bf16.msra.mxu0 0
    %1598 = vmatprep.subr.bf16.mxu0 0
    %1599 = vmatpush1.bf16.msra.mxu0 %v1582
    %1600 = vmatprep.subr.bf16.mxu0 0
    %1601 = vmatpush2.bf16.msra.mxu0 0
    %1602 = vmatprep.subr.bf16.mxu0 0
    %1603 = vmatpush2.bf16.msra.mxu0 0
    %1604 = vmatprep.subr.bf16.mxu0 0
    %1605 = vmatpush2.bf16.msra.mxu0 0
    %1606 = vmatprep.subr.bf16.mxu0 0
    %1607 = vmatpush2.bf16.msra.mxu0 0
    %1608 = vmatprep.subr.bf16.mxu0 0
    %1609 = vmatpush2.bf16.msra.mxu0 0
    %1610 = vmatprep.subr.bf16.mxu0 0
    %1611 = vmatpush2.bf16.msra.mxu0 0
    %1612 = vmatprep.subr.bf16.mxu0 0
    %1613 = vmatpush2.bf16.msra.mxu0 0
    %1614 = vmatprep.subr.bf16.mxu0 0
    %1615 = vmatpush2.bf16.msra.mxu0 0
    %1616 = vmatprep.mubr.bf16.mxu0 0
    %1617 = vmatmul.mubr.bf16.gmra.mxu0 %v1579
    %v1618 = vpop.f32.mrf.mxu0
    %v1619 = vadd.f32 0.0, %v1618
    %v1620 = vpop.f32.mrf.mxu0
    %v1621 = vpop.f32.mrf.mxu0
    %v1622 = vpop.f32.mrf.mxu0
    %1623 = vdwg.mxu0
    %v1624 = vpack.c.bf16 %v1619, %v1570
    %1626 = vrot.lane.b32.xlu0 %v1406, 120
    %v1627 = vpop.permute.xlu0 %1626
    %1628 = vrot.lane.b32.xlu0 %v1408, 120
    %v1629 = vpop.permute.xlu0 %1628
    %v1631 = vsel %vm160, %v1627, 0
    %v1634 = vsel %vm160, %v1629, 0
    %1636 = vmatprep.subr.bf16.mxu0 0
    %1637 = vmatpush1.bf16.xpose.msra.mxu0 0
    %1638 = vmatprep.subr.bf16.mxu0 0
    %1639 = vmatpush1.bf16.xpose.msra.mxu0 0
    %1640 = vmatprep.subr.bf16.mxu0 0
    %1641 = vmatpush1.bf16.xpose.msra.mxu0 0
    %1642 = vmatprep.subr.bf16.mxu0 0
    %1643 = vmatpush1.bf16.xpose.msra.mxu0 0
    %1644 = vmatprep.subr.bf16.mxu0 0
    %1645 = vmatpush1.bf16.xpose.msra.mxu0 0
    %1646 = vmatprep.subr.bf16.mxu0 0
    %1647 = vmatpush1.bf16.xpose.msra.mxu0 0
    %1648 = vmatprep.subr.bf16.mxu0 0
    %1649 = vmatpush1.bf16.xpose.msra.mxu0 0
    %1650 = vmatprep.subr.bf16.mxu0 0
    %1651 = vmatpush1.bf16.xpose.msra.mxu0 %v1634
    %1652 = vmatprep.subr.bf16.mxu0 0
    %1653 = vmatpush2.bf16.xpose.msra.mxu0 0
    %1654 = vmatprep.subr.bf16.mxu0 0
    %1655 = vmatpush2.bf16.xpose.msra.mxu0 0
    %1656 = vmatprep.subr.bf16.mxu0 0
    %1657 = vmatpush2.bf16.xpose.msra.mxu0 0
    %1658 = vmatprep.subr.bf16.mxu0 0
    %1659 = vmatpush2.bf16.xpose.msra.mxu0 0
    %1660 = vmatprep.subr.bf16.mxu0 0
    %1661 = vmatpush2.bf16.xpose.msra.mxu0 0
    %1662 = vmatprep.subr.bf16.mxu0 0
    %1663 = vmatpush2.bf16.xpose.msra.mxu0 0
    %1664 = vmatprep.subr.bf16.mxu0 0
    %1665 = vmatpush2.bf16.xpose.msra.mxu0 0
    %1666 = vmatprep.subr.bf16.mxu0 0
    %1667 = vmatpush2.bf16.xpose.msra.mxu0 0
    %1668 = vmatprep.mubr.bf16.mxu0 0
    %1669 = vmatmul.mubr.bf16.gmra.mxu0 %v1631
    %v1670 = vpop.f32.mrf.mxu0
    %v1671 = vadd.f32 %v150, %v1670
    %v1672 = vpop.f32.mrf.mxu0
    %v1673 = vpop.f32.mrf.mxu0
    %v1674 = vpop.f32.mrf.mxu0
    %1675 = vdwg.mxu0
    %1677 = vrot.lane.b32.xlu0 %v1407, 120
    %v1678 = vpop.permute.xlu0 %1677
    %1679 = vrot.lane.b32.xlu0 %v1409, 120
    %v1680 = vpop.permute.xlu0 %1679
    %v1682 = vsel %vm160, %v1678, 0
    %v1685 = vsel %vm160, %v1680, 0
    %1687 = vmatprep.subr.bf16.mxu0 0
    %1688 = vmatpush1.bf16.xpose.msra.mxu0 0
    %1689 = vmatprep.subr.bf16.mxu0 0
    %1690 = vmatpush1.bf16.xpose.msra.mxu0 0
    %1691 = vmatprep.subr.bf16.mxu0 0
    %1692 = vmatpush1.bf16.xpose.msra.mxu0 0
    %1693 = vmatprep.subr.bf16.mxu0 0
    %1694 = vmatpush1.bf16.xpose.msra.mxu0 0
    %1695 = vmatprep.subr.bf16.mxu0 0
    %1696 = vmatpush1.bf16.xpose.msra.mxu0 0
    %1697 = vmatprep.subr.bf16.mxu0 0
    %1698 = vmatpush1.bf16.xpose.msra.mxu0 0
    %1699 = vmatprep.subr.bf16.mxu0 0
    %1700 = vmatpush1.bf16.xpose.msra.mxu0 0
    %1701 = vmatprep.subr.bf16.mxu0 0
    %1702 = vmatpush1.bf16.xpose.msra.mxu0 %v1685
    %1703 = vmatprep.subr.bf16.mxu0 0
    %1704 = vmatpush2.bf16.xpose.msra.mxu0 0
    %1705 = vmatprep.subr.bf16.mxu0 0
    %1706 = vmatpush2.bf16.xpose.msra.mxu0 0
    %1707 = vmatprep.subr.bf16.mxu0 0
    %1708 = vmatpush2.bf16.xpose.msra.mxu0 0
    %1709 = vmatprep.subr.bf16.mxu0 0
    %1710 = vmatpush2.bf16.xpose.msra.mxu0 0
    %1711 = vmatprep.subr.bf16.mxu0 0
    %1712 = vmatpush2.bf16.xpose.msra.mxu0 0
    %1713 = vmatprep.subr.bf16.mxu0 0
    %1714 = vmatpush2.bf16.xpose.msra.mxu0 0
    %1715 = vmatprep.subr.bf16.mxu0 0
    %1716 = vmatpush2.bf16.xpose.msra.mxu0 0
    %1717 = vmatprep.subr.bf16.mxu0 0
    %1718 = vmatpush2.bf16.xpose.msra.mxu0 0
    %1719 = vmatprep.mubr.bf16.mxu0 0
    %1720 = vmatmul.mubr.bf16.gmra.mxu0 %v1682
    %v1721 = vpop.f32.mrf.mxu0
    %v1722 = vadd.f32 %v150, %v1721
    %v1723 = vpop.f32.mrf.mxu0
    %v1724 = vpop.f32.mrf.mxu0
    %v1725 = vpop.f32.mrf.mxu0
    %1726 = vdwg.mxu0
    %v1727 = vsel %vm160, %v1671, -inf
    %1728 = vmax.xlane.f32.xlu0 %v1727
    %v1729 = vpop.xlane.xlu0 %1728
    %v1730 = vsel %vm160, %v1722, -inf
    %1731 = vmax.xlane.f32.xlu0 %v1730
    %v1732 = vpop.xlane.xlu0 %1731
    %v1733 = vsub.f32 %v1671, %v1729
    %v1734 = vsub.f32 %v1722, %v1732
    %v1735 = vmul.f32 %v1733, 1.442695
    %v1736 = vpow.pop %v1735
    %v1737 = vmul.f32 %v1734, 1.442695
    %v1738 = vpow.pop %v1737
    %v1739 = vsel %vm160, %v1736, 0.0
    %1740 = vadd.xlane.f32.xlu0 %v1739
    %v1741 = vpop.xlane.xlu0 %1740
    %v1742 = vsel %vm160, %v1738, 0.0
    %1743 = vadd.xlane.f32.xlu0 %v1742
    %v1744 = vpop.xlane.xlu0 %1743
    %v1745 = vrcp.pop %v1741
    %v1746 = vrcp.pop %v1744
    %v1747 = vmul.f32 %v1736, %v1745
    %v1748 = vmul.f32 %v1738, %v1746
    %v1749 = vpack.c.bf16 %v1747, %v1747
    %v1750 = vpack.c.bf16 %v1748, %v1748
    %1751 = vrot.lane.b32.xlu0 %v1408, 88
    %v1752 = vpop.permute.xlu0 %1751
    %v1754 = vsel %vm160, %v1749, 0
    %v1757 = vsel %vm285, %v1752, 0
    %1759 = vmatprep.subr.bf16.mxu0 0
    %1760 = vmatpush1.bf16.msra.mxu0 0
    %1761 = vmatprep.subr.bf16.mxu0 0
    %1762 = vmatpush1.bf16.msra.mxu0 0
    %1763 = vmatprep.subr.bf16.mxu0 0
    %1764 = vmatpush1.bf16.msra.mxu0 0
    %1765 = vmatprep.subr.bf16.mxu0 0
    %1766 = vmatpush1.bf16.msra.mxu0 0
    %1767 = vmatprep.subr.bf16.mxu0 0
    %1768 = vmatpush1.bf16.msra.mxu0 0
    %1769 = vmatprep.subr.bf16.mxu0 0
    %1770 = vmatpush1.bf16.msra.mxu0 0
    %1771 = vmatprep.subr.bf16.mxu0 0
    %1772 = vmatpush1.bf16.msra.mxu0 0
    %1773 = vmatprep.subr.bf16.mxu0 0
    %1774 = vmatpush1.bf16.msra.mxu0 %v1757
    %1775 = vmatprep.subr.bf16.mxu0 0
    %1776 = vmatpush2.bf16.msra.mxu0 0
    %1777 = vmatprep.subr.bf16.mxu0 0
    %1778 = vmatpush2.bf16.msra.mxu0 0
    %1779 = vmatprep.subr.bf16.mxu0 0
    %1780 = vmatpush2.bf16.msra.mxu0 0
    %1781 = vmatprep.subr.bf16.mxu0 0
    %1782 = vmatpush2.bf16.msra.mxu0 0
    %1783 = vmatprep.subr.bf16.mxu0 0
    %1784 = vmatpush2.bf16.msra.mxu0 0
    %1785 = vmatprep.subr.bf16.mxu0 0
    %1786 = vmatpush2.bf16.msra.mxu0 0
    %1787 = vmatprep.subr.bf16.mxu0 0
    %1788 = vmatpush2.bf16.msra.mxu0 0
    %1789 = vmatprep.subr.bf16.mxu0 0
    %1790 = vmatpush2.bf16.msra.mxu0 0
    %1791 = vmatprep.mubr.bf16.mxu0 0
    %1792 = vmatmul.mubr.bf16.gmra.mxu0 %v1754
    %v1793 = vpop.f32.mrf.mxu0
    %v1794 = vadd.f32 0.0, %v1793
    %v1795 = vpop.f32.mrf.mxu0
    %v1796 = vpop.f32.mrf.mxu0
    %v1797 = vpop.f32.mrf.mxu0
    %1798 = vdwg.mxu0
    %1799 = vrot.lane.b32.xlu0 %v1409, 88
    %v1800 = vpop.permute.xlu0 %1799
    %v1802 = vsel %vm160, %v1750, 0
    %v1805 = vsel %vm285, %v1800, 0
    %1807 = vmatprep.subr.bf16.mxu0 0
    %1808 = vmatpush1.bf16.msra.mxu0 0
    %1809 = vmatprep.subr.bf16.mxu0 0
    %1810 = vmatpush1.bf16.msra.mxu0 0
    %1811 = vmatprep.subr.bf16.mxu0 0
    %1812 = vmatpush1.bf16.msra.mxu0 0
    %1813 = vmatprep.subr.bf16.mxu0 0
    %1814 = vmatpush1.bf16.msra.mxu0 0
    %1815 = vmatprep.subr.bf16.mxu0 0
    %1816 = vmatpush1.bf16.msra.mxu0 0
    %1817 = vmatprep.subr.bf16.mxu0 0
    %1818 = vmatpush1.bf16.msra.mxu0 0
    %1819 = vmatprep.subr.bf16.mxu0 0
    %1820 = vmatpush1.bf16.msra.mxu0 0
    %1821 = vmatprep.subr.bf16.mxu0 0
    %1822 = vmatpush1.bf16.msra.mxu0 %v1805
    %1823 = vmatprep.subr.bf16.mxu0 0
    %1824 = vmatpush2.bf16.msra.mxu0 0
    %1825 = vmatprep.subr.bf16.mxu0 0
    %1826 = vmatpush2.bf16.msra.mxu0 0
    %1827 = vmatprep.subr.bf16.mxu0 0
    %1828 = vmatpush2.bf16.msra.mxu0 0
    %1829 = vmatprep.subr.bf16.mxu0 0
    %1830 = vmatpush2.bf16.msra.mxu0 0
    %1831 = vmatprep.subr.bf16.mxu0 0
    %1832 = vmatpush2.bf16.msra.mxu0 0
    %1833 = vmatprep.subr.bf16.mxu0 0
    %1834 = vmatpush2.bf16.msra.mxu0 0
    %1835 = vmatprep.subr.bf16.mxu0 0
    %1836 = vmatpush2.bf16.msra.mxu0 0
    %1837 = vmatprep.subr.bf16.mxu0 0
    %1838 = vmatpush2.bf16.msra.mxu0 0
    %1839 = vmatprep.mubr.bf16.mxu0 0
    %1840 = vmatmul.mubr.bf16.gmra.mxu0 %v1802
    %v1841 = vpop.f32.mrf.mxu0
    %v1842 = vadd.f32 0.0, %v1841
    %v1843 = vpop.f32.mrf.mxu0
    %v1844 = vpop.f32.mrf.mxu0
    %v1845 = vpop.f32.mrf.mxu0
    %1846 = vdwg.mxu0
    %v1847 = vpack.c.bf16 %v1842, %v1794
    %v1849 = vsel %vm160, %v1847, 0
    %v1852 = vsel %vm285, %v1403, 0
    %1854 = vmatprep.subr.bf16.mxu0 0
    %1855 = vmatpush1.bf16.msra.mxu0 0
    %1856 = vmatprep.subr.bf16.mxu0 0
    %1857 = vmatpush1.bf16.msra.mxu0 0
    %1858 = vmatprep.subr.bf16.mxu0 0
    %1859 = vmatpush1.bf16.msra.mxu0 0
    %1860 = vmatprep.subr.bf16.mxu0 0
    %1861 = vmatpush1.bf16.msra.mxu0 0
    %1862 = vmatprep.subr.bf16.mxu0 0
    %1863 = vmatpush1.bf16.msra.mxu0 0
    %1864 = vmatprep.subr.bf16.mxu0 0
    %1865 = vmatpush1.bf16.msra.mxu0 0
    %1866 = vmatprep.subr.bf16.mxu0 0
    %1867 = vmatpush1.bf16.msra.mxu0 0
    %1868 = vmatprep.subr.bf16.mxu0 0
    %1869 = vmatpush1.bf16.msra.mxu0 %v1852
    %1870 = vmatprep.subr.bf16.mxu0 0
    %1871 = vmatpush2.bf16.msra.mxu0 0
    %1872 = vmatprep.subr.bf16.mxu0 0
    %1873 = vmatpush2.bf16.msra.mxu0 0
    %1874 = vmatprep.subr.bf16.mxu0 0
    %1875 = vmatpush2.bf16.msra.mxu0 0
    %1876 = vmatprep.subr.bf16.mxu0 0
    %1877 = vmatpush2.bf16.msra.mxu0 0
    %1878 = vmatprep.subr.bf16.mxu0 0
    %1879 = vmatpush2.bf16.msra.mxu0 0
    %1880 = vmatprep.subr.bf16.mxu0 0
    %1881 = vmatpush2.bf16.msra.mxu0 0
    %1882 = vmatprep.subr.bf16.mxu0 0
    %1883 = vmatpush2.bf16.msra.mxu0 0
    %1884 = vmatprep.subr.bf16.mxu0 0
    %1885 = vmatpush2.bf16.msra.mxu0 0
    %1886 = vmatprep.mubr.bf16.mxu0 0
    %1887 = vmatmul.mubr.bf16.gmra.mxu0 %v1849
    %v1888 = vpop.f32.mrf.mxu0
    %v1889 = vadd.f32 0.0, %v1888
    %v1890 = vpop.f32.mrf.mxu0
    %v1891 = vpop.f32.mrf.mxu0
    %v1892 = vadd.f32 0.0, %v1891
    %v1893 = vpop.f32.mrf.mxu0
    %1894 = vdwg.mxu0
    %v1896 = vsel %vm160, %v1624, 0
    %v1899 = vsel %vm285, %v1402, 0
    %1901 = vmatprep.subr.bf16.mxu0 0
    %1902 = vmatpush1.bf16.msra.mxu0 0
    %1903 = vmatprep.subr.bf16.mxu0 0
    %1904 = vmatpush1.bf16.msra.mxu0 0
    %1905 = vmatprep.subr.bf16.mxu0 0
    %1906 = vmatpush1.bf16.msra.mxu0 0
    %1907 = vmatprep.subr.bf16.mxu0 0
    %1908 = vmatpush1.bf16.msra.mxu0 0
    %1909 = vmatprep.subr.bf16.mxu0 0
    %1910 = vmatpush1.bf16.msra.mxu0 0
    %1911 = vmatprep.subr.bf16.mxu0 0
    %1912 = vmatpush1.bf16.msra.mxu0 0
    %1913 = vmatprep.subr.bf16.mxu0 0
    %1914 = vmatpush1.bf16.msra.mxu0 0
    %1915 = vmatprep.subr.bf16.mxu0 0
    %1916 = vmatpush1.bf16.msra.mxu0 %v1899
    %1917 = vmatprep.subr.bf16.mxu0 0
    %1918 = vmatpush2.bf16.msra.mxu0 0
    %1919 = vmatprep.subr.bf16.mxu0 0
    %1920 = vmatpush2.bf16.msra.mxu0 0
    %1921 = vmatprep.subr.bf16.mxu0 0
    %1922 = vmatpush2.bf16.msra.mxu0 0
    %1923 = vmatprep.subr.bf16.mxu0 0
    %1924 = vmatpush2.bf16.msra.mxu0 0
    %1925 = vmatprep.subr.bf16.mxu0 0
    %1926 = vmatpush2.bf16.msra.mxu0 0
    %1927 = vmatprep.subr.bf16.mxu0 0
    %1928 = vmatpush2.bf16.msra.mxu0 0
    %1929 = vmatprep.subr.bf16.mxu0 0
    %1930 = vmatpush2.bf16.msra.mxu0 0
    %1931 = vmatprep.subr.bf16.mxu0 0
    %1932 = vmatpush2.bf16.msra.mxu0 0
    %1933 = vmatprep.mubr.bf16.mxu0 0
    %1934 = vmatmul.mubr.bf16.gmra.mxu0 %v1896
    %v1935 = vpop.f32.mrf.mxu0
    %v1936 = vadd.f32 %v1889, %v1935
    %v1937 = vpop.f32.mrf.mxu0
    %v1938 = vpop.f32.mrf.mxu0
    %v1939 = vadd.f32 %v1892, %v1938
    %v1940 = vpop.f32.mrf.mxu0
    %1941 = vdwg.mxu0
    %1942 = vrot.lane.b32.xlu0 %v1406, 112
    %v1943 = vpop.permute.xlu0 %1942
    %1944 = vrot.lane.b32.xlu0 %v1408, 112
    %v1945 = vpop.permute.xlu0 %1944
    %v1947 = vsel %vm160, %v1943, 0
    %v1950 = vsel %vm160, %v1945, 0
    %1952 = vmatprep.subr.bf16.mxu0 0
    %1953 = vmatpush1.bf16.xpose.msra.mxu0 0
    %1954 = vmatprep.subr.bf16.mxu0 0
    %1955 = vmatpush1.bf16.xpose.msra.mxu0 0
    %1956 = vmatprep.subr.bf16.mxu0 0
    %1957 = vmatpush1.bf16.xpose.msra.mxu0 0
    %1958 = vmatprep.subr.bf16.mxu0 0
    %1959 = vmatpush1.bf16.xpose.msra.mxu0 0
    %1960 = vmatprep.subr.bf16.mxu0 0
    %1961 = vmatpush1.bf16.xpose.msra.mxu0 0
    %1962 = vmatprep.subr.bf16.mxu0 0
    %1963 = vmatpush1.bf16.xpose.msra.mxu0 0
    %1964 = vmatprep.subr.bf16.mxu0 0
    %1965 = vmatpush1.bf16.xpose.msra.mxu0 0
    %1966 = vmatprep.subr.bf16.mxu0 0
    %1967 = vmatpush1.bf16.xpose.msra.mxu0 %v1950
    %1968 = vmatprep.subr.bf16.mxu0 0
    %1969 = vmatpush2.bf16.xpose.msra.mxu0 0
    %1970 = vmatprep.subr.bf16.mxu0 0
    %1971 = vmatpush2.bf16.xpose.msra.mxu0 0
    %1972 = vmatprep.subr.bf16.mxu0 0
    %1973 = vmatpush2.bf16.xpose.msra.mxu0 0
    %1974 = vmatprep.subr.bf16.mxu0 0
    %1975 = vmatpush2.bf16.xpose.msra.mxu0 0
    %1976 = vmatprep.subr.bf16.mxu0 0
    %1977 = vmatpush2.bf16.xpose.msra.mxu0 0
    %1978 = vmatprep.subr.bf16.mxu0 0
    %1979 = vmatpush2.bf16.xpose.msra.mxu0 0
    %1980 = vmatprep.subr.bf16.mxu0 0
    %1981 = vmatpush2.bf16.xpose.msra.mxu0 0
    %1982 = vmatprep.subr.bf16.mxu0 0
    %1983 = vmatpush2.bf16.xpose.msra.mxu0 0
    %1984 = vmatprep.mubr.bf16.mxu0 0
    %1985 = vmatmul.mubr.bf16.gmra.mxu0 %v1947
    %v1986 = vpop.f32.mrf.mxu0
    %v1987 = vadd.f32 %v150, %v1986
    %v1988 = vpop.f32.mrf.mxu0
    %v1989 = vpop.f32.mrf.mxu0
    %v1990 = vpop.f32.mrf.mxu0
    %1991 = vdwg.mxu0
    %1992 = vrot.lane.b32.xlu0 %v1407, 112
    %v1993 = vpop.permute.xlu0 %1992
    %1994 = vrot.lane.b32.xlu0 %v1409, 112
    %v1995 = vpop.permute.xlu0 %1994
    %v1997 = vsel %vm160, %v1993, 0
    %v2000 = vsel %vm160, %v1995, 0
    %2002 = vmatprep.subr.bf16.mxu0 0
    %2003 = vmatpush1.bf16.xpose.msra.mxu0 0
    %2004 = vmatprep.subr.bf16.mxu0 0
    %2005 = vmatpush1.bf16.xpose.msra.mxu0 0
    %2006 = vmatprep.subr.bf16.mxu0 0
    %2007 = vmatpush1.bf16.xpose.msra.mxu0 0
    %2008 = vmatprep.subr.bf16.mxu0 0
    %2009 = vmatpush1.bf16.xpose.msra.mxu0 0
    %2010 = vmatprep.subr.bf16.mxu0 0
    %2011 = vmatpush1.bf16.xpose.msra.mxu0 0
    %2012 = vmatprep.subr.bf16.mxu0 0
    %2013 = vmatpush1.bf16.xpose.msra.mxu0 0
    %2014 = vmatprep.subr.bf16.mxu0 0
    %2015 = vmatpush1.bf16.xpose.msra.mxu0 0
    %2016 = vmatprep.subr.bf16.mxu0 0
    %2017 = vmatpush1.bf16.xpose.msra.mxu0 %v2000
    %2018 = vmatprep.subr.bf16.mxu0 0
    %2019 = vmatpush2.bf16.xpose.msra.mxu0 0
    %2020 = vmatprep.subr.bf16.mxu0 0
    %2021 = vmatpush2.bf16.xpose.msra.mxu0 0
    %2022 = vmatprep.subr.bf16.mxu0 0
    %2023 = vmatpush2.bf16.xpose.msra.mxu0 0
    %2024 = vmatprep.subr.bf16.mxu0 0
    %2025 = vmatpush2.bf16.xpose.msra.mxu0 0
    %2026 = vmatprep.subr.bf16.mxu0 0
    %2027 = vmatpush2.bf16.xpose.msra.mxu0 0
    %2028 = vmatprep.subr.bf16.mxu0 0
    %2029 = vmatpush2.bf16.xpose.msra.mxu0 0
    %2030 = vmatprep.subr.bf16.mxu0 0
    %2031 = vmatpush2.bf16.xpose.msra.mxu0 0
    %2032 = vmatprep.subr.bf16.mxu0 0
    %2033 = vmatpush2.bf16.xpose.msra.mxu0 0
    %2034 = vmatprep.mubr.bf16.mxu0 0
    %2035 = vmatmul.mubr.bf16.gmra.mxu0 %v1997
    %v2036 = vpop.f32.mrf.mxu0
    %v2037 = vadd.f32 %v150, %v2036
    %v2038 = vpop.f32.mrf.mxu0
    %v2039 = vpop.f32.mrf.mxu0
    %v2040 = vpop.f32.mrf.mxu0
    %2041 = vdwg.mxu0
    %v2042 = vsel %vm160, %v1987, -inf
    %2043 = vmax.xlane.f32.xlu0 %v2042
    %v2044 = vpop.xlane.xlu0 %2043
    %v2045 = vsel %vm160, %v2037, -inf
    %2046 = vmax.xlane.f32.xlu0 %v2045
    %v2047 = vpop.xlane.xlu0 %2046
    %v2048 = vsub.f32 %v1987, %v2044
    %v2049 = vsub.f32 %v2037, %v2047
    %v2050 = vmul.f32 %v2048, 1.442695
    %v2051 = vpow.pop %v2050
    %v2052 = vmul.f32 %v2049, 1.442695
    %v2053 = vpow.pop %v2052
    %v2054 = vsel %vm160, %v2051, 0.0
    %2055 = vadd.xlane.f32.xlu0 %v2054
    %v2056 = vpop.xlane.xlu0 %2055
    %v2057 = vsel %vm160, %v2053, 0.0
    %2058 = vadd.xlane.f32.xlu0 %v2057
    %v2059 = vpop.xlane.xlu0 %2058
    %v2060 = vrcp.pop %v2056
    %v2061 = vrcp.pop %v2059
    %v2062 = vmul.f32 %v2051, %v2060
    %v2063 = vmul.f32 %v2053, %v2061
    %v2064 = vpack.c.bf16 %v2062, %v2062
    %v2065 = vpack.c.bf16 %v2063, %v2063
    %2066 = vrot.lane.b32.xlu0 %v1408, 80
    %v2067 = vpop.permute.xlu0 %2066
    %v2069 = vsel %vm160, %v2064, 0
    %v2072 = vsel %vm285, %v2067, 0
    %2074 = vmatprep.subr.bf16.mxu0 0
    %2075 = vmatpush1.bf16.msra.mxu0 0
    %2076 = vmatprep.subr.bf16.mxu0 0
    %2077 = vmatpush1.bf16.msra.mxu0 0
    %2078 = vmatprep.subr.bf16.mxu0 0
    %2079 = vmatpush1.bf16.msra.mxu0 0
    %2080 = vmatprep.subr.bf16.mxu0 0
    %2081 = vmatpush1.bf16.msra.mxu0 0
    %2082 = vmatprep.subr.bf16.mxu0 0
    %2083 = vmatpush1.bf16.msra.mxu0 0
    %2084 = vmatprep.subr.bf16.mxu0 0
    %2085 = vmatpush1.bf16.msra.mxu0 0
    %2086 = vmatprep.subr.bf16.mxu0 0
    %2087 = vmatpush1.bf16.msra.mxu0 0
    %2088 = vmatprep.subr.bf16.mxu0 0
    %2089 = vmatpush1.bf16.msra.mxu0 %v2072
    %2090 = vmatprep.subr.bf16.mxu0 0
    %2091 = vmatpush2.bf16.msra.mxu0 0
    %2092 = vmatprep.subr.bf16.mxu0 0
    %2093 = vmatpush2.bf16.msra.mxu0 0
    %2094 = vmatprep.subr.bf16.mxu0 0
    %2095 = vmatpush2.bf16.msra.mxu0 0
    %2096 = vmatprep.subr.bf16.mxu0 0
    %2097 = vmatpush2.bf16.msra.mxu0 0
    %2098 = vmatprep.subr.bf16.mxu0 0
    %2099 = vmatpush2.bf16.msra.mxu0 0
    %2100 = vmatprep.subr.bf16.mxu0 0
    %2101 = vmatpush2.bf16.msra.mxu0 0
    %2102 = vmatprep.subr.bf16.mxu0 0
    %2103 = vmatpush2.bf16.msra.mxu0 0
    %2104 = vmatprep.subr.bf16.mxu0 0
    %2105 = vmatpush2.bf16.msra.mxu0 0
    %2106 = vmatprep.mubr.bf16.mxu0 0
    %2107 = vmatmul.mubr.bf16.gmra.mxu0 %v2069
    %v2108 = vpop.f32.mrf.mxu0
    %v2109 = vadd.f32 0.0, %v2108
    %v2110 = vpop.f32.mrf.mxu0
    %v2111 = vpop.f32.mrf.mxu0
    %v2112 = vpop.f32.mrf.mxu0
    %2113 = vdwg.mxu0
    %2114 = vrot.lane.b32.xlu0 %v1409, 80
    %v2115 = vpop.permute.xlu0 %2114
    %v2117 = vsel %vm160, %v2065, 0
    %v2120 = vsel %vm285, %v2115, 0
    %2122 = vmatprep.subr.bf16.mxu0 0
    %2123 = vmatpush1.bf16.msra.mxu0 0
    %2124 = vmatprep.subr.bf16.mxu0 0
    %2125 = vmatpush1.bf16.msra.mxu0 0
    %2126 = vmatprep.subr.bf16.mxu0 0
    %2127 = vmatpush1.bf16.msra.mxu0 0
    %2128 = vmatprep.subr.bf16.mxu0 0
    %2129 = vmatpush1.bf16.msra.mxu0 0
    %2130 = vmatprep.subr.bf16.mxu0 0
    %2131 = vmatpush1.bf16.msra.mxu0 0
    %2132 = vmatprep.subr.bf16.mxu0 0
    %2133 = vmatpush1.bf16.msra.mxu0 0
    %2134 = vmatprep.subr.bf16.mxu0 0
    %2135 = vmatpush1.bf16.msra.mxu0 0
    %2136 = vmatprep.subr.bf16.mxu0 0
    %2137 = vmatpush1.bf16.msra.mxu0 %v2120
    %2138 = vmatprep.subr.bf16.mxu0 0
    %2139 = vmatpush2.bf16.msra.mxu0 0
    %2140 = vmatprep.subr.bf16.mxu0 0
    %2141 = vmatpush2.bf16.msra.mxu0 0
    %2142 = vmatprep.subr.bf16.mxu0 0
    %2143 = vmatpush2.bf16.msra.mxu0 0
    %2144 = vmatprep.subr.bf16.mxu0 0
    %2145 = vmatpush2.bf16.msra.mxu0 0
    %2146 = vmatprep.subr.bf16.mxu0 0
    %2147 = vmatpush2.bf16.msra.mxu0 0
    %2148 = vmatprep.subr.bf16.mxu0 0
    %2149 = vmatpush2.bf16.msra.mxu0 0
    %2150 = vmatprep.subr.bf16.mxu0 0
    %2151 = vmatpush2.bf16.msra.mxu0 0
    %2152 = vmatprep.subr.bf16.mxu0 0
    %2153 = vmatpush2.bf16.msra.mxu0 0
    %2154 = vmatprep.mubr.bf16.mxu0 0
    %2155 = vmatmul.mubr.bf16.gmra.mxu0 %v2117
    %v2156 = vpop.f32.mrf.mxu0
    %v2157 = vadd.f32 0.0, %v2156
    %v2158 = vpop.f32.mrf.mxu0
    %v2159 = vpop.f32.mrf.mxu0
    %v2160 = vpop.f32.mrf.mxu0
    %2161 = vdwg.mxu0
    %v2162 = vpack.c.bf16 %v2157, %v2109
    %v2164 = vsel %vm160, %v2162, 0
    %v2167 = vsel %vm285, %v1404, 0
    %2169 = vmatprep.subr.bf16.mxu0 0
    %2170 = vmatpush1.bf16.msra.mxu0 0
    %2171 = vmatprep.subr.bf16.mxu0 0
    %2172 = vmatpush1.bf16.msra.mxu0 0
    %2173 = vmatprep.subr.bf16.mxu0 0
    %2174 = vmatpush1.bf16.msra.mxu0 0
    %2175 = vmatprep.subr.bf16.mxu0 0
    %2176 = vmatpush1.bf16.msra.mxu0 0
    %2177 = vmatprep.subr.bf16.mxu0 0
    %2178 = vmatpush1.bf16.msra.mxu0 0
    %2179 = vmatprep.subr.bf16.mxu0 0
    %2180 = vmatpush1.bf16.msra.mxu0 0
    %2181 = vmatprep.subr.bf16.mxu0 0
    %2182 = vmatpush1.bf16.msra.mxu0 0
    %2183 = vmatprep.subr.bf16.mxu0 0
    %2184 = vmatpush1.bf16.msra.mxu0 %v2167
    %2185 = vmatprep.subr.bf16.mxu0 0
    %2186 = vmatpush2.bf16.msra.mxu0 0
    %2187 = vmatprep.subr.bf16.mxu0 0
    %2188 = vmatpush2.bf16.msra.mxu0 0
    %2189 = vmatprep.subr.bf16.mxu0 0
    %2190 = vmatpush2.bf16.msra.mxu0 0
    %2191 = vmatprep.subr.bf16.mxu0 0
    %2192 = vmatpush2.bf16.msra.mxu0 0
    %2193 = vmatprep.subr.bf16.mxu0 0
    %2194 = vmatpush2.bf16.msra.mxu0 0
    %2195 = vmatprep.subr.bf16.mxu0 0
    %2196 = vmatpush2.bf16.msra.mxu0 0
    %2197 = vmatprep.subr.bf16.mxu0 0
    %2198 = vmatpush2.bf16.msra.mxu0 0
    %2199 = vmatprep.subr.bf16.mxu0 0
    %2200 = vmatpush2.bf16.msra.mxu0 0
    %2201 = vmatprep.mubr.bf16.mxu0 0
    %2202 = vmatmul.mubr.bf16.gmra.mxu0 %v2164
    %v2203 = vpop.f32.mrf.mxu0
    %v2204 = vadd.f32 0.0, %v2203
    %v2205 = vpop.f32.mrf.mxu0
    %v2206 = vpop.f32.mrf.mxu0
    %v2207 = vadd.f32 0.0, %v2206
    %v2208 = vpop.f32.mrf.mxu0
    %2209 = vdwg.mxu0
    %v2210 = vadd.f32 %v1936, %v2204
    %v2211 = vadd.f32 %v1939, %v2207
    %2212 = vrot.lane.b32.xlu0 %v1406, 104
    %v2213 = vpop.permute.xlu0 %2212
    %2214 = vrot.lane.b32.xlu0 %v1408, 104
    %v2215 = vpop.permute.xlu0 %2214
    %v2217 = vsel %vm160, %v2213, 0
    %v2220 = vsel %vm160, %v2215, 0
    %2222 = vmatprep.subr.bf16.mxu0 0
    %2223 = vmatpush1.bf16.xpose.msra.mxu0 0
    %2224 = vmatprep.subr.bf16.mxu0 0
    %2225 = vmatpush1.bf16.xpose.msra.mxu0 0
    %2226 = vmatprep.subr.bf16.mxu0 0
    %2227 = vmatpush1.bf16.xpose.msra.mxu0 0
    %2228 = vmatprep.subr.bf16.mxu0 0
    %2229 = vmatpush1.bf16.xpose.msra.mxu0 0
    %2230 = vmatprep.subr.bf16.mxu0 0
    %2231 = vmatpush1.bf16.xpose.msra.mxu0 0
    %2232 = vmatprep.subr.bf16.mxu0 0
    %2233 = vmatpush1.bf16.xpose.msra.mxu0 0
    %2234 = vmatprep.subr.bf16.mxu0 0
    %2235 = vmatpush1.bf16.xpose.msra.mxu0 0
    %2236 = vmatprep.subr.bf16.mxu0 0
    %2237 = vmatpush1.bf16.xpose.msra.mxu0 %v2220
    %2238 = vmatprep.subr.bf16.mxu0 0
    %2239 = vmatpush2.bf16.xpose.msra.mxu0 0
    %2240 = vmatprep.subr.bf16.mxu0 0
    %2241 = vmatpush2.bf16.xpose.msra.mxu0 0
    %2242 = vmatprep.subr.bf16.mxu0 0
    %2243 = vmatpush2.bf16.xpose.msra.mxu0 0
    %2244 = vmatprep.subr.bf16.mxu0 0
    %2245 = vmatpush2.bf16.xpose.msra.mxu0 0
    %2246 = vmatprep.subr.bf16.mxu0 0
    %2247 = vmatpush2.bf16.xpose.msra.mxu0 0
    %2248 = vmatprep.subr.bf16.mxu0 0
    %2249 = vmatpush2.bf16.xpose.msra.mxu0 0
    %2250 = vmatprep.subr.bf16.mxu0 0
    %2251 = vmatpush2.bf16.xpose.msra.mxu0 0
    %2252 = vmatprep.subr.bf16.mxu0 0
    %2253 = vmatpush2.bf16.xpose.msra.mxu0 0
    %2254 = vmatprep.mubr.bf16.mxu0 0
    %2255 = vmatmul.mubr.bf16.gmra.mxu0 %v2217
    %v2256 = vpop.f32.mrf.mxu0
    %v2257 = vadd.f32 %v150, %v2256
    %v2258 = vpop.f32.mrf.mxu0
    %v2259 = vpop.f32.mrf.mxu0
    %v2260 = vpop.f32.mrf.mxu0
    %2261 = vdwg.mxu0
    %2262 = vrot.lane.b32.xlu0 %v1407, 104
    %v2263 = vpop.permute.xlu0 %2262
    %2264 = vrot.lane.b32.xlu0 %v1409, 104
    %v2265 = vpop.permute.xlu0 %2264
    %v2267 = vsel %vm160, %v2263, 0
    %v2270 = vsel %vm160, %v2265, 0
    %2272 = vmatprep.subr.bf16.mxu0 0
    %2273 = vmatpush1.bf16.xpose.msra.mxu0 0
    %2274 = vmatprep.subr.bf16.mxu0 0
    %2275 = vmatpush1.bf16.xpose.msra.mxu0 0
    %2276 = vmatprep.subr.bf16.mxu0 0
    %2277 = vmatpush1.bf16.xpose.msra.mxu0 0
    %2278 = vmatprep.subr.bf16.mxu0 0
    %2279 = vmatpush1.bf16.xpose.msra.mxu0 0
    %2280 = vmatprep.subr.bf16.mxu0 0
    %2281 = vmatpush1.bf16.xpose.msra.mxu0 0
    %2282 = vmatprep.subr.bf16.mxu0 0
    %2283 = vmatpush1.bf16.xpose.msra.mxu0 0
    %2284 = vmatprep.subr.bf16.mxu0 0
    %2285 = vmatpush1.bf16.xpose.msra.mxu0 0
    %2286 = vmatprep.subr.bf16.mxu0 0
    %2287 = vmatpush1.bf16.xpose.msra.mxu0 %v2270
    %2288 = vmatprep.subr.bf16.mxu0 0
    %2289 = vmatpush2.bf16.xpose.msra.mxu0 0
    %2290 = vmatprep.subr.bf16.mxu0 0
    %2291 = vmatpush2.bf16.xpose.msra.mxu0 0
    %2292 = vmatprep.subr.bf16.mxu0 0
    %2293 = vmatpush2.bf16.xpose.msra.mxu0 0
    %2294 = vmatprep.subr.bf16.mxu0 0
    %2295 = vmatpush2.bf16.xpose.msra.mxu0 0
    %2296 = vmatprep.subr.bf16.mxu0 0
    %2297 = vmatpush2.bf16.xpose.msra.mxu0 0
    %2298 = vmatprep.subr.bf16.mxu0 0
    %2299 = vmatpush2.bf16.xpose.msra.mxu0 0
    %2300 = vmatprep.subr.bf16.mxu0 0
    %2301 = vmatpush2.bf16.xpose.msra.mxu0 0
    %2302 = vmatprep.subr.bf16.mxu0 0
    %2303 = vmatpush2.bf16.xpose.msra.mxu0 0
    %2304 = vmatprep.mubr.bf16.mxu0 0
    %2305 = vmatmul.mubr.bf16.gmra.mxu0 %v2267
    %v2306 = vpop.f32.mrf.mxu0
    %v2307 = vadd.f32 %v150, %v2306
    %v2308 = vpop.f32.mrf.mxu0
    %v2309 = vpop.f32.mrf.mxu0
    %v2310 = vpop.f32.mrf.mxu0
    %2311 = vdwg.mxu0
    %v2312 = vsel %vm160, %v2257, -inf
    %2313 = vmax.xlane.f32.xlu0 %v2312
    %v2314 = vpop.xlane.xlu0 %2313
    %v2315 = vsel %vm160, %v2307, -inf
    %2316 = vmax.xlane.f32.xlu0 %v2315
    %v2317 = vpop.xlane.xlu0 %2316
    %v2318 = vsub.f32 %v2257, %v2314
    %v2319 = vsub.f32 %v2307, %v2317
    %v2320 = vmul.f32 %v2318, 1.442695
    %v2321 = vpow.pop %v2320
    %v2322 = vmul.f32 %v2319, 1.442695
    %v2323 = vpow.pop %v2322
    %v2324 = vsel %vm160, %v2321, 0.0
    %2325 = vadd.xlane.f32.xlu0 %v2324
    %v2326 = vpop.xlane.xlu0 %2325
    %v2327 = vsel %vm160, %v2323, 0.0
    %2328 = vadd.xlane.f32.xlu0 %v2327
    %v2329 = vpop.xlane.xlu0 %2328
    %v2330 = vrcp.pop %v2326
    %v2331 = vrcp.pop %v2329
    %v2332 = vmul.f32 %v2321, %v2330
    %v2333 = vmul.f32 %v2323, %v2331
    %v2334 = vpack.c.bf16 %v2332, %v2332
    %v2335 = vpack.c.bf16 %v2333, %v2333
    %2336 = vrot.lane.b32.xlu0 %v1408, 72
    %v2337 = vpop.permute.xlu0 %2336
    %v2339 = vsel %vm160, %v2334, 0
    %v2342 = vsel %vm285, %v2337, 0
    %2344 = vmatprep.subr.bf16.mxu0 0
    %2345 = vmatpush1.bf16.msra.mxu0 0
    %2346 = vmatprep.subr.bf16.mxu0 0
    %2347 = vmatpush1.bf16.msra.mxu0 0
    %2348 = vmatprep.subr.bf16.mxu0 0
    %2349 = vmatpush1.bf16.msra.mxu0 0
    %2350 = vmatprep.subr.bf16.mxu0 0
    %2351 = vmatpush1.bf16.msra.mxu0 0
    %2352 = vmatprep.subr.bf16.mxu0 0
    %2353 = vmatpush1.bf16.msra.mxu0 0
    %2354 = vmatprep.subr.bf16.mxu0 0
    %2355 = vmatpush1.bf16.msra.mxu0 0
    %2356 = vmatprep.subr.bf16.mxu0 0
    %2357 = vmatpush1.bf16.msra.mxu0 0
    %2358 = vmatprep.subr.bf16.mxu0 0
    %2359 = vmatpush1.bf16.msra.mxu0 %v2342
    %2360 = vmatprep.subr.bf16.mxu0 0
    %2361 = vmatpush2.bf16.msra.mxu0 0
    %2362 = vmatprep.subr.bf16.mxu0 0
    %2363 = vmatpush2.bf16.msra.mxu0 0
    %2364 = vmatprep.subr.bf16.mxu0 0
    %2365 = vmatpush2.bf16.msra.mxu0 0
    %2366 = vmatprep.subr.bf16.mxu0 0
    %2367 = vmatpush2.bf16.msra.mxu0 0
    %2368 = vmatprep.subr.bf16.mxu0 0
    %2369 = vmatpush2.bf16.msra.mxu0 0
    %2370 = vmatprep.subr.bf16.mxu0 0
    %2371 = vmatpush2.bf16.msra.mxu0 0
    %2372 = vmatprep.subr.bf16.mxu0 0
    %2373 = vmatpush2.bf16.msra.mxu0 0
    %2374 = vmatprep.subr.bf16.mxu0 0
    %2375 = vmatpush2.bf16.msra.mxu0 0
    %2376 = vmatprep.mubr.bf16.mxu0 0
    %2377 = vmatmul.mubr.bf16.gmra.mxu0 %v2339
    %v2378 = vpop.f32.mrf.mxu0
    %v2379 = vadd.f32 0.0, %v2378
    %v2380 = vpop.f32.mrf.mxu0
    %v2381 = vpop.f32.mrf.mxu0
    %v2382 = vpop.f32.mrf.mxu0
    %2383 = vdwg.mxu0
    %2384 = vrot.lane.b32.xlu0 %v1409, 72
    %v2385 = vpop.permute.xlu0 %2384
    %v2387 = vsel %vm160, %v2335, 0
    %v2390 = vsel %vm285, %v2385, 0
    %2392 = vmatprep.subr.bf16.mxu0 0
    %2393 = vmatpush1.bf16.msra.mxu0 0
    %2394 = vmatprep.subr.bf16.mxu0 0
    %2395 = vmatpush1.bf16.msra.mxu0 0
    %2396 = vmatprep.subr.bf16.mxu0 0
    %2397 = vmatpush1.bf16.msra.mxu0 0
    %2398 = vmatprep.subr.bf16.mxu0 0
    %2399 = vmatpush1.bf16.msra.mxu0 0
    %2400 = vmatprep.subr.bf16.mxu0 0
    %2401 = vmatpush1.bf16.msra.mxu0 0
    %2402 = vmatprep.subr.bf16.mxu0 0
    %2403 = vmatpush1.bf16.msra.mxu0 0
    %2404 = vmatprep.subr.bf16.mxu0 0
    %2405 = vmatpush1.bf16.msra.mxu0 0
    %2406 = vmatprep.subr.bf16.mxu0 0
    %2407 = vmatpush1.bf16.msra.mxu0 %v2390
    %2408 = vmatprep.subr.bf16.mxu0 0
    %2409 = vmatpush2.bf16.msra.mxu0 0
    %2410 = vmatprep.subr.bf16.mxu0 0
    %2411 = vmatpush2.bf16.msra.mxu0 0
    %2412 = vmatprep.subr.bf16.mxu0 0
    %2413 = vmatpush2.bf16.msra.mxu0 0
    %2414 = vmatprep.subr.bf16.mxu0 0
    %2415 = vmatpush2.bf16.msra.mxu0 0
    %2416 = vmatprep.subr.bf16.mxu0 0
    %2417 = vmatpush2.bf16.msra.mxu0 0
    %2418 = vmatprep.subr.bf16.mxu0 0
    %2419 = vmatpush2.bf16.msra.mxu0 0
    %2420 = vmatprep.subr.bf16.mxu0 0
    %2421 = vmatpush2.bf16.msra.mxu0 0
    %2422 = vmatprep.subr.bf16.mxu0 0
    %2423 = vmatpush2.bf16.msra.mxu0 0
    %2424 = vmatprep.mubr.bf16.mxu0 0
    %2425 = vmatmul.mubr.bf16.gmra.mxu0 %v2387
    %v2426 = vpop.f32.mrf.mxu0
    %v2427 = vadd.f32 0.0, %v2426
    %v2428 = vpop.f32.mrf.mxu0
    %v2429 = vpop.f32.mrf.mxu0
    %v2430 = vpop.f32.mrf.mxu0
    %2431 = vdwg.mxu0
    %v2432 = vpack.c.bf16 %v2427, %v2379
    %v2434 = vsel %vm160, %v2432, 0
    %v2437 = vsel %vm285, %v1405, 0
    %2439 = vmatprep.subr.bf16.mxu0 0
    %2440 = vmatpush1.bf16.msra.mxu0 0
    %2441 = vmatprep.subr.bf16.mxu0 0
    %2442 = vmatpush1.bf16.msra.mxu0 0
    %2443 = vmatprep.subr.bf16.mxu0 0
    %2444 = vmatpush1.bf16.msra.mxu0 0
    %2445 = vmatprep.subr.bf16.mxu0 0
    %2446 = vmatpush1.bf16.msra.mxu0 0
    %2447 = vmatprep.subr.bf16.mxu0 0
    %2448 = vmatpush1.bf16.msra.mxu0 0
    %2449 = vmatprep.subr.bf16.mxu0 0
    %2450 = vmatpush1.bf16.msra.mxu0 0
    %2451 = vmatprep.subr.bf16.mxu0 0
    %2452 = vmatpush1.bf16.msra.mxu0 0
    %2453 = vmatprep.subr.bf16.mxu0 0
    %2454 = vmatpush1.bf16.msra.mxu0 %v2437
    %2455 = vmatprep.subr.bf16.mxu0 0
    %2456 = vmatpush2.bf16.msra.mxu0 0
    %2457 = vmatprep.subr.bf16.mxu0 0
    %2458 = vmatpush2.bf16.msra.mxu0 0
    %2459 = vmatprep.subr.bf16.mxu0 0
    %2460 = vmatpush2.bf16.msra.mxu0 0
    %2461 = vmatprep.subr.bf16.mxu0 0
    %2462 = vmatpush2.bf16.msra.mxu0 0
    %2463 = vmatprep.subr.bf16.mxu0 0
    %2464 = vmatpush2.bf16.msra.mxu0 0
    %2465 = vmatprep.subr.bf16.mxu0 0
    %2466 = vmatpush2.bf16.msra.mxu0 0
    %2467 = vmatprep.subr.bf16.mxu0 0
    %2468 = vmatpush2.bf16.msra.mxu0 0
    %2469 = vmatprep.subr.bf16.mxu0 0
    %2470 = vmatpush2.bf16.msra.mxu0 0
    %2471 = vmatprep.mubr.bf16.mxu0 0
    %2472 = vmatmul.mubr.bf16.gmra.mxu0 %v2434
    %v2473 = vpop.f32.mrf.mxu0
    %v2474 = vadd.f32 0.0, %v2473
    %v2475 = vpop.f32.mrf.mxu0
    %v2476 = vpop.f32.mrf.mxu0
    %v2477 = vadd.f32 0.0, %v2476
    %v2478 = vpop.f32.mrf.mxu0
    %2479 = vdwg.mxu0
    %v2480 = vadd.f32 %v2210, %v2474
    %v2481 = vadd.f32 %v2211, %v2477
    %v2482 = vlaneseq
    %v2483 = vshrl.u32 %v2482, 7
    %v2484 = vsub.s32 3, %v2483
    %v2485 = vrot.slane %v77, %v2484
    %v2486 = vadd.f32 %v2480, %v2485
    %v2487 = vadd.f32 %v2481, %v2485
    %v2488 = vadd.f32 %v1278, %v2486
    %v2489 = vadd.f32 %v1279, %v2487
    %v2490 = vsel %vm100, %v2488, 0.0
    %2491 = vadd.xlane.f32.xlu0 %v2490
    %v2492 = vpop.xlane.xlu0 %2491
    %v2493 = vsel %vm100, %v2489, 0.0
    %2494 = vadd.xlane.f32.xlu0 %v2493
    %v2495 = vpop.xlane.xlu0 %2494
    %v2496 = vmul.f32 %v2492, %v1247
    %v2497 = vmul.f32 %v2495, %v1247
    %v2498 = vsub.f32 %v2488, %v2496
    %v2499 = vsub.f32 %v2489, %v2497
    %v2500 = vmul.f32 %v2498, %v2498
    %v2501 = vmul.f32 %v2499, %v2499
    %v2502 = vsel %vm100, %v2500, 0.0
    %2503 = vadd.xlane.f32.xlu0 %v2502
    %v2504 = vpop.xlane.xlu0 %2503
    %v2505 = vsel %vm100, %v2501, 0.0
    %2506 = vadd.xlane.f32.xlu0 %v2505
    %v2507 = vpop.xlane.xlu0 %2506
    %v2508 = vmul.f32 %v2504, %v1247
    %v2509 = vmul.f32 %v2507, %v1247
    %v2510 = vadd.f32 %v2508, 1e-05
    %v2511 = vadd.f32 %v2509, 1e-05
    %v2512 = vrsqrt.pop %v2510
    %v2513 = vrsqrt.pop %v2511
    %v2514 = vmul.f32 %v2498, %v2512
    %v2515 = vmul.f32 %v2499, %v2513
    %v2516 = vlaneseq
    %v2517 = vshrl.u32 %v2516, 7
    %v2518 = vsub.s32 0, %v2517
    %v2519 = vrot.slane %v78, %v2518
    %v2520 = vmul.f32 %v2514, %v2519
    %v2521 = vmul.f32 %v2515, %v2519
    %v2522 = vlaneseq
    %v2523 = vshrl.u32 %v2522, 7
    %v2524 = vsub.s32 1, %v2523
    %v2525 = vrot.slane %v78, %v2524
    %v2526 = vadd.f32 %v2520, %v2525
    %v2527 = vadd.f32 %v2521, %v2525
    %v2528 = vpack.c.bf16 %v2527, %v2526
    %v2529 = vld [vmem:[#allocation5] sm:$0xf]
    %v2530 = vld [vmem:[#allocation5 + $0x4] sm:$0xf]
    %v2531 = vld [vmem:[#allocation5 + $0x8] sm:$0xf]
    %v2532 = vld [vmem:[#allocation5 + $0xc] sm:$0xf]
    %v2533 = vlaneseq
    %v2534 = vshrl.u32 %v2533, 7
    %v2535 = vsub.s32 4, %v2534
    %v2536 = vrot.slane %v77, %v2535
    %v2541 = vunpack.c.l.b16 %v2529
    %v2542 = vunpack.c.l.b16 %v2530
    %v2543 = vunpack.c.l.b16 %v2531
    %v2544 = vunpack.c.l.b16 %v2532
    %v2545 = vpack.c.b16 %v2542, %v2541
    %v2546 = vpack.c.b16 %v2544, %v2543
    %v2550 = vsel %vm100, %v2528, 0
    %2552 = vmatprep.subr.bf16.mxu0 0
    %2553 = vmatpush1.bf16.msra.mxu0 0
    %2554 = vmatprep.subr.bf16.mxu0 0
    %2555 = vmatpush1.bf16.msra.mxu0 0
    %2556 = vmatprep.subr.bf16.mxu0 0
    %2557 = vmatpush1.bf16.msra.mxu0 0
    %2558 = vmatprep.subr.bf16.mxu0 0
    %2559 = vmatpush1.bf16.msra.mxu0 0
    %2560 = vmatprep.subr.bf16.mxu0 0
    %2561 = vmatpush1.bf16.msra.mxu0 0
    %2562 = vmatprep.subr.bf16.mxu0 0
    %2563 = vmatpush1.bf16.msra.mxu0 0
    %2564 = vmatprep.subr.bf16.mxu0 0
    %2565 = vmatpush1.bf16.msra.mxu0 %v2546
    %2566 = vmatprep.subr.bf16.mxu0 0
    %2567 = vmatpush1.bf16.msra.mxu0 %v2545
    %2568 = vmatprep.subr.bf16.mxu0 0
    %2569 = vmatpush2.bf16.msra.mxu0 0
    %2570 = vmatprep.subr.bf16.mxu0 0
    %2571 = vmatpush2.bf16.msra.mxu0 0
    %2572 = vmatprep.subr.bf16.mxu0 0
    %2573 = vmatpush2.bf16.msra.mxu0 0
    %2574 = vmatprep.subr.bf16.mxu0 0
    %2575 = vmatpush2.bf16.msra.mxu0 0
    %2576 = vmatprep.subr.bf16.mxu0 0
    %2577 = vmatpush2.bf16.msra.mxu0 0
    %2578 = vmatprep.subr.bf16.mxu0 0
    %2579 = vmatpush2.bf16.msra.mxu0 0
    %2580 = vmatprep.subr.bf16.mxu0 0
    %2581 = vmatpush2.bf16.msra.mxu0 0
    %2582 = vmatprep.subr.bf16.mxu0 0
    %2583 = vmatpush2.bf16.msra.mxu0 0
    %2584 = vmatprep.mubr.bf16.mxu0 0
    %2585 = vmatmul.mubr.bf16.gmra.mxu0 %v2550
    %v2586 = vpop.f32.mrf.mxu0
    %v2587 = vadd.f32 %v2536, %v2586
    %v2588 = vpop.f32.mrf.mxu0
    %v2589 = vpop.f32.mrf.mxu0
    %v2590 = vadd.f32 %v2536, %v2589
    %v2591 = vpop.f32.mrf.mxu0
    %2592 = vdwg.mxu0
    %v2593 = vmax.f32 %v2587, 0.0
    %v2594 = vmax.f32 %v2590, 0.0
    %v2595 = vpack.c.bf16 %v2594, %v2593
    %v2596 = vld [vmem:[%s7] sm:$0xf]
    %v2597 = vld [vmem:[%s7 + $0x4] sm:$0xf]
    %v2598 = vld [vmem:[%s7 + $0x8] sm:$0xf]
    %v2599 = vld [vmem:[%s7 + $0xc] sm:$0xf]
    %v2600 = vld [vmem:[%s7 + $0x10] sm:$0xf]
    %v2601 = vld [vmem:[%s7 + $0x14] sm:$0xf]
    %v2602 = vld [vmem:[%s7 + $0x18] sm:$0xf]
    %v2603 = vld [vmem:[%s7 + $0x1c] sm:$0xf]
    %v2604 = vld [vmem:[%s7 + $0x20] sm:$0xf]
    %v2605 = vld [vmem:[%s7 + $0x24] sm:$0xf]
    %v2606 = vld [vmem:[%s7 + $0x28] sm:$0xf]
    %v2607 = vld [vmem:[%s7 + $0x2c] sm:$0xf]
    %v2608 = vld [vmem:[%s7 + $0x30] sm:$0xf]
    %v2609 = vld [vmem:[%s7 + $0x34] sm:$0xf]
    %v2610 = vld [vmem:[%s7 + $0x38] sm:$0xf]
    %v2611 = vld [vmem:[%s7 + $0x3c] sm:$0xf]
    %v2612 = vlaneseq
    %v2613 = vshrl.u32 %v2612, 7
    %v2614 = vsub.s32 5, %v2613
    %v2615 = vrot.slane %v77, %v2614
    %v2632 = vunpack.c.l.b16 %v2596
    %v2633 = vunpack.c.l.b16 %v2597
    %v2634 = vunpack.c.l.b16 %v2598
    %v2635 = vunpack.c.l.b16 %v2599
    %v2636 = vunpack.c.l.b16 %v2600
    %v2637 = vunpack.c.l.b16 %v2601
    %v2638 = vunpack.c.l.b16 %v2602
    %v2639 = vunpack.c.l.b16 %v2603
    %v2640 = vunpack.c.l.b16 %v2604
    %v2641 = vunpack.c.l.b16 %v2605
    %v2642 = vunpack.c.l.b16 %v2606
    %v2643 = vunpack.c.l.b16 %v2607
    %v2644 = vunpack.c.l.b16 %v2608
    %v2645 = vunpack.c.l.b16 %v2609
    %v2646 = vunpack.c.l.b16 %v2610
    %v2647 = vunpack.c.l.b16 %v2611
    %v2648 = vpack.c.b16 %v2633, %v2632
    %v2649 = vpack.c.b16 %v2635, %v2634
    %v2650 = vpack.c.b16 %v2637, %v2636
    %v2651 = vpack.c.b16 %v2639, %v2638
    %v2652 = vpack.c.b16 %v2641, %v2640
    %v2653 = vpack.c.b16 %v2643, %v2642
    %v2654 = vpack.c.b16 %v2645, %v2644
    %v2655 = vpack.c.b16 %v2647, %v2646
    %2664 = vmatprep.subr.bf16.mxu0 0
    %2665 = vmatpush1.bf16.msra.mxu0 %v2655
    %2666 = vmatprep.subr.bf16.mxu0 0
    %2667 = vmatpush1.bf16.msra.mxu0 %v2654
    %2668 = vmatprep.subr.bf16.mxu0 0
    %2669 = vmatpush1.bf16.msra.mxu0 %v2653
    %2670 = vmatprep.subr.bf16.mxu0 0
    %2671 = vmatpush1.bf16.msra.mxu0 %v2652
    %2672 = vmatprep.subr.bf16.mxu0 0
    %2673 = vmatpush1.bf16.msra.mxu0 %v2651
    %2674 = vmatprep.subr.bf16.mxu0 0
    %2675 = vmatpush1.bf16.msra.mxu0 %v2650
    %2676 = vmatprep.subr.bf16.mxu0 0
    %2677 = vmatpush1.bf16.msra.mxu0 %v2649
    %2678 = vmatprep.subr.bf16.mxu0 0
    %2679 = vmatpush1.bf16.msra.mxu0 %v2648
    %2680 = vmatprep.subr.bf16.mxu0 0
    %2681 = vmatpush2.bf16.msra.mxu0 0
    %2682 = vmatprep.subr.bf16.mxu0 0
    %2683 = vmatpush2.bf16.msra.mxu0 0
    %2684 = vmatprep.subr.bf16.mxu0 0
    %2685 = vmatpush2.bf16.msra.mxu0 0
    %2686 = vmatprep.subr.bf16.mxu0 0
    %2687 = vmatpush2.bf16.msra.mxu0 0
    %2688 = vmatprep.subr.bf16.mxu0 0
    %2689 = vmatpush2.bf16.msra.mxu0 0
    %2690 = vmatprep.subr.bf16.mxu0 0
    %2691 = vmatpush2.bf16.msra.mxu0 0
    %2692 = vmatprep.subr.bf16.mxu0 0
    %2693 = vmatpush2.bf16.msra.mxu0 0
    %2694 = vmatprep.subr.bf16.mxu0 0
    %2695 = vmatpush2.bf16.msra.mxu0 0
    %2696 = vmatprep.mubr.bf16.mxu0 0
    %2697 = vmatmul.mubr.bf16.gmra.mxu0 %v2595
    %v2698 = vpop.f32.mrf.mxu0
    %v2699 = vadd.f32 %v2615, %v2698
    %v2700 = vpop.f32.mrf.mxu0
    %v2701 = vpop.f32.mrf.mxu0
    %v2702 = vadd.f32 %v2615, %v2701
    %v2703 = vpop.f32.mrf.mxu0
    %2704 = vdwg.mxu0
    %v2705 = vadd.f32 %v2526, %v2699
    %v2706 = vadd.f32 %v2527, %v2702
    %v2707 = vsel %vm100, %v2705, 0.0
    %2708 = vadd.xlane.f32.xlu0 %v2707
    %v2709 = vpop.xlane.xlu0 %2708
    %v2710 = vsel %vm100, %v2706, 0.0
    %2711 = vadd.xlane.f32.xlu0 %v2710
    %v2712 = vpop.xlane.xlu0 %2711
    %v2713 = vmul.f32 %v2709, %v1247
    %v2714 = vmul.f32 %v2712, %v1247
    %v2715 = vsub.f32 %v2705, %v2713
    %v2716 = vsub.f32 %v2706, %v2714
    %v2717 = vmul.f32 %v2715, %v2715
    %v2718 = vmul.f32 %v2716, %v2716
    %v2719 = vsel %vm100, %v2717, 0.0
    %2720 = vadd.xlane.f32.xlu0 %v2719
    %v2721 = vpop.xlane.xlu0 %2720
    %v2722 = vsel %vm100, %v2718, 0.0
    %2723 = vadd.xlane.f32.xlu0 %v2722
    %v2724 = vpop.xlane.xlu0 %2723
    %v2725 = vmul.f32 %v2721, %v1247
    %v2726 = vmul.f32 %v2724, %v1247
    %v2727 = vadd.f32 %v2725, 1e-05
    %v2728 = vadd.f32 %v2726, 1e-05
    %v2729 = vrsqrt.pop %v2727
    %v2730 = vrsqrt.pop %v2728
    %v2731 = vmul.f32 %v2715, %v2729
    %v2732 = vmul.f32 %v2716, %v2730
    %v2733 = vlaneseq
    %v2734 = vshrl.u32 %v2733, 7
    %v2735 = vsub.s32 2, %v2734
    %v2736 = vrot.slane %v78, %v2735
    %v2737 = vmul.f32 %v2731, %v2736
    %v2738 = vmul.f32 %v2732, %v2736
    %v2739 = vlaneseq
    %v2740 = vshrl.u32 %v2739, 7
    %v2741 = vsub.s32 3, %v2740
    %v2742 = vrot.slane %v78, %v2741
    %v2743 = vadd.f32 %v2737, %v2742
    %v2744 = vadd.f32 %v2738, %v2742
    %2745 = vst.msk [vmem:[#allocation8] sm:$0xff] %vm100, %v2743
    %2746 = vst.msk [vmem:[#allocation8 + $0x8] sm:$0xff] %vm100, %v2744
    // Predicated region
    $region50: #{tpu_custom_call.1} parent=1 // pred_check
      _
    $region51: #{tpu_custom_call.1} parent=1 // pred_check_branch
      %2748 = sbr.rel (0) target = $region53
    $region52: #{tpu_custom_call.1} parent=1 // pred_region
      %s2750 = ssub.s32 256, 256
      %2751 = vsyncadd [#allocation4], %s2750
      %s2752 = sshll.u32 [#allocation8], 4
      %s2753 = int_to_ptr.vmem [resolvable:$true] %s2752
      %2758 = dma.vmem_to_hbm [thread:$0]  %s2753, 256, %s9, [#allocation4], 128, 128, 8
    $region53: #{tpu_custom_call.1} parent=1 // pred_fallthru
      _
    // Predicated region
    $region54: #{tpu_custom_call.1} parent=1 // pred_check
      _
    $region55: #{tpu_custom_call.1} parent=1 // pred_check_branch
      %2760 = sbr.rel (0) target = $region57
    $region56: #{tpu_custom_call.1} parent=1 // pred_region
      %2761 = dma.done [#allocation4], 256
    $region57: #{tpu_custom_call.1} parent=1 // pred_fallthru
      _
    %2762 = vsyncpa [#allocation3], 1
    %2763 = vsyncpa [#allocation6], 1
    %2764 = vsyncpa [#allocation4], 1

</llo_original>
